<compile_context>
chip_gen: v7x
topology: tpu7x:2x2x1
jax: 0.10.0
libtpu: 0.0.40
codegen_flags: <defaults>
</compile_context>

<pallas_src>
import jax
import jax.numpy as jnp
from jax import lax
from jax.experimental import pallas as pl
from jax.experimental.pallas import tpu as pltpu

N_EMBD = 256 * 2                  # n_embd (512)
NUM_HEADS = 4
HEAD_SIZE = N_EMBD // NUM_HEADS   # 128
BLOCK_SIZE = 256                  # causal-mask cap; we only require T <= BLOCK_SIZE
NEG_INF = -1e30                   # finite mask value (NaN-safe vs. -inf)

VMEM_BUDGET = 40 * 1024 * 1024    # what _pick_block_b plans against
VMEM_LIMIT = 48 * 1024 * 1024     # explicit scoped-VMEM limit (fits v7x 64 MiB/TC)


def _q_tile(T):
    """128-row causal query tiles when T is a multiple of 128 (and > 128)."""
    return 128 if (T % 128 == 0 and T > 128) else T


def mha_kernel(x_ref, wqkv_ref, wproj_ref, bproj_ref, o_ref, cat_ref):
    # x_ref:     (Bb, T, C)   f32
    # wqkv_ref:  (C, 3*H*D)   bf16, columns [q_h0..q_hH | k_h0..k_hH | v_h0..v_hH],
    #                         q-columns pre-scaled by D**-0.5
    # wproj_ref: (H*D, C)     bf16 (proj.weight.T)
    # bproj_ref: (1, C)       f32
    # o_ref:     (Bb, T, C)
    # cat_ref:   (Bb, T, H*D) bf16 VMEM scratch (per-head outputs land here)
    Bb, T, C = x_ref.shape
    HD = NUM_HEADS * HEAD_SIZE
    D = HEAD_SIZE
    TQ = _q_tile(T)
    NQ = T // TQ

    # ---- fused QKV projection for all heads; M = Bb*T rows fills the MXU ----
    x2d = x_ref[...].reshape(Bb * T, C).astype(jnp.bfloat16)
    qkv = lax.dot_general(
        x2d, wqkv_ref[...],
        dimension_numbers=(((1,), (0,)), ((), ())),
        preferred_element_type=jnp.float32,
    ).astype(jnp.bfloat16).reshape(Bb, T, 3 * HD)   # single cast; f32 qkv transient

    row_base = lax.broadcasted_iota(jnp.int32, (TQ, T), 0)
    col_base = lax.broadcasted_iota(jnp.int32, (TQ, T), 1)

    for h in range(NUM_HEADS):                       # small static unroll (H = 4)
        for i in range(NQ):                          # causal query tiles
            klen = (i + 1) * TQ                      # keys beyond tile end are masked
            q = qkv[:, i * TQ:(i + 1) * TQ, h * D:(h + 1) * D]            # (Bb,TQ,D)
            k = qkv[:, :klen, HD + h * D: HD + (h + 1) * D]               # (Bb,kl,D)
            v = qkv[:, :klen, 2 * HD + h * D: 2 * HD + (h + 1) * D]       # (Bb,kl,D)

            # scores: contract last dims (transpose absorbed into MXU form);
            # 1/sqrt(D) already folded into W_q on the host.
            s = lax.dot_general(
                q, k,
                dimension_numbers=(((2,), (2,)), ((0,), (0,))),
                preferred_element_type=jnp.float32,
            )                                        # (Bb, TQ, klen) f32

            causal = (col_base[:, :klen] <= (row_base[:, :klen] + i * TQ))
            s = jnp.where(causal, s, NEG_INF)
            s = s - jnp.max(s, axis=-1, keepdims=True)
            p = jnp.exp(s)                           # unnormalized probs (f32)
            denom = jnp.sum(p, axis=-1, keepdims=True)
            # TODO(synk): attention dropout (p=0.25) omitted — inference/eval semantics.

            ho = lax.dot_general(
                p.astype(jnp.bfloat16), v,
                dimension_numbers=(((2,), (1,)), ((0,), (0,))),
                preferred_element_type=jnp.float32,
            )                                        # (Bb, TQ, D) f32
            # deferred normalization: reciprocal on the EUP slot, scale the (TQ,D) tile
            ho = ho * pl.reciprocal(denom, approx=True)
            cat_ref[:, i * TQ:(i + 1) * TQ, h * D:(h + 1) * D] = ho.astype(jnp.bfloat16)

    # ---- single output projection over all heads; M = Bb*T rows again ----
    cat2d = cat_ref[...].reshape(Bb * T, HD)
    out = lax.dot_general(
        cat2d, wproj_ref[...],
        dimension_numbers=(((1,), (0,)), ((), ())),
        preferred_element_type=jnp.float32,
    )                                                # (Bb*T, C) f32
    out = out + bproj_ref[0]
    # TODO(synk): output dropout (p=0.25) omitted — inference/eval semantics.
    o_ref[...] = out.reshape(Bb, T, C).astype(o_ref.dtype)


def _num_tensorcores():
    """2 for v7x (megacore-style split), else 1 (v5e/v6e)."""
    try:
        kind = jax.devices()[0].device_kind.lower()
    except Exception:
        return 1
    return 2 if ("v7" in kind or "7x" in kind) else 1


def _vmem_bytes_estimate(bb, T, C, HD):
    """Honest per-step VMEM estimate: pipeline buffers + weights + intermediates."""
    f32, bf16 = 4, 2
    tq = _q_tile(T)
    io = 2 * 2 * bb * T * C * f32                       # double-buffered in + out tiles
    weights = 2 * (C * 3 * HD * bf16 + HD * C * bf16 + C * f32)  # double-buffered consts
    x_b = bb * T * C * bf16                              # bf16 copy of x
    qkv = bb * T * 3 * HD * (f32 + bf16)                 # f32 result + persistent bf16
    cat = bb * T * HD * bf16                             # scratch
    attn = 2 * bb * tq * T * f32 + bb * tq * HD * f32    # s + p + per-tile f32 out
    out_f32 = bb * T * C * f32
    return io + weights + x_b + qkv + cat + attn + out_f32 + (2 << 20)  # headroom


def _pick_block_b(B, T, C, HD):
    """Largest divisor of B whose VMEM footprint fits the budget.  On multi-TC chips
    (v7x) prefer a step count divisible by the core count so both cores stay busy;
    on single-TC chips (v5e/v6e) a single grid step is fine (no split overhead)."""
    cores = _num_tensorcores()
    for bb in range(B, 0, -1):
        if B % bb != 0:
            continue
        steps = B // bb
        if cores > 1 and B >= cores and steps % cores != 0:
            continue
        if _vmem_bytes_estimate(bb, T, C, HD) <= VMEM_BUDGET:
            return bb
    return 1


def multi_head_attention(x, wq, wk, wv, wproj_t, bproj):
    """x: (B,T,C) f32; wq/wk/wv: (H,C,D) (already transposed vs torch Linear.weight);
    wproj_t: (H*D,C) (proj.weight.T); bproj: (C,)."""
    B, T, C = x.shape
    H, _, D = wq.shape
    assert C == N_EMBD and H == NUM_HEADS and D == HEAD_SIZE and T <= BLOCK_SIZE
    assert T % 8 == 0, "seq length must be a multiple of 8 (sublane tiling)"

    HD = H * D
    scale = D ** (-0.5)

    def to_cat(w):  # (H, C, D) -> (C, H*D); head h occupies columns [h*D, (h+1)*D)
        return jnp.transpose(w, (1, 0, 2)).reshape(C, HD)

    # bf16 weights for the MXU; fold the attention scale into the q columns (free).
    w_qkv = jnp.concatenate(
        [to_cat(wq) * scale, to_cat(wk), to_cat(wv)], axis=1
    ).astype(jnp.bfloat16)                               # (C, 3*H*D)
    w_proj = wproj_t.astype(jnp.bfloat16)                # (H*D, C)
    b_proj = bproj.reshape(1, C).astype(jnp.float32)     # (1, C)

    bb = _pick_block_b(B, T, C, HD)
    grid = (B // bb,)

    return pl.pallas_call(
        mha_kernel,
        out_shape=jax.ShapeDtypeStruct((B, T, C), x.dtype),
        grid=grid,
        in_specs=[
            pl.BlockSpec((bb, T, C), lambda b: (b, 0, 0)),
            pl.BlockSpec((C, 3 * HD), lambda b: (0, 0)),
            pl.BlockSpec((HD, C), lambda b: (0, 0)),
            pl.BlockSpec((1, C), lambda b: (0, 0)),
        ],
        out_specs=pl.BlockSpec((bb, T, C), lambda b: (b, 0, 0)),
        scratch_shapes=[pltpu.VMEM((bb, T, HD), jnp.bfloat16)],
        compiler_params=pltpu.CompilerParams(
            dimension_semantics=("parallel",),
            vmem_limit_bytes=VMEM_LIMIT,
        ),
    )(x, w_qkv, w_proj, b_proj)


def reference_mha(x, wq, wk, wv, wproj_t, bproj):
    """Pure-JAX f32 reference mirroring the PyTorch forward (dropout = identity)."""
    B, T, C = x.shape
    outs = []
    for h in range(NUM_HEADS):
        q = x @ wq[h]
        k = x @ wk[h]
        v = x @ wv[h]
        wei = (q @ jnp.swapaxes(k, -2, -1)) * (HEAD_SIZE ** -0.5)
        mask = jnp.tril(jnp.ones((T, T), dtype=bool))
        wei = jnp.where(mask, wei, -jnp.inf)
        wei = jax.nn.softmax(wei, axis=-1)
        outs.append(wei @ v)
    cat = jnp.concatenate(outs, axis=-1)
    return cat @ wproj_t + bproj


if __name__ == "__main__":
    key = jax.random.PRNGKey(0)
    kx, kq, kk, kv, kp, kb = jax.random.split(key, 6)

    # Deterministic synthetic parameters (already transposed for `x @ W`):
    wq = 0.02 * jax.random.normal(kq, (NUM_HEADS, N_EMBD, HEAD_SIZE), dtype=jnp.float32)
    wk = 0.02 * jax.random.normal(kk, (NUM_HEADS, N_EMBD, HEAD_SIZE), dtype=jnp.float32)
    wv = 0.02 * jax.random.normal(kv, (NUM_HEADS, N_EMBD, HEAD_SIZE), dtype=jnp.float32)
    wproj_t = 0.02 * jax.random.normal(kp, (NUM_HEADS * HEAD_SIZE, N_EMBD), dtype=jnp.float32)
    bproj = 0.02 * jax.random.normal(kb, (N_EMBD,), dtype=jnp.float32)

    # Small seq (single q-tile path) and full block_size (causal-tiling path).
    for (B, T) in [(2, 8), (2, BLOCK_SIZE)]:
        x = jax.random.normal(jax.random.fold_in(kx, T), (B, T, N_EMBD), dtype=jnp.float32)

        out = multi_head_attention(x, wq, wk, wv, wproj_t, bproj)
        out = jax.block_until_ready(out)

        ref = reference_mha(x, wq, wk, wv, wproj_t, bproj)
        assert out.shape == (B, T, N_EMBD)
        max_err = float(jnp.max(jnp.abs(out - ref)))
        # bf16 MXU operands + approx reciprocal vs f32 reference -> relaxed tolerance
        assert jnp.allclose(out, ref, atol=3e-2, rtol=3e-2), \
            f"T={T}: mismatch, max|err|={max_err}"

    print("KERNEL_OK")
</pallas_src>

<mosaic_0001>
module attributes {stable_mosaic.version = 11 : i64} {
  func.func @mha_kernel(%arg0: i32, %arg1: memref<2x8x512xf32, #tpu.memory_space<vmem>>, %arg2: memref<512x1536xbf16, #tpu.memory_space<vmem>>, %arg3: memref<512x512xbf16, #tpu.memory_space<vmem>>, %arg4: memref<1x512xf32, #tpu.memory_space<vmem>>, %arg5: memref<2x8x512xf32, #tpu.memory_space<vmem>>, %arg6: memref<2x8x512xbf16, #tpu.memory_space<vmem>>) attributes {dimension_semantics = [#tpu.dimension_semantics<parallel>], iteration_bounds = array<i64: 1>, scalar_prefetch = 0 : i64, scratch_operands = 1 : i64, tpu.core_type = #tpu.core_type<tc>, window_params = [{transform_indices = @transform_0, window_bounds = array<i64: 2, 8, 512>}, {pipeline_mode = #tpu.pipeline_mode<synchronous>, transform_indices = @transform_1, window_bounds = array<i64: 512, 1536>}, {pipeline_mode = #tpu.pipeline_mode<synchronous>, transform_indices = @transform_2, window_bounds = array<i64: 512, 512>}, {pipeline_mode = #tpu.pipeline_mode<synchronous>, transform_indices = @transform_3, window_bounds = array<i64: 1, 512>}, {transform_indices = @transform_4, window_bounds = array<i64: 2, 8, 512>}]} {
    %c0 = arith.constant 0 : index
    %c0_0 = arith.constant 0 : index
    %c0_1 = arith.constant 0 : index
    %0 = vector.load %arg1[%c0, %c0_0, %c0_1] : memref<2x8x512xf32, #tpu.memory_space<vmem>>, vector<2x8x512xf32>
    %1 = vector.shape_cast %0 : vector<2x8x512xf32> to vector<16x512xf32>
    %2 = arith.truncf %1 : vector<16x512xf32> to vector<16x512xbf16>
    %c0_2 = arith.constant 0 : index
    %c0_3 = arith.constant 0 : index
    %3 = vector.load %arg2[%c0_2, %c0_3] : memref<512x1536xbf16, #tpu.memory_space<vmem>>, vector<512x1536xbf16>
    %cst = arith.constant dense<0.000000e+00> : vector<16x1536xf32>
    %4 = tpu.matmul %2, %3, %cst {dimension_numbers = #tpu.dot_dimension_numbers<[1], [0], [0], [1], [0, 0, 1, 1], [], []>} : vector<16x512xbf16>, vector<512x1536xbf16>, vector<16x1536xf32> -> vector<16x1536xf32>
    %5 = arith.truncf %4 : vector<16x1536xf32> to vector<16x1536xbf16>
    %6 = vector.shape_cast %5 : vector<16x1536xbf16> to vector<2x8x1536xbf16>
    %7 = tpu.iota {dimensions = array<i32: 0>} : vector<8x8xi32>
    %8 = tpu.iota {dimensions = array<i32: 1>} : vector<8x8xi32>
    %9 = vector.extract_strided_slice %6 {offsets = [0, 0, 0], sizes = [2, 8, 128], strides = [1, 1, 1]} : vector<2x8x1536xbf16> to vector<2x8x128xbf16>
    %10 = vector.extract_strided_slice %6 {offsets = [0, 0, 512], sizes = [2, 8, 128], strides = [1, 1, 1]} : vector<2x8x1536xbf16> to vector<2x8x128xbf16>
    %11 = vector.extract_strided_slice %6 {offsets = [0, 0, 1024], sizes = [2, 8, 128], strides = [1, 1, 1]} : vector<2x8x1536xbf16> to vector<2x8x128xbf16>
    %cst_4 = arith.constant dense<0.000000e+00> : vector<2x8x8xf32>
    %12 = tpu.matmul %9, %10, %cst_4 {dimension_numbers = #tpu.dot_dimension_numbers<[2], [2], [1], [1], [0, 0, 0, 1, 1, 1], [0], [0]>} : vector<2x8x128xbf16>, vector<2x8x128xbf16>, vector<2x8x8xf32> -> vector<2x8x8xf32>
    %c0_i32 = arith.constant 0 : i32
    %13 = vector.broadcast %c0_i32 : i32 to vector<8x8xi32>
    %14 = arith.addi %7, %13 : vector<8x8xi32>
    %15 = arith.cmpi sle, %8, %14 : vector<8x8xi32>
    %cst_5 = arith.constant -1.000000e+30 : f32
    %16 = vector.shape_cast %15 : vector<8x8xi1> to vector<1x8x8xi1>
    %17 = vector.broadcast %16 : vector<1x8x8xi1> to vector<2x8x8xi1>
    %18 = vector.broadcast %cst_5 : f32 to vector<2x8x8xf32>
    %19 = arith.select %17, %12, %18 : vector<2x8x8xi1>, vector<2x8x8xf32>
    %cst_6 = arith.constant dense<0xFF800000> : vector<2x8xf32>
    %20 = vector.multi_reduction <maximumf>, %19, %cst_6 [2] : vector<2x8x8xf32> to vector<2x8xf32>
    %21 = vector.shape_cast %20 : vector<2x8xf32> to vector<2x8x1xf32>
    %22 = vector.broadcast %21 : vector<2x8x1xf32> to vector<2x8x8xf32>
    %23 = arith.subf %19, %22 : vector<2x8x8xf32>
    %24 = math.exp %23 : vector<2x8x8xf32>
    %cst_7 = arith.constant dense<0.000000e+00> : vector<2x8xf32>
    %25 = vector.multi_reduction <add>, %24, %cst_7 [2] : vector<2x8x8xf32> to vector<2x8xf32>
    %26 = vector.shape_cast %25 : vector<2x8xf32> to vector<2x8x1xf32>
    %27 = arith.truncf %24 : vector<2x8x8xf32> to vector<2x8x8xbf16>
    %cst_8 = arith.constant dense<0.000000e+00> : vector<2x8x128xf32>
    %28 = tpu.matmul %27, %11, %cst_8 {dimension_numbers = #tpu.dot_dimension_numbers<[2], [1], [1], [2], [0, 0, 0, 1, 1, 2], [0], [0]>} : vector<2x8x8xbf16>, vector<2x8x128xbf16>, vector<2x8x128xf32> -> vector<2x8x128xf32>
    %29 = tpu.reciprocal %26 {approx = true} : vector<2x8x1xf32> -> vector<2x8x1xf32>
    %30 = vector.broadcast %29 : vector<2x8x1xf32> to vector<2x8x128xf32>
    %31 = arith.mulf %28, %30 : vector<2x8x128xf32>
    %32 = arith.truncf %31 : vector<2x8x128xf32> to vector<2x8x128xbf16>
    %c0_9 = arith.constant 0 : index
    %c0_10 = arith.constant 0 : index
    %c0_11 = arith.constant 0 : index
    %33 = vector.load %arg6[%c0_9, %c0_10, %c0_11] : memref<2x8x512xbf16, #tpu.memory_space<vmem>>, vector<2x8x128xbf16>
    tpu.vector_store %arg6[%c0_9, %c0_10, %c0_11], %32 {strides = array<i32>} : memref<2x8x512xbf16, #tpu.memory_space<vmem>>, vector<2x8x128xbf16>,
    %34 = vector.extract_strided_slice %6 {offsets = [0, 0, 128], sizes = [2, 8, 128], strides = [1, 1, 1]} : vector<2x8x1536xbf16> to vector<2x8x128xbf16>
    %35 = vector.extract_strided_slice %6 {offsets = [0, 0, 640], sizes = [2, 8, 128], strides = [1, 1, 1]} : vector<2x8x1536xbf16> to vector<2x8x128xbf16>
    %36 = vector.extract_strided_slice %6 {offsets = [0, 0, 1152], sizes = [2, 8, 128], strides = [1, 1, 1]} : vector<2x8x1536xbf16> to vector<2x8x128xbf16>
    %cst_12 = arith.constant dense<0.000000e+00> : vector<2x8x8xf32>
    %37 = tpu.matmul %34, %35, %cst_12 {dimension_numbers = #tpu.dot_dimension_numbers<[2], [2], [1], [1], [0, 0, 0, 1, 1, 1], [0], [0]>} : vector<2x8x128xbf16>, vector<2x8x128xbf16>, vector<2x8x8xf32> -> vector<2x8x8xf32>
    %c0_i32_13 = arith.constant 0 : i32
    %38 = vector.broadcast %c0_i32_13 : i32 to vector<8x8xi32>
    %39 = arith.addi %7, %38 : vector<8x8xi32>
    %40 = arith.cmpi sle, %8, %39 : vector<8x8xi32>
    %cst_14 = arith.constant -1.000000e+30 : f32
    %41 = vector.shape_cast %40 : vector<8x8xi1> to vector<1x8x8xi1>
    %42 = vector.broadcast %41 : vector<1x8x8xi1> to vector<2x8x8xi1>
    %43 = vector.broadcast %cst_14 : f32 to vector<2x8x8xf32>
    %44 = arith.select %42, %37, %43 : vector<2x8x8xi1>, vector<2x8x8xf32>
    %cst_15 = arith.constant dense<0xFF800000> : vector<2x8xf32>
    %45 = vector.multi_reduction <maximumf>, %44, %cst_15 [2] : vector<2x8x8xf32> to vector<2x8xf32>
    %46 = vector.shape_cast %45 : vector<2x8xf32> to vector<2x8x1xf32>
    %47 = vector.broadcast %46 : vector<2x8x1xf32> to vector<2x8x8xf32>
    %48 = arith.subf %44, %47 : vector<2x8x8xf32>
    %49 = math.exp %48 : vector<2x8x8xf32>
    %cst_16 = arith.constant dense<0.000000e+00> : vector<2x8xf32>
    %50 = vector.multi_reduction <add>, %49, %cst_16 [2] : vector<2x8x8xf32> to vector<2x8xf32>
    %51 = vector.shape_cast %50 : vector<2x8xf32> to vector<2x8x1xf32>
    %52 = arith.truncf %49 : vector<2x8x8xf32> to vector<2x8x8xbf16>
    %cst_17 = arith.constant dense<0.000000e+00> : vector<2x8x128xf32>
    %53 = tpu.matmul %52, %36, %cst_17 {dimension_numbers = #tpu.dot_dimension_numbers<[2], [1], [1], [2], [0, 0, 0, 1, 1, 2], [0], [0]>} : vector<2x8x8xbf16>, vector<2x8x128xbf16>, vector<2x8x128xf32> -> vector<2x8x128xf32>
    %54 = tpu.reciprocal %51 {approx = true} : vector<2x8x1xf32> -> vector<2x8x1xf32>
    %55 = vector.broadcast %54 : vector<2x8x1xf32> to vector<2x8x128xf32>
    %56 = arith.mulf %53, %55 : vector<2x8x128xf32>
    %57 = arith.truncf %56 : vector<2x8x128xf32> to vector<2x8x128xbf16>
    %c0_18 = arith.constant 0 : index
    %c0_19 = arith.constant 0 : index
    %c128 = arith.constant 128 : index
    %58 = vector.load %arg6[%c0_18, %c0_19, %c128] : memref<2x8x512xbf16, #tpu.memory_space<vmem>>, vector<2x8x128xbf16>
    tpu.vector_store %arg6[%c0_18, %c0_19, %c128], %57 {strides = array<i32>} : memref<2x8x512xbf16, #tpu.memory_space<vmem>>, vector<2x8x128xbf16>,
    %59 = vector.extract_strided_slice %6 {offsets = [0, 0, 256], sizes = [2, 8, 128], strides = [1, 1, 1]} : vector<2x8x1536xbf16> to vector<2x8x128xbf16>
    %60 = vector.extract_strided_slice %6 {offsets = [0, 0, 768], sizes = [2, 8, 128], strides = [1, 1, 1]} : vector<2x8x1536xbf16> to vector<2x8x128xbf16>
    %61 = vector.extract_strided_slice %6 {offsets = [0, 0, 1280], sizes = [2, 8, 128], strides = [1, 1, 1]} : vector<2x8x1536xbf16> to vector<2x8x128xbf16>
    %cst_20 = arith.constant dense<0.000000e+00> : vector<2x8x8xf32>
    %62 = tpu.matmul %59, %60, %cst_20 {dimension_numbers = #tpu.dot_dimension_numbers<[2], [2], [1], [1], [0, 0, 0, 1, 1, 1], [0], [0]>} : vector<2x8x128xbf16>, vector<2x8x128xbf16>, vector<2x8x8xf32> -> vector<2x8x8xf32>
    %c0_i32_21 = arith.constant 0 : i32
    %63 = vector.broadcast %c0_i32_21 : i32 to vector<8x8xi32>
    %64 = arith.addi %7, %63 : vector<8x8xi32>
    %65 = arith.cmpi sle, %8, %64 : vector<8x8xi32>
    %cst_22 = arith.constant -1.000000e+30 : f32
    %66 = vector.shape_cast %65 : vector<8x8xi1> to vector<1x8x8xi1>
    %67 = vector.broadcast %66 : vector<1x8x8xi1> to vector<2x8x8xi1>
    %68 = vector.broadcast %cst_22 : f32 to vector<2x8x8xf32>
    %69 = arith.select %67, %62, %68 : vector<2x8x8xi1>, vector<2x8x8xf32>
    %cst_23 = arith.constant dense<0xFF800000> : vector<2x8xf32>
    %70 = vector.multi_reduction <maximumf>, %69, %cst_23 [2] : vector<2x8x8xf32> to vector<2x8xf32>
    %71 = vector.shape_cast %70 : vector<2x8xf32> to vector<2x8x1xf32>
    %72 = vector.broadcast %71 : vector<2x8x1xf32> to vector<2x8x8xf32>
    %73 = arith.subf %69, %72 : vector<2x8x8xf32>
    %74 = math.exp %73 : vector<2x8x8xf32>
    %cst_24 = arith.constant dense<0.000000e+00> : vector<2x8xf32>
    %75 = vector.multi_reduction <add>, %74, %cst_24 [2] : vector<2x8x8xf32> to vector<2x8xf32>
    %76 = vector.shape_cast %75 : vector<2x8xf32> to vector<2x8x1xf32>
    %77 = arith.truncf %74 : vector<2x8x8xf32> to vector<2x8x8xbf16>
    %cst_25 = arith.constant dense<0.000000e+00> : vector<2x8x128xf32>
    %78 = tpu.matmul %77, %61, %cst_25 {dimension_numbers = #tpu.dot_dimension_numbers<[2], [1], [1], [2], [0, 0, 0, 1, 1, 2], [0], [0]>} : vector<2x8x8xbf16>, vector<2x8x128xbf16>, vector<2x8x128xf32> -> vector<2x8x128xf32>
    %79 = tpu.reciprocal %76 {approx = true} : vector<2x8x1xf32> -> vector<2x8x1xf32>
    %80 = vector.broadcast %79 : vector<2x8x1xf32> to vector<2x8x128xf32>
    %81 = arith.mulf %78, %80 : vector<2x8x128xf32>
    %82 = arith.truncf %81 : vector<2x8x128xf32> to vector<2x8x128xbf16>
    %c0_26 = arith.constant 0 : index
    %c0_27 = arith.constant 0 : index
    %c256 = arith.constant 256 : index
    %83 = vector.load %arg6[%c0_26, %c0_27, %c256] : memref<2x8x512xbf16, #tpu.memory_space<vmem>>, vector<2x8x128xbf16>
    tpu.vector_store %arg6[%c0_26, %c0_27, %c256], %82 {strides = array<i32>} : memref<2x8x512xbf16, #tpu.memory_space<vmem>>, vector<2x8x128xbf16>,
    %84 = vector.extract_strided_slice %6 {offsets = [0, 0, 384], sizes = [2, 8, 128], strides = [1, 1, 1]} : vector<2x8x1536xbf16> to vector<2x8x128xbf16>
    %85 = vector.extract_strided_slice %6 {offsets = [0, 0, 896], sizes = [2, 8, 128], strides = [1, 1, 1]} : vector<2x8x1536xbf16> to vector<2x8x128xbf16>
    %86 = vector.extract_strided_slice %6 {offsets = [0, 0, 1408], sizes = [2, 8, 128], strides = [1, 1, 1]} : vector<2x8x1536xbf16> to vector<2x8x128xbf16>
    %cst_28 = arith.constant dense<0.000000e+00> : vector<2x8x8xf32>
    %87 = tpu.matmul %84, %85, %cst_28 {dimension_numbers = #tpu.dot_dimension_numbers<[2], [2], [1], [1], [0, 0, 0, 1, 1, 1], [0], [0]>} : vector<2x8x128xbf16>, vector<2x8x128xbf16>, vector<2x8x8xf32> -> vector<2x8x8xf32>
    %c0_i32_29 = arith.constant 0 : i32
    %88 = vector.broadcast %c0_i32_29 : i32 to vector<8x8xi32>
    %89 = arith.addi %7, %88 : vector<8x8xi32>
    %90 = arith.cmpi sle, %8, %89 : vector<8x8xi32>
    %cst_30 = arith.constant -1.000000e+30 : f32
    %91 = vector.shape_cast %90 : vector<8x8xi1> to vector<1x8x8xi1>
    %92 = vector.broadcast %91 : vector<1x8x8xi1> to vector<2x8x8xi1>
    %93 = vector.broadcast %cst_30 : f32 to vector<2x8x8xf32>
    %94 = arith.select %92, %87, %93 : vector<2x8x8xi1>, vector<2x8x8xf32>
    %cst_31 = arith.constant dense<0xFF800000> : vector<2x8xf32>
    %95 = vector.multi_reduction <maximumf>, %94, %cst_31 [2] : vector<2x8x8xf32> to vector<2x8xf32>
    %96 = vector.shape_cast %95 : vector<2x8xf32> to vector<2x8x1xf32>
    %97 = vector.broadcast %96 : vector<2x8x1xf32> to vector<2x8x8xf32>
    %98 = arith.subf %94, %97 : vector<2x8x8xf32>
    %99 = math.exp %98 : vector<2x8x8xf32>
    %cst_32 = arith.constant dense<0.000000e+00> : vector<2x8xf32>
    %100 = vector.multi_reduction <add>, %99, %cst_32 [2] : vector<2x8x8xf32> to vector<2x8xf32>
    %101 = vector.shape_cast %100 : vector<2x8xf32> to vector<2x8x1xf32>
    %102 = arith.truncf %99 : vector<2x8x8xf32> to vector<2x8x8xbf16>
    %cst_33 = arith.constant dense<0.000000e+00> : vector<2x8x128xf32>
    %103 = tpu.matmul %102, %86, %cst_33 {dimension_numbers = #tpu.dot_dimension_numbers<[2], [1], [1], [2], [0, 0, 0, 1, 1, 2], [0], [0]>} : vector<2x8x8xbf16>, vector<2x8x128xbf16>, vector<2x8x128xf32> -> vector<2x8x128xf32>
    %104 = tpu.reciprocal %101 {approx = true} : vector<2x8x1xf32> -> vector<2x8x1xf32>
    %105 = vector.broadcast %104 : vector<2x8x1xf32> to vector<2x8x128xf32>
    %106 = arith.mulf %103, %105 : vector<2x8x128xf32>
    %107 = arith.truncf %106 : vector<2x8x128xf32> to vector<2x8x128xbf16>
    %c0_34 = arith.constant 0 : index
    %c0_35 = arith.constant 0 : index
    %c384 = arith.constant 384 : index
    %108 = vector.load %arg6[%c0_34, %c0_35, %c384] : memref<2x8x512xbf16, #tpu.memory_space<vmem>>, vector<2x8x128xbf16>
    tpu.vector_store %arg6[%c0_34, %c0_35, %c384], %107 {strides = array<i32>} : memref<2x8x512xbf16, #tpu.memory_space<vmem>>, vector<2x8x128xbf16>,
    %c0_36 = arith.constant 0 : index
    %c0_37 = arith.constant 0 : index
    %c0_38 = arith.constant 0 : index
    %109 = vector.load %arg6[%c0_36, %c0_37, %c0_38] : memref<2x8x512xbf16, #tpu.memory_space<vmem>>, vector<2x8x512xbf16>
    %110 = vector.shape_cast %109 : vector<2x8x512xbf16> to vector<16x512xbf16>
    %c0_39 = arith.constant 0 : index
    %c0_40 = arith.constant 0 : index
    %111 = vector.load %arg3[%c0_39, %c0_40] : memref<512x512xbf16, #tpu.memory_space<vmem>>, vector<512x512xbf16>
    %cst_41 = arith.constant dense<0.000000e+00> : vector<16x512xf32>
    %112 = tpu.matmul %110, %111, %cst_41 {dimension_numbers = #tpu.dot_dimension_numbers<[1], [0], [0], [1], [0, 0, 1, 1], [], []>} : vector<16x512xbf16>, vector<512x512xbf16>, vector<16x512xf32> -> vector<16x512xf32>
    %c0_42 = arith.constant 0 : index
    %c0_43 = arith.constant 0 : index
    %113 = vector.load %arg4[%c0_42, %c0_43] : memref<1x512xf32, #tpu.memory_space<vmem>>, vector<1x512xf32>
    %114 = vector.shape_cast %113 : vector<1x512xf32> to vector<512xf32>
    %115 = vector.shape_cast %114 : vector<512xf32> to vector<1x512xf32>
    %116 = vector.broadcast %115 : vector<1x512xf32> to vector<16x512xf32>
    %117 = arith.addf %112, %116 : vector<16x512xf32>
    %118 = vector.shape_cast %117 : vector<16x512xf32> to vector<2x8x512xf32>
    %c0_44 = arith.constant 0 : index
    %c0_45 = arith.constant 0 : index
    %c0_46 = arith.constant 0 : index
    %119 = vector.load %arg5[%c0_44, %c0_45, %c0_46] : memref<2x8x512xf32, #tpu.memory_space<vmem>>, vector<2x8x512xf32>
    tpu.vector_store %arg5[%c0_44, %c0_45, %c0_46], %118 {strides = array<i32>} : memref<2x8x512xf32, #tpu.memory_space<vmem>>, vector<2x8x512xf32>,
    return
  }
  func.func @transform_0(%arg0: i32) -> (i32, i32, i32) {
    %c0_i32 = arith.constant 0 : i32
    %c0_i32_0 = arith.constant 0 : i32
    %c0_i32_1 = arith.constant 0 : i32
    return %arg0, %c0_i32, %c0_i32_0 : i32, i32, i32
  }
  func.func @transform_1(%arg0: i32) -> (i32, i32) {
    %c0_i32 = arith.constant 0 : i32
    %c0_i32_0 = arith.constant 0 : i32
    %c0_i32_1 = arith.constant 0 : i32
    return %c0_i32, %c0_i32_0 : i32, i32
  }
  func.func @transform_2(%arg0: i32) -> (i32, i32) {
    %c0_i32 = arith.constant 0 : i32
    %c0_i32_0 = arith.constant 0 : i32
    %c0_i32_1 = arith.constant 0 : i32
    return %c0_i32, %c0_i32_0 : i32, i32
  }
  func.func @transform_3(%arg0: i32) -> (i32, i32) {
    %c0_i32 = arith.constant 0 : i32
    %c0_i32_0 = arith.constant 0 : i32
    %c0_i32_1 = arith.constant 0 : i32
    return %c0_i32, %c0_i32_0 : i32, i32
  }
  func.func @transform_4(%arg0: i32) -> (i32, i32, i32) {
    %c0_i32 = arith.constant 0 : i32
    %c0_i32_0 = arith.constant 0 : i32
    %c0_i32_1 = arith.constant 0 : i32
    return %arg0, %c0_i32, %c0_i32_0 : i32, i32, i32
  }
}

</mosaic_0001>

<llo_original>
// kernel: tpu_custom_call.1
$region0: #{tpu_custom_call.1}
  #allocation0 [shape = 'u32[]', space=smem, size = 0x4, offset = 0x4, fixed_abs, tag = 'smem constant byte address 0x4 - core index']
  #allocation1 [shape = 'u32[144,128]{1,0:T(1,128)}', space=vmem, size = 0x12000, scoped, tag = 'internal scratch']
  #allocation2 [shape = 'bf16[2,8,512]{2,1,0:T(8,128)(2,1)}', space=vmem, size = 0x4000, scoped, tag = 'scratch operand']
  %s0 = inlined_call_operand.hbm [shape: f32[2,8,512], index: 0, kind: input, shape index: {}]
  %s1 = inlined_call_operand.hbm [shape: bf16[512,1536], index: 1, kind: input, shape index: {}]
  %s2 = inlined_call_operand.hbm [shape: bf16[512,512], index: 2, kind: input, shape index: {}]
  %s3 = inlined_call_operand.hbm [shape: f32[1,512], index: 3, kind: input, shape index: {}]
  %s4 = inlined_call_operand.hbm [shape: f32[2,8,512], index: 4, kind: output, shape index: {}]
  %s5 = sld [smem:[#allocation0]]
  $region42: #{tpu_custom_call.1} parent=0
    _
  %s7 = ssub.s32 1, %s5
  %s8 = scalar_select 0, %s7, %s5
  $region1: #{tpu_custom_call.1} parent=0
    #allocation3 [shape = 'u8[32768]{0}', space=vmem, size = 0x8000, scoped, tag = 'input window, operand 0, single buffered']
    #allocation4 [shape = 's32[1]{0}', space=sflag, size = 0x4, scoped, tag = 'scoped memory for tpu_custom_call.1']
    #allocation5 [shape = 's32[1]{0}', space=sflag, size = 0x4, scoped, tag = 'scoped memory for tpu_custom_call.1']
    #allocation6 [shape = 'u8[1572864]{0}', space=vmem, size = 0x180000, scoped, tag = 'input window, operand 1, single buffered']
    #allocation7 [shape = 's32[1]{0}', space=sflag, size = 0x4, scoped, tag = 'scoped memory for tpu_custom_call.1']
    #allocation8 [shape = 'u8[524288]{0}', space=vmem, size = 0x80000, scoped, tag = 'input window, operand 2, single buffered']
    #allocation9 [shape = 'u8[2048]{0}', space=vmem, size = 0x800, scoped, tag = 'input window, operand 3, single buffered']
    #allocation10 [shape = 's32[1]{0}', space=sflag, size = 0x4, scoped, tag = 'scoped memory for tpu_custom_call.1']
    #allocation11 [shape = 'u8[32768]{0}', space=vmem, size = 0x8000, scoped, tag = 'output window, operand 0, single buffered']
    %9 = vsyncpa [#allocation4], 0
    %10 = vsyncpa [#allocation7], 0
    %11 = vsyncpa [#allocation10], 0
    %12 = vsyncpa [#allocation5], 0
    // Predicated region
    $region2: #{tpu_custom_call.1} parent=1 // pred_check
      _
    $region3: #{tpu_custom_call.1} parent=1 // pred_check_branch
      %14 = sbr.rel (0) target = $region5
    $region4: #{tpu_custom_call.1} parent=1 // pred_region
      %s16 = ssub.s32 1024, 1024
      %17 = vsyncadd [#allocation4], %s16
      %s18 = sshll.u32 [#allocation3], 4
      %s19 = int_to_ptr.vmem [resolvable:$true] %s18
      %24 = dma.hbm_to_vmem [thread:$0]  %s0, 1024, %s19, [#allocation4], 512, 512, 32
    $region5: #{tpu_custom_call.1} parent=1 // pred_fallthru
      _
    // Predicated region
    $region6: #{tpu_custom_call.1} parent=1 // pred_check
      _
    $region7: #{tpu_custom_call.1} parent=1 // pred_check_branch
      %26 = sbr.rel (0) target = $region9
    $region8: #{tpu_custom_call.1} parent=1 // pred_region
      %s28 = ssub.s32 49152, 49152
      %29 = vsyncadd [#allocation7], %s28
      %s30 = sshll.u32 [#allocation6], 4
      %s31 = int_to_ptr.vmem [resolvable:$true] %s30
      %36 = dma.hbm_to_vmem [thread:$0]  %s1, 49152, %s31, [#allocation7], 768, 768, 48
    $region9: #{tpu_custom_call.1} parent=1 // pred_fallthru
      _
    // Predicated region
    $region10: #{tpu_custom_call.1} parent=1 // pred_check
      _
    $region11: #{tpu_custom_call.1} parent=1 // pred_check_branch
      %38 = sbr.rel (0) target = $region13
    $region12: #{tpu_custom_call.1} parent=1 // pred_region
      %s40 = ssub.s32 16384, 16384
      %41 = vsyncadd [#allocation7], %s40
      %s42 = sshll.u32 [#allocation8], 4
      %s43 = int_to_ptr.vmem [resolvable:$true] %s42
      %48 = dma.hbm_to_vmem [thread:$0]  %s2, 16384, %s43, [#allocation7], 256, 256, 16
    $region13: #{tpu_custom_call.1} parent=1 // pred_fallthru
      _
    // Predicated region
    $region14: #{tpu_custom_call.1} parent=1 // pred_check
      _
    $region15: #{tpu_custom_call.1} parent=1 // pred_check_branch
      %50 = sbr.rel (0) target = $region17
    $region16: #{tpu_custom_call.1} parent=1 // pred_region
      %s52 = ssub.s32 64, 64
      %53 = vsyncadd [#allocation10], %s52
      %s55 = sshll.u32 [#allocation9], 4
      %s56 = int_to_ptr.vmem [resolvable:$true] %s55
      %58 = dma.hbm_to_vmem [thread:$0]  %s3, 64, %s56, [#allocation10]
    $region17: #{tpu_custom_call.1} parent=1 // pred_fallthru
      _
    // Predicated region
    $region18: #{tpu_custom_call.1} parent=1 // pred_check
      _
    $region19: #{tpu_custom_call.1} parent=1 // pred_check_branch
      %60 = sbr.rel (0) target = $region21
    $region20: #{tpu_custom_call.1} parent=1 // pred_region
      %61 = dma.done [#allocation4], 1024
    $region21: #{tpu_custom_call.1} parent=1 // pred_fallthru
      _
    // Predicated region
    $region22: #{tpu_custom_call.1} parent=1 // pred_check
      _
    $region23: #{tpu_custom_call.1} parent=1 // pred_check_branch
      %63 = sbr.rel (0) target = $region25
    $region24: #{tpu_custom_call.1} parent=1 // pred_region
      %64 = dma.done [#allocation7], 49152
    $region25: #{tpu_custom_call.1} parent=1 // pred_fallthru
      _
    // Predicated region
    $region26: #{tpu_custom_call.1} parent=1 // pred_check
      _
    $region27: #{tpu_custom_call.1} parent=1 // pred_check_branch
      %66 = sbr.rel (0) target = $region29
    $region28: #{tpu_custom_call.1} parent=1 // pred_region
      %67 = dma.done [#allocation7], 16384
    $region29: #{tpu_custom_call.1} parent=1 // pred_fallthru
      _
    // Predicated region
    $region30: #{tpu_custom_call.1} parent=1 // pred_check
      _
    $region31: #{tpu_custom_call.1} parent=1 // pred_check_branch
      %69 = sbr.rel (0) target = $region33
    $region32: #{tpu_custom_call.1} parent=1 // pred_region
      %70 = dma.done [#allocation10], 64
    $region33: #{tpu_custom_call.1} parent=1 // pred_fallthru
      _
    %v72 = vld [vmem:[#allocation3] sm:$0xff]
    %v73 = vld [vmem:[#allocation3 + $0x8] sm:$0xff]
    %v74 = vld [vmem:[#allocation3 + $0x10] sm:$0xff]
    %v75 = vld [vmem:[#allocation3 + $0x18] sm:$0xff]
    %v76 = vld [vmem:[#allocation3 + $0x20] sm:$0xff]
    %v77 = vld [vmem:[#allocation3 + $0x28] sm:$0xff]
    %v78 = vld [vmem:[#allocation3 + $0x30] sm:$0xff]
    %v79 = vld [vmem:[#allocation3 + $0x38] sm:$0xff]
    %v80 = vpack.c.bf16 %v76, %v72
    %v81 = vpack.c.bf16 %v77, %v73
    %v82 = vpack.c.bf16 %v78, %v74
    %v83 = vpack.c.bf16 %v79, %v75
    %v84 = vld [vmem:[#allocation6] sm:$0xff]
    %v85 = vld [vmem:[#allocation6 + $0x8] sm:$0xff]
    %v86 = vld [vmem:[#allocation6 + $0x10] sm:$0xff]
    %v87 = vld [vmem:[#allocation6 + $0x18] sm:$0xff]
    %v88 = vld [vmem:[#allocation6 + $0x20] sm:$0xff]
    %v89 = vld [vmem:[#allocation6 + $0x28] sm:$0xff]
    %v90 = vld [vmem:[#allocation6 + $0x30] sm:$0xff]
    %v91 = vld [vmem:[#allocation6 + $0x38] sm:$0xff]
    %v92 = vld [vmem:[#allocation6 + $0x40] sm:$0xff]
    %v93 = vld [vmem:[#allocation6 + $0x48] sm:$0xff]
    %v94 = vld [vmem:[#allocation6 + $0x50] sm:$0xff]
    %v95 = vld [vmem:[#allocation6 + $0x58] sm:$0xff]
    %v96 = vld [vmem:[#allocation6 + $0x60] sm:$0xff]
    %v97 = vld [vmem:[#allocation6 + $0x68] sm:$0xff]
    %v98 = vld [vmem:[#allocation6 + $0x70] sm:$0xff]
    %v99 = vld [vmem:[#allocation6 + $0x78] sm:$0xff]
    %v100 = vld [vmem:[#allocation6 + $0x80] sm:$0xff]
    %v101 = vld [vmem:[#allocation6 + $0x88] sm:$0xff]
    %v102 = vld [vmem:[#allocation6 + $0x90] sm:$0xff]
    %v103 = vld [vmem:[#allocation6 + $0x98] sm:$0xff]
    %v104 = vld [vmem:[#allocation6 + $0xa0] sm:$0xff]
    %v105 = vld [vmem:[#allocation6 + $0xa8] sm:$0xff]
    %v106 = vld [vmem:[#allocation6 + $0xb0] sm:$0xff]
    %v107 = vld [vmem:[#allocation6 + $0xb8] sm:$0xff]
    %v108 = vld [vmem:[#allocation6 + $0xc0] sm:$0xff]
    %v109 = vld [vmem:[#allocation6 + $0xc8] sm:$0xff]
    %v110 = vld [vmem:[#allocation6 + $0xd0] sm:$0xff]
    %v111 = vld [vmem:[#allocation6 + $0xd8] sm:$0xff]
    %v112 = vld [vmem:[#allocation6 + $0xe0] sm:$0xff]
    %v113 = vld [vmem:[#allocation6 + $0xe8] sm:$0xff]
    %v114 = vld [vmem:[#allocation6 + $0xf0] sm:$0xff]
    %v115 = vld [vmem:[#allocation6 + $0xf8] sm:$0xff]
    %v116 = vld [vmem:[#allocation6 + $0x100] sm:$0xff]
    %v117 = vld [vmem:[#allocation6 + $0x108] sm:$0xff]
    %v118 = vld [vmem:[#allocation6 + $0x110] sm:$0xff]
    %v119 = vld [vmem:[#allocation6 + $0x118] sm:$0xff]
    %v120 = vld [vmem:[#allocation6 + $0x120] sm:$0xff]
    %v121 = vld [vmem:[#allocation6 + $0x128] sm:$0xff]
    %v122 = vld [vmem:[#allocation6 + $0x130] sm:$0xff]
    %v123 = vld [vmem:[#allocation6 + $0x138] sm:$0xff]
    %v124 = vld [vmem:[#allocation6 + $0x140] sm:$0xff]
    %v125 = vld [vmem:[#allocation6 + $0x148] sm:$0xff]
    %v126 = vld [vmem:[#allocation6 + $0x150] sm:$0xff]
    %v127 = vld [vmem:[#allocation6 + $0x158] sm:$0xff]
    %v128 = vld [vmem:[#allocation6 + $0x160] sm:$0xff]
    %v129 = vld [vmem:[#allocation6 + $0x168] sm:$0xff]
    %v130 = vld [vmem:[#allocation6 + $0x170] sm:$0xff]
    %v131 = vld [vmem:[#allocation6 + $0x178] sm:$0xff]
    %v132 = vld [vmem:[#allocation6 + $0x180] sm:$0xff]
    %v133 = vld [vmem:[#allocation6 + $0x188] sm:$0xff]
    %v134 = vld [vmem:[#allocation6 + $0x190] sm:$0xff]
    %v135 = vld [vmem:[#allocation6 + $0x198] sm:$0xff]
    %v136 = vld [vmem:[#allocation6 + $0x1a0] sm:$0xff]
    %v137 = vld [vmem:[#allocation6 + $0x1a8] sm:$0xff]
    %v138 = vld [vmem:[#allocation6 + $0x1b0] sm:$0xff]
    %v139 = vld [vmem:[#allocation6 + $0x1b8] sm:$0xff]
    %v140 = vld [vmem:[#allocation6 + $0x1c0] sm:$0xff]
    %v141 = vld [vmem:[#allocation6 + $0x1c8] sm:$0xff]
    %v142 = vld [vmem:[#allocation6 + $0x1d0] sm:$0xff]
    %v143 = vld [vmem:[#allocation6 + $0x1d8] sm:$0xff]
    %v144 = vld [vmem:[#allocation6 + $0x1e0] sm:$0xff]
    %v145 = vld [vmem:[#allocation6 + $0x1e8] sm:$0xff]
    %v146 = vld [vmem:[#allocation6 + $0x1f0] sm:$0xff]
    %v147 = vld [vmem:[#allocation6 + $0x1f8] sm:$0xff]
    %v148 = vld [vmem:[#allocation6 + $0x200] sm:$0xff]
    %v149 = vld [vmem:[#allocation6 + $0x208] sm:$0xff]
    %v150 = vld [vmem:[#allocation6 + $0x210] sm:$0xff]
    %v151 = vld [vmem:[#allocation6 + $0x218] sm:$0xff]
    %v152 = vld [vmem:[#allocation6 + $0x220] sm:$0xff]
    %v153 = vld [vmem:[#allocation6 + $0x228] sm:$0xff]
    %v154 = vld [vmem:[#allocation6 + $0x230] sm:$0xff]
    %v155 = vld [vmem:[#allocation6 + $0x238] sm:$0xff]
    %v156 = vld [vmem:[#allocation6 + $0x240] sm:$0xff]
    %v157 = vld [vmem:[#allocation6 + $0x248] sm:$0xff]
    %v158 = vld [vmem:[#allocation6 + $0x250] sm:$0xff]
    %v159 = vld [vmem:[#allocation6 + $0x258] sm:$0xff]
    %v160 = vld [vmem:[#allocation6 + $0x260] sm:$0xff]
    %v161 = vld [vmem:[#allocation6 + $0x268] sm:$0xff]
    %v162 = vld [vmem:[#allocation6 + $0x270] sm:$0xff]
    %v163 = vld [vmem:[#allocation6 + $0x278] sm:$0xff]
    %v164 = vld [vmem:[#allocation6 + $0x280] sm:$0xff]
    %v165 = vld [vmem:[#allocation6 + $0x288] sm:$0xff]
    %v166 = vld [vmem:[#allocation6 + $0x290] sm:$0xff]
    %v167 = vld [vmem:[#allocation6 + $0x298] sm:$0xff]
    %v168 = vld [vmem:[#allocation6 + $0x2a0] sm:$0xff]
    %v169 = vld [vmem:[#allocation6 + $0x2a8] sm:$0xff]
    %v170 = vld [vmem:[#allocation6 + $0x2b0] sm:$0xff]
    %v171 = vld [vmem:[#allocation6 + $0x2b8] sm:$0xff]
    %v172 = vld [vmem:[#allocation6 + $0x2c0] sm:$0xff]
    %v173 = vld [vmem:[#allocation6 + $0x2c8] sm:$0xff]
    %v174 = vld [vmem:[#allocation6 + $0x2d0] sm:$0xff]
    %v175 = vld [vmem:[#allocation6 + $0x2d8] sm:$0xff]
    %v176 = vld [vmem:[#allocation6 + $0x2e0] sm:$0xff]
    %v177 = vld [vmem:[#allocation6 + $0x2e8] sm:$0xff]
    %v178 = vld [vmem:[#allocation6 + $0x2f0] sm:$0xff]
    %v179 = vld [vmem:[#allocation6 + $0x2f8] sm:$0xff]
    %v180 = vld [vmem:[#allocation6 + $0x300] sm:$0xff]
    %v181 = vld [vmem:[#allocation6 + $0x308] sm:$0xff]
    %v182 = vld [vmem:[#allocation6 + $0x310] sm:$0xff]
    %v183 = vld [vmem:[#allocation6 + $0x318] sm:$0xff]
    %v184 = vld [vmem:[#allocation6 + $0x320] sm:$0xff]
    %v185 = vld [vmem:[#allocation6 + $0x328] sm:$0xff]
    %v186 = vld [vmem:[#allocation6 + $0x330] sm:$0xff]
    %v187 = vld [vmem:[#allocation6 + $0x338] sm:$0xff]
    %v188 = vld [vmem:[#allocation6 + $0x340] sm:$0xff]
    %v189 = vld [vmem:[#allocation6 + $0x348] sm:$0xff]
    %v190 = vld [vmem:[#allocation6 + $0x350] sm:$0xff]
    %v191 = vld [vmem:[#allocation6 + $0x358] sm:$0xff]
    %v192 = vld [vmem:[#allocation6 + $0x360] sm:$0xff]
    %v193 = vld [vmem:[#allocation6 + $0x368] sm:$0xff]
    %v194 = vld [vmem:[#allocation6 + $0x370] sm:$0xff]
    %v195 = vld [vmem:[#allocation6 + $0x378] sm:$0xff]
    %v196 = vld [vmem:[#allocation6 + $0x380] sm:$0xff]
    %v197 = vld [vmem:[#allocation6 + $0x388] sm:$0xff]
    %v198 = vld [vmem:[#allocation6 + $0x390] sm:$0xff]
    %v199 = vld [vmem:[#allocation6 + $0x398] sm:$0xff]
    %v200 = vld [vmem:[#allocation6 + $0x3a0] sm:$0xff]
    %v201 = vld [vmem:[#allocation6 + $0x3a8] sm:$0xff]
    %v202 = vld [vmem:[#allocation6 + $0x3b0] sm:$0xff]
    %v203 = vld [vmem:[#allocation6 + $0x3b8] sm:$0xff]
    %v204 = vld [vmem:[#allocation6 + $0x3c0] sm:$0xff]
    %v205 = vld [vmem:[#allocation6 + $0x3c8] sm:$0xff]
    %v206 = vld [vmem:[#allocation6 + $0x3d0] sm:$0xff]
    %v207 = vld [vmem:[#allocation6 + $0x3d8] sm:$0xff]
    %v208 = vld [vmem:[#allocation6 + $0x3e0] sm:$0xff]
    %v209 = vld [vmem:[#allocation6 + $0x3e8] sm:$0xff]
    %v210 = vld [vmem:[#allocation6 + $0x3f0] sm:$0xff]
    %v211 = vld [vmem:[#allocation6 + $0x3f8] sm:$0xff]
    %v212 = vld [vmem:[#allocation6 + $0x400] sm:$0xff]
    %v213 = vld [vmem:[#allocation6 + $0x408] sm:$0xff]
    %v214 = vld [vmem:[#allocation6 + $0x410] sm:$0xff]
    %v215 = vld [vmem:[#allocation6 + $0x418] sm:$0xff]
    %v216 = vld [vmem:[#allocation6 + $0x420] sm:$0xff]
    %v217 = vld [vmem:[#allocation6 + $0x428] sm:$0xff]
    %v218 = vld [vmem:[#allocation6 + $0x430] sm:$0xff]
    %v219 = vld [vmem:[#allocation6 + $0x438] sm:$0xff]
    %v220 = vld [vmem:[#allocation6 + $0x440] sm:$0xff]
    %v221 = vld [vmem:[#allocation6 + $0x448] sm:$0xff]
    %v222 = vld [vmem:[#allocation6 + $0x450] sm:$0xff]
    %v223 = vld [vmem:[#allocation6 + $0x458] sm:$0xff]
    %v224 = vld [vmem:[#allocation6 + $0x460] sm:$0xff]
    %v225 = vld [vmem:[#allocation6 + $0x468] sm:$0xff]
    %v226 = vld [vmem:[#allocation6 + $0x470] sm:$0xff]
    %v227 = vld [vmem:[#allocation6 + $0x478] sm:$0xff]
    %v228 = vld [vmem:[#allocation6 + $0x480] sm:$0xff]
    %v229 = vld [vmem:[#allocation6 + $0x488] sm:$0xff]
    %v230 = vld [vmem:[#allocation6 + $0x490] sm:$0xff]
    %v231 = vld [vmem:[#allocation6 + $0x498] sm:$0xff]
    %v232 = vld [vmem:[#allocation6 + $0x4a0] sm:$0xff]
    %v233 = vld [vmem:[#allocation6 + $0x4a8] sm:$0xff]
    %v234 = vld [vmem:[#allocation6 + $0x4b0] sm:$0xff]
    %v235 = vld [vmem:[#allocation6 + $0x4b8] sm:$0xff]
    %v236 = vld [vmem:[#allocation6 + $0x4c0] sm:$0xff]
    %v237 = vld [vmem:[#allocation6 + $0x4c8] sm:$0xff]
    %v238 = vld [vmem:[#allocation6 + $0x4d0] sm:$0xff]
    %v239 = vld [vmem:[#allocation6 + $0x4d8] sm:$0xff]
    %v240 = vld [vmem:[#allocation6 + $0x4e0] sm:$0xff]
    %v241 = vld [vmem:[#allocation6 + $0x4e8] sm:$0xff]
    %v242 = vld [vmem:[#allocation6 + $0x4f0] sm:$0xff]
    %v243 = vld [vmem:[#allocation6 + $0x4f8] sm:$0xff]
    %v244 = vld [vmem:[#allocation6 + $0x500] sm:$0xff]
    %v245 = vld [vmem:[#allocation6 + $0x508] sm:$0xff]
    %v246 = vld [vmem:[#allocation6 + $0x510] sm:$0xff]
    %v247 = vld [vmem:[#allocation6 + $0x518] sm:$0xff]
    %v248 = vld [vmem:[#allocation6 + $0x520] sm:$0xff]
    %v249 = vld [vmem:[#allocation6 + $0x528] sm:$0xff]
    %v250 = vld [vmem:[#allocation6 + $0x530] sm:$0xff]
    %v251 = vld [vmem:[#allocation6 + $0x538] sm:$0xff]
    %v252 = vld [vmem:[#allocation6 + $0x540] sm:$0xff]
    %v253 = vld [vmem:[#allocation6 + $0x548] sm:$0xff]
    %v254 = vld [vmem:[#allocation6 + $0x550] sm:$0xff]
    %v255 = vld [vmem:[#allocation6 + $0x558] sm:$0xff]
    %v256 = vld [vmem:[#allocation6 + $0x560] sm:$0xff]
    %v257 = vld [vmem:[#allocation6 + $0x568] sm:$0xff]
    %v258 = vld [vmem:[#allocation6 + $0x570] sm:$0xff]
    %v259 = vld [vmem:[#allocation6 + $0x578] sm:$0xff]
    %v260 = vld [vmem:[#allocation6 + $0x580] sm:$0xff]
    %v261 = vld [vmem:[#allocation6 + $0x588] sm:$0xff]
    %v262 = vld [vmem:[#allocation6 + $0x590] sm:$0xff]
    %v263 = vld [vmem:[#allocation6 + $0x598] sm:$0xff]
    %v264 = vld [vmem:[#allocation6 + $0x5a0] sm:$0xff]
    %v265 = vld [vmem:[#allocation6 + $0x5a8] sm:$0xff]
    %v266 = vld [vmem:[#allocation6 + $0x5b0] sm:$0xff]
    %v267 = vld [vmem:[#allocation6 + $0x5b8] sm:$0xff]
    %v268 = vld [vmem:[#allocation6 + $0x5c0] sm:$0xff]
    %v269 = vld [vmem:[#allocation6 + $0x5c8] sm:$0xff]
    %v270 = vld [vmem:[#allocation6 + $0x5d0] sm:$0xff]
    %v271 = vld [vmem:[#allocation6 + $0x5d8] sm:$0xff]
    %v272 = vld [vmem:[#allocation6 + $0x5e0] sm:$0xff]
    %v273 = vld [vmem:[#allocation6 + $0x5e8] sm:$0xff]
    %v274 = vld [vmem:[#allocation6 + $0x5f0] sm:$0xff]
    %v275 = vld [vmem:[#allocation6 + $0x5f8] sm:$0xff]
    %v276 = vld [vmem:[#allocation6 + $0x600] sm:$0xff]
    %v277 = vld [vmem:[#allocation6 + $0x608] sm:$0xff]
    %v278 = vld [vmem:[#allocation6 + $0x610] sm:$0xff]
    %v279 = vld [vmem:[#allocation6 + $0x618] sm:$0xff]
    %v280 = vld [vmem:[#allocation6 + $0x620] sm:$0xff]
    %v281 = vld [vmem:[#allocation6 + $0x628] sm:$0xff]
    %v282 = vld [vmem:[#allocation6 + $0x630] sm:$0xff]
    %v283 = vld [vmem:[#allocation6 + $0x638] sm:$0xff]
    %v284 = vld [vmem:[#allocation6 + $0x640] sm:$0xff]
    %v285 = vld [vmem:[#allocation6 + $0x648] sm:$0xff]
    %v286 = vld [vmem:[#allocation6 + $0x650] sm:$0xff]
    %v287 = vld [vmem:[#allocation6 + $0x658] sm:$0xff]
    %v288 = vld [vmem:[#allocation6 + $0x660] sm:$0xff]
    %v289 = vld [vmem:[#allocation6 + $0x668] sm:$0xff]
    %v290 = vld [vmem:[#allocation6 + $0x670] sm:$0xff]
    %v291 = vld [vmem:[#allocation6 + $0x678] sm:$0xff]
    %v292 = vld [vmem:[#allocation6 + $0x680] sm:$0xff]
    %v293 = vld [vmem:[#allocation6 + $0x688] sm:$0xff]
    %v294 = vld [vmem:[#allocation6 + $0x690] sm:$0xff]
    %v295 = vld [vmem:[#allocation6 + $0x698] sm:$0xff]
    %v296 = vld [vmem:[#allocation6 + $0x6a0] sm:$0xff]
    %v297 = vld [vmem:[#allocation6 + $0x6a8] sm:$0xff]
    %v298 = vld [vmem:[#allocation6 + $0x6b0] sm:$0xff]
    %v299 = vld [vmem:[#allocation6 + $0x6b8] sm:$0xff]
    %v300 = vld [vmem:[#allocation6 + $0x6c0] sm:$0xff]
    %v301 = vld [vmem:[#allocation6 + $0x6c8] sm:$0xff]
    %v302 = vld [vmem:[#allocation6 + $0x6d0] sm:$0xff]
    %v303 = vld [vmem:[#allocation6 + $0x6d8] sm:$0xff]
    %v304 = vld [vmem:[#allocation6 + $0x6e0] sm:$0xff]
    %v305 = vld [vmem:[#allocation6 + $0x6e8] sm:$0xff]
    %v306 = vld [vmem:[#allocation6 + $0x6f0] sm:$0xff]
    %v307 = vld [vmem:[#allocation6 + $0x6f8] sm:$0xff]
    %v308 = vld [vmem:[#allocation6 + $0x700] sm:$0xff]
    %v309 = vld [vmem:[#allocation6 + $0x708] sm:$0xff]
    %v310 = vld [vmem:[#allocation6 + $0x710] sm:$0xff]
    %v311 = vld [vmem:[#allocation6 + $0x718] sm:$0xff]
    %v312 = vld [vmem:[#allocation6 + $0x720] sm:$0xff]
    %v313 = vld [vmem:[#allocation6 + $0x728] sm:$0xff]
    %v314 = vld [vmem:[#allocation6 + $0x730] sm:$0xff]
    %v315 = vld [vmem:[#allocation6 + $0x738] sm:$0xff]
    %v316 = vld [vmem:[#allocation6 + $0x740] sm:$0xff]
    %v317 = vld [vmem:[#allocation6 + $0x748] sm:$0xff]
    %v318 = vld [vmem:[#allocation6 + $0x750] sm:$0xff]
    %v319 = vld [vmem:[#allocation6 + $0x758] sm:$0xff]
    %v320 = vld [vmem:[#allocation6 + $0x760] sm:$0xff]
    %v321 = vld [vmem:[#allocation6 + $0x768] sm:$0xff]
    %v322 = vld [vmem:[#allocation6 + $0x770] sm:$0xff]
    %v323 = vld [vmem:[#allocation6 + $0x778] sm:$0xff]
    %v324 = vld [vmem:[#allocation6 + $0x780] sm:$0xff]
    %v325 = vld [vmem:[#allocation6 + $0x788] sm:$0xff]
    %v326 = vld [vmem:[#allocation6 + $0x790] sm:$0xff]
    %v327 = vld [vmem:[#allocation6 + $0x798] sm:$0xff]
    %v328 = vld [vmem:[#allocation6 + $0x7a0] sm:$0xff]
    %v329 = vld [vmem:[#allocation6 + $0x7a8] sm:$0xff]
    %v330 = vld [vmem:[#allocation6 + $0x7b0] sm:$0xff]
    %v331 = vld [vmem:[#allocation6 + $0x7b8] sm:$0xff]
    %v332 = vld [vmem:[#allocation6 + $0x7c0] sm:$0xff]
    %v333 = vld [vmem:[#allocation6 + $0x7c8] sm:$0xff]
    %v334 = vld [vmem:[#allocation6 + $0x7d0] sm:$0xff]
    %v335 = vld [vmem:[#allocation6 + $0x7d8] sm:$0xff]
    %v336 = vld [vmem:[#allocation6 + $0x7e0] sm:$0xff]
    %v337 = vld [vmem:[#allocation6 + $0x7e8] sm:$0xff]
    %v338 = vld [vmem:[#allocation6 + $0x7f0] sm:$0xff]
    %v339 = vld [vmem:[#allocation6 + $0x7f8] sm:$0xff]
    %v340 = vld [vmem:[#allocation6 + $0x800] sm:$0xff]
    %v341 = vld [vmem:[#allocation6 + $0x808] sm:$0xff]
    %v342 = vld [vmem:[#allocation6 + $0x810] sm:$0xff]
    %v343 = vld [vmem:[#allocation6 + $0x818] sm:$0xff]
    %v344 = vld [vmem:[#allocation6 + $0x820] sm:$0xff]
    %v345 = vld [vmem:[#allocation6 + $0x828] sm:$0xff]
    %v346 = vld [vmem:[#allocation6 + $0x830] sm:$0xff]
    %v347 = vld [vmem:[#allocation6 + $0x838] sm:$0xff]
    %v348 = vld [vmem:[#allocation6 + $0x840] sm:$0xff]
    %v349 = vld [vmem:[#allocation6 + $0x848] sm:$0xff]
    %v350 = vld [vmem:[#allocation6 + $0x850] sm:$0xff]
    %v351 = vld [vmem:[#allocation6 + $0x858] sm:$0xff]
    %v352 = vld [vmem:[#allocation6 + $0x860] sm:$0xff]
    %v353 = vld [vmem:[#allocation6 + $0x868] sm:$0xff]
    %v354 = vld [vmem:[#allocation6 + $0x870] sm:$0xff]
    %v355 = vld [vmem:[#allocation6 + $0x878] sm:$0xff]
    %v356 = vld [vmem:[#allocation6 + $0x880] sm:$0xff]
    %v357 = vld [vmem:[#allocation6 + $0x888] sm:$0xff]
    %v358 = vld [vmem:[#allocation6 + $0x890] sm:$0xff]
    %v359 = vld [vmem:[#allocation6 + $0x898] sm:$0xff]
    %v360 = vld [vmem:[#allocation6 + $0x8a0] sm:$0xff]
    %v361 = vld [vmem:[#allocation6 + $0x8a8] sm:$0xff]
    %v362 = vld [vmem:[#allocation6 + $0x8b0] sm:$0xff]
    %v363 = vld [vmem:[#allocation6 + $0x8b8] sm:$0xff]
    %v364 = vld [vmem:[#allocation6 + $0x8c0] sm:$0xff]
    %v365 = vld [vmem:[#allocation6 + $0x8c8] sm:$0xff]
    %v366 = vld [vmem:[#allocation6 + $0x8d0] sm:$0xff]
    %v367 = vld [vmem:[#allocation6 + $0x8d8] sm:$0xff]
    %v368 = vld [vmem:[#allocation6 + $0x8e0] sm:$0xff]
    %v369 = vld [vmem:[#allocation6 + $0x8e8] sm:$0xff]
    %v370 = vld [vmem:[#allocation6 + $0x8f0] sm:$0xff]
    %v371 = vld [vmem:[#allocation6 + $0x8f8] sm:$0xff]
    %v372 = vld [vmem:[#allocation6 + $0x900] sm:$0xff]
    %v373 = vld [vmem:[#allocation6 + $0x908] sm:$0xff]
    %v374 = vld [vmem:[#allocation6 + $0x910] sm:$0xff]
    %v375 = vld [vmem:[#allocation6 + $0x918] sm:$0xff]
    %v376 = vld [vmem:[#allocation6 + $0x920] sm:$0xff]
    %v377 = vld [vmem:[#allocation6 + $0x928] sm:$0xff]
    %v378 = vld [vmem:[#allocation6 + $0x930] sm:$0xff]
    %v379 = vld [vmem:[#allocation6 + $0x938] sm:$0xff]
    %v380 = vld [vmem:[#allocation6 + $0x940] sm:$0xff]
    %v381 = vld [vmem:[#allocation6 + $0x948] sm:$0xff]
    %v382 = vld [vmem:[#allocation6 + $0x950] sm:$0xff]
    %v383 = vld [vmem:[#allocation6 + $0x958] sm:$0xff]
    %v384 = vld [vmem:[#allocation6 + $0x960] sm:$0xff]
    %v385 = vld [vmem:[#allocation6 + $0x968] sm:$0xff]
    %v386 = vld [vmem:[#allocation6 + $0x970] sm:$0xff]
    %v387 = vld [vmem:[#allocation6 + $0x978] sm:$0xff]
    %v388 = vld [vmem:[#allocation6 + $0x980] sm:$0xff]
    %v389 = vld [vmem:[#allocation6 + $0x988] sm:$0xff]
    %v390 = vld [vmem:[#allocation6 + $0x990] sm:$0xff]
    %v391 = vld [vmem:[#allocation6 + $0x998] sm:$0xff]
    %v392 = vld [vmem:[#allocation6 + $0x9a0] sm:$0xff]
    %v393 = vld [vmem:[#allocation6 + $0x9a8] sm:$0xff]
    %v394 = vld [vmem:[#allocation6 + $0x9b0] sm:$0xff]
    %v395 = vld [vmem:[#allocation6 + $0x9b8] sm:$0xff]
    %v396 = vld [vmem:[#allocation6 + $0x9c0] sm:$0xff]
    %v397 = vld [vmem:[#allocation6 + $0x9c8] sm:$0xff]
    %v398 = vld [vmem:[#allocation6 + $0x9d0] sm:$0xff]
    %v399 = vld [vmem:[#allocation6 + $0x9d8] sm:$0xff]
    %v400 = vld [vmem:[#allocation6 + $0x9e0] sm:$0xff]
    %v401 = vld [vmem:[#allocation6 + $0x9e8] sm:$0xff]
    %v402 = vld [vmem:[#allocation6 + $0x9f0] sm:$0xff]
    %v403 = vld [vmem:[#allocation6 + $0x9f8] sm:$0xff]
    %v404 = vld [vmem:[#allocation6 + $0xa00] sm:$0xff]
    %v405 = vld [vmem:[#allocation6 + $0xa08] sm:$0xff]
    %v406 = vld [vmem:[#allocation6 + $0xa10] sm:$0xff]
    %v407 = vld [vmem:[#allocation6 + $0xa18] sm:$0xff]
    %v408 = vld [vmem:[#allocation6 + $0xa20] sm:$0xff]
    %v409 = vld [vmem:[#allocation6 + $0xa28] sm:$0xff]
    %v410 = vld [vmem:[#allocation6 + $0xa30] sm:$0xff]
    %v411 = vld [vmem:[#allocation6 + $0xa38] sm:$0xff]
    %v412 = vld [vmem:[#allocation6 + $0xa40] sm:$0xff]
    %v413 = vld [vmem:[#allocation6 + $0xa48] sm:$0xff]
    %v414 = vld [vmem:[#allocation6 + $0xa50] sm:$0xff]
    %v415 = vld [vmem:[#allocation6 + $0xa58] sm:$0xff]
    %v416 = vld [vmem:[#allocation6 + $0xa60] sm:$0xff]
    %v417 = vld [vmem:[#allocation6 + $0xa68] sm:$0xff]
    %v418 = vld [vmem:[#allocation6 + $0xa70] sm:$0xff]
    %v419 = vld [vmem:[#allocation6 + $0xa78] sm:$0xff]
    %v420 = vld [vmem:[#allocation6 + $0xa80] sm:$0xff]
    %v421 = vld [vmem:[#allocation6 + $0xa88] sm:$0xff]
    %v422 = vld [vmem:[#allocation6 + $0xa90] sm:$0xff]
    %v423 = vld [vmem:[#allocation6 + $0xa98] sm:$0xff]
    %v424 = vld [vmem:[#allocation6 + $0xaa0] sm:$0xff]
    %v425 = vld [vmem:[#allocation6 + $0xaa8] sm:$0xff]
    %v426 = vld [vmem:[#allocation6 + $0xab0] sm:$0xff]
    %v427 = vld [vmem:[#allocation6 + $0xab8] sm:$0xff]
    %v428 = vld [vmem:[#allocation6 + $0xac0] sm:$0xff]
    %v429 = vld [vmem:[#allocation6 + $0xac8] sm:$0xff]
    %v430 = vld [vmem:[#allocation6 + $0xad0] sm:$0xff]
    %v431 = vld [vmem:[#allocation6 + $0xad8] sm:$0xff]
    %v432 = vld [vmem:[#allocation6 + $0xae0] sm:$0xff]
    %v433 = vld [vmem:[#allocation6 + $0xae8] sm:$0xff]
    %v434 = vld [vmem:[#allocation6 + $0xaf0] sm:$0xff]
    %v435 = vld [vmem:[#allocation6 + $0xaf8] sm:$0xff]
    %v436 = vld [vmem:[#allocation6 + $0xb00] sm:$0xff]
    %v437 = vld [vmem:[#allocation6 + $0xb08] sm:$0xff]
    %v438 = vld [vmem:[#allocation6 + $0xb10] sm:$0xff]
    %v439 = vld [vmem:[#allocation6 + $0xb18] sm:$0xff]
    %v440 = vld [vmem:[#allocation6 + $0xb20] sm:$0xff]
    %v441 = vld [vmem:[#allocation6 + $0xb28] sm:$0xff]
    %v442 = vld [vmem:[#allocation6 + $0xb30] sm:$0xff]
    %v443 = vld [vmem:[#allocation6 + $0xb38] sm:$0xff]
    %v444 = vld [vmem:[#allocation6 + $0xb40] sm:$0xff]
    %v445 = vld [vmem:[#allocation6 + $0xb48] sm:$0xff]
    %v446 = vld [vmem:[#allocation6 + $0xb50] sm:$0xff]
    %v447 = vld [vmem:[#allocation6 + $0xb58] sm:$0xff]
    %v448 = vld [vmem:[#allocation6 + $0xb60] sm:$0xff]
    %v449 = vld [vmem:[#allocation6 + $0xb68] sm:$0xff]
    %v450 = vld [vmem:[#allocation6 + $0xb70] sm:$0xff]
    %v451 = vld [vmem:[#allocation6 + $0xb78] sm:$0xff]
    %v452 = vld [vmem:[#allocation6 + $0xb80] sm:$0xff]
    %v453 = vld [vmem:[#allocation6 + $0xb88] sm:$0xff]
    %v454 = vld [vmem:[#allocation6 + $0xb90] sm:$0xff]
    %v455 = vld [vmem:[#allocation6 + $0xb98] sm:$0xff]
    %v456 = vld [vmem:[#allocation6 + $0xba0] sm:$0xff]
    %v457 = vld [vmem:[#allocation6 + $0xba8] sm:$0xff]
    %v458 = vld [vmem:[#allocation6 + $0xbb0] sm:$0xff]
    %v459 = vld [vmem:[#allocation6 + $0xbb8] sm:$0xff]
    %v460 = vld [vmem:[#allocation6 + $0xbc0] sm:$0xff]
    %v461 = vld [vmem:[#allocation6 + $0xbc8] sm:$0xff]
    %v462 = vld [vmem:[#allocation6 + $0xbd0] sm:$0xff]
    %v463 = vld [vmem:[#allocation6 + $0xbd8] sm:$0xff]
    %v464 = vld [vmem:[#allocation6 + $0xbe0] sm:$0xff]
    %v465 = vld [vmem:[#allocation6 + $0xbe8] sm:$0xff]
    %v466 = vld [vmem:[#allocation6 + $0xbf0] sm:$0xff]
    %v467 = vld [vmem:[#allocation6 + $0xbf8] sm:$0xff]
    %v852 = vunpack.c.l.b16 %v84
    %v853 = vunpack.c.h.b16 %v84
    %v854 = vunpack.c.l.b16 %v85
    %v855 = vunpack.c.h.b16 %v85
    %v856 = vunpack.c.l.b16 %v86
    %v857 = vunpack.c.h.b16 %v86
    %v858 = vunpack.c.l.b16 %v87
    %v859 = vunpack.c.h.b16 %v87
    %v860 = vunpack.c.l.b16 %v88
    %v861 = vunpack.c.h.b16 %v88
    %v862 = vunpack.c.l.b16 %v89
    %v863 = vunpack.c.h.b16 %v89
    %v864 = vunpack.c.l.b16 %v90
    %v865 = vunpack.c.h.b16 %v90
    %v866 = vunpack.c.l.b16 %v91
    %v867 = vunpack.c.h.b16 %v91
    %v868 = vunpack.c.l.b16 %v92
    %v869 = vunpack.c.h.b16 %v92
    %v870 = vunpack.c.l.b16 %v93
    %v871 = vunpack.c.h.b16 %v93
    %v872 = vunpack.c.l.b16 %v94
    %v873 = vunpack.c.h.b16 %v94
    %v874 = vunpack.c.l.b16 %v95
    %v875 = vunpack.c.h.b16 %v95
    %v876 = vunpack.c.l.b16 %v96
    %v877 = vunpack.c.h.b16 %v96
    %v878 = vunpack.c.l.b16 %v97
    %v879 = vunpack.c.h.b16 %v97
    %v880 = vunpack.c.l.b16 %v98
    %v881 = vunpack.c.h.b16 %v98
    %v882 = vunpack.c.l.b16 %v99
    %v883 = vunpack.c.h.b16 %v99
    %v884 = vunpack.c.l.b16 %v100
    %v885 = vunpack.c.h.b16 %v100
    %v886 = vunpack.c.l.b16 %v101
    %v887 = vunpack.c.h.b16 %v101
    %v888 = vunpack.c.l.b16 %v102
    %v889 = vunpack.c.h.b16 %v102
    %v890 = vunpack.c.l.b16 %v103
    %v891 = vunpack.c.h.b16 %v103
    %v892 = vunpack.c.l.b16 %v104
    %v893 = vunpack.c.h.b16 %v104
    %v894 = vunpack.c.l.b16 %v105
    %v895 = vunpack.c.h.b16 %v105
    %v896 = vunpack.c.l.b16 %v106
    %v897 = vunpack.c.h.b16 %v106
    %v898 = vunpack.c.l.b16 %v107
    %v899 = vunpack.c.h.b16 %v107
    %v900 = vunpack.c.l.b16 %v108
    %v901 = vunpack.c.h.b16 %v108
    %v902 = vunpack.c.l.b16 %v109
    %v903 = vunpack.c.h.b16 %v109
    %v904 = vunpack.c.l.b16 %v110
    %v905 = vunpack.c.h.b16 %v110
    %v906 = vunpack.c.l.b16 %v111
    %v907 = vunpack.c.h.b16 %v111
    %v908 = vunpack.c.l.b16 %v112
    %v909 = vunpack.c.h.b16 %v112
    %v910 = vunpack.c.l.b16 %v113
    %v911 = vunpack.c.h.b16 %v113
    %v912 = vunpack.c.l.b16 %v114
    %v913 = vunpack.c.h.b16 %v114
    %v914 = vunpack.c.l.b16 %v115
    %v915 = vunpack.c.h.b16 %v115
    %v916 = vunpack.c.l.b16 %v116
    %v917 = vunpack.c.h.b16 %v116
    %v918 = vunpack.c.l.b16 %v117
    %v919 = vunpack.c.h.b16 %v117
    %v920 = vunpack.c.l.b16 %v118
    %v921 = vunpack.c.h.b16 %v118
    %v922 = vunpack.c.l.b16 %v119
    %v923 = vunpack.c.h.b16 %v119
    %v924 = vunpack.c.l.b16 %v120
    %v925 = vunpack.c.h.b16 %v120
    %v926 = vunpack.c.l.b16 %v121
    %v927 = vunpack.c.h.b16 %v121
    %v928 = vunpack.c.l.b16 %v122
    %v929 = vunpack.c.h.b16 %v122
    %v930 = vunpack.c.l.b16 %v123
    %v931 = vunpack.c.h.b16 %v123
    %v932 = vunpack.c.l.b16 %v124
    %v933 = vunpack.c.h.b16 %v124
    %v934 = vunpack.c.l.b16 %v125
    %v935 = vunpack.c.h.b16 %v125
    %v936 = vunpack.c.l.b16 %v126
    %v937 = vunpack.c.h.b16 %v126
    %v938 = vunpack.c.l.b16 %v127
    %v939 = vunpack.c.h.b16 %v127
    %v940 = vunpack.c.l.b16 %v128
    %v941 = vunpack.c.h.b16 %v128
    %v942 = vunpack.c.l.b16 %v129
    %v943 = vunpack.c.h.b16 %v129
    %v944 = vunpack.c.l.b16 %v130
    %v945 = vunpack.c.h.b16 %v130
    %v946 = vunpack.c.l.b16 %v131
    %v947 = vunpack.c.h.b16 %v131
    %v948 = vunpack.c.l.b16 %v132
    %v949 = vunpack.c.h.b16 %v132
    %v950 = vunpack.c.l.b16 %v133
    %v951 = vunpack.c.h.b16 %v133
    %v952 = vunpack.c.l.b16 %v134
    %v953 = vunpack.c.h.b16 %v134
    %v954 = vunpack.c.l.b16 %v135
    %v955 = vunpack.c.h.b16 %v135
    %v956 = vunpack.c.l.b16 %v136
    %v957 = vunpack.c.h.b16 %v136
    %v958 = vunpack.c.l.b16 %v137
    %v959 = vunpack.c.h.b16 %v137
    %v960 = vunpack.c.l.b16 %v138
    %v961 = vunpack.c.h.b16 %v138
    %v962 = vunpack.c.l.b16 %v139
    %v963 = vunpack.c.h.b16 %v139
    %v964 = vunpack.c.l.b16 %v140
    %v965 = vunpack.c.h.b16 %v140
    %v966 = vunpack.c.l.b16 %v141
    %v967 = vunpack.c.h.b16 %v141
    %v968 = vunpack.c.l.b16 %v142
    %v969 = vunpack.c.h.b16 %v142
    %v970 = vunpack.c.l.b16 %v143
    %v971 = vunpack.c.h.b16 %v143
    %v972 = vunpack.c.l.b16 %v144
    %v973 = vunpack.c.h.b16 %v144
    %v974 = vunpack.c.l.b16 %v145
    %v975 = vunpack.c.h.b16 %v145
    %v976 = vunpack.c.l.b16 %v146
    %v977 = vunpack.c.h.b16 %v146
    %v978 = vunpack.c.l.b16 %v147
    %v979 = vunpack.c.h.b16 %v147
    %v980 = vunpack.c.l.b16 %v148
    %v981 = vunpack.c.h.b16 %v148
    %v982 = vunpack.c.l.b16 %v149
    %v983 = vunpack.c.h.b16 %v149
    %v984 = vunpack.c.l.b16 %v150
    %v985 = vunpack.c.h.b16 %v150
    %v986 = vunpack.c.l.b16 %v151
    %v987 = vunpack.c.h.b16 %v151
    %v988 = vunpack.c.l.b16 %v152
    %v989 = vunpack.c.h.b16 %v152
    %v990 = vunpack.c.l.b16 %v153
    %v991 = vunpack.c.h.b16 %v153
    %v992 = vunpack.c.l.b16 %v154
    %v993 = vunpack.c.h.b16 %v154
    %v994 = vunpack.c.l.b16 %v155
    %v995 = vunpack.c.h.b16 %v155
    %v996 = vunpack.c.l.b16 %v156
    %v997 = vunpack.c.h.b16 %v156
    %v998 = vunpack.c.l.b16 %v157
    %v999 = vunpack.c.h.b16 %v157
    %v1000 = vunpack.c.l.b16 %v158
    %v1001 = vunpack.c.h.b16 %v158
    %v1002 = vunpack.c.l.b16 %v159
    %v1003 = vunpack.c.h.b16 %v159
    %v1004 = vunpack.c.l.b16 %v160
    %v1005 = vunpack.c.h.b16 %v160
    %v1006 = vunpack.c.l.b16 %v161
    %v1007 = vunpack.c.h.b16 %v161
    %v1008 = vunpack.c.l.b16 %v162
    %v1009 = vunpack.c.h.b16 %v162
    %v1010 = vunpack.c.l.b16 %v163
    %v1011 = vunpack.c.h.b16 %v163
    %v1012 = vunpack.c.l.b16 %v164
    %v1013 = vunpack.c.h.b16 %v164
    %v1014 = vunpack.c.l.b16 %v165
    %v1015 = vunpack.c.h.b16 %v165
    %v1016 = vunpack.c.l.b16 %v166
    %v1017 = vunpack.c.h.b16 %v166
    %v1018 = vunpack.c.l.b16 %v167
    %v1019 = vunpack.c.h.b16 %v167
    %v1020 = vunpack.c.l.b16 %v168
    %v1021 = vunpack.c.h.b16 %v168
    %v1022 = vunpack.c.l.b16 %v169
    %v1023 = vunpack.c.h.b16 %v169
    %v1024 = vunpack.c.l.b16 %v170
    %v1025 = vunpack.c.h.b16 %v170
    %v1026 = vunpack.c.l.b16 %v171
    %v1027 = vunpack.c.h.b16 %v171
    %v1028 = vunpack.c.l.b16 %v172
    %v1029 = vunpack.c.h.b16 %v172
    %v1030 = vunpack.c.l.b16 %v173
    %v1031 = vunpack.c.h.b16 %v173
    %v1032 = vunpack.c.l.b16 %v174
    %v1033 = vunpack.c.h.b16 %v174
    %v1034 = vunpack.c.l.b16 %v175
    %v1035 = vunpack.c.h.b16 %v175
    %v1036 = vunpack.c.l.b16 %v176
    %v1037 = vunpack.c.h.b16 %v176
    %v1038 = vunpack.c.l.b16 %v177
    %v1039 = vunpack.c.h.b16 %v177
    %v1040 = vunpack.c.l.b16 %v178
    %v1041 = vunpack.c.h.b16 %v178
    %v1042 = vunpack.c.l.b16 %v179
    %v1043 = vunpack.c.h.b16 %v179
    %v1044 = vunpack.c.l.b16 %v180
    %v1045 = vunpack.c.h.b16 %v180
    %v1046 = vunpack.c.l.b16 %v181
    %v1047 = vunpack.c.h.b16 %v181
    %v1048 = vunpack.c.l.b16 %v182
    %v1049 = vunpack.c.h.b16 %v182
    %v1050 = vunpack.c.l.b16 %v183
    %v1051 = vunpack.c.h.b16 %v183
    %v1052 = vunpack.c.l.b16 %v184
    %v1053 = vunpack.c.h.b16 %v184
    %v1054 = vunpack.c.l.b16 %v185
    %v1055 = vunpack.c.h.b16 %v185
    %v1056 = vunpack.c.l.b16 %v186
    %v1057 = vunpack.c.h.b16 %v186
    %v1058 = vunpack.c.l.b16 %v187
    %v1059 = vunpack.c.h.b16 %v187
    %v1060 = vunpack.c.l.b16 %v188
    %v1061 = vunpack.c.h.b16 %v188
    %v1062 = vunpack.c.l.b16 %v189
    %v1063 = vunpack.c.h.b16 %v189
    %v1064 = vunpack.c.l.b16 %v190
    %v1065 = vunpack.c.h.b16 %v190
    %v1066 = vunpack.c.l.b16 %v191
    %v1067 = vunpack.c.h.b16 %v191
    %v1068 = vunpack.c.l.b16 %v192
    %v1069 = vunpack.c.h.b16 %v192
    %v1070 = vunpack.c.l.b16 %v193
    %v1071 = vunpack.c.h.b16 %v193
    %v1072 = vunpack.c.l.b16 %v194
    %v1073 = vunpack.c.h.b16 %v194
    %v1074 = vunpack.c.l.b16 %v195
    %v1075 = vunpack.c.h.b16 %v195
    %v1076 = vunpack.c.l.b16 %v196
    %v1077 = vunpack.c.h.b16 %v196
    %v1078 = vunpack.c.l.b16 %v197
    %v1079 = vunpack.c.h.b16 %v197
    %v1080 = vunpack.c.l.b16 %v198
    %v1081 = vunpack.c.h.b16 %v198
    %v1082 = vunpack.c.l.b16 %v199
    %v1083 = vunpack.c.h.b16 %v199
    %v1084 = vunpack.c.l.b16 %v200
    %v1085 = vunpack.c.h.b16 %v200
    %v1086 = vunpack.c.l.b16 %v201
    %v1087 = vunpack.c.h.b16 %v201
    %v1088 = vunpack.c.l.b16 %v202
    %v1089 = vunpack.c.h.b16 %v202
    %v1090 = vunpack.c.l.b16 %v203
    %v1091 = vunpack.c.h.b16 %v203
    %v1092 = vunpack.c.l.b16 %v204
    %v1093 = vunpack.c.h.b16 %v204
    %v1094 = vunpack.c.l.b16 %v205
    %v1095 = vunpack.c.h.b16 %v205
    %v1096 = vunpack.c.l.b16 %v206
    %v1097 = vunpack.c.h.b16 %v206
    %v1098 = vunpack.c.l.b16 %v207
    %v1099 = vunpack.c.h.b16 %v207
    %v1100 = vunpack.c.l.b16 %v208
    %v1101 = vunpack.c.h.b16 %v208
    %v1102 = vunpack.c.l.b16 %v209
    %v1103 = vunpack.c.h.b16 %v209
    %v1104 = vunpack.c.l.b16 %v210
    %v1105 = vunpack.c.h.b16 %v210
    %v1106 = vunpack.c.l.b16 %v211
    %v1107 = vunpack.c.h.b16 %v211
    %v1108 = vunpack.c.l.b16 %v212
    %v1109 = vunpack.c.h.b16 %v212
    %v1110 = vunpack.c.l.b16 %v213
    %v1111 = vunpack.c.h.b16 %v213
    %v1112 = vunpack.c.l.b16 %v214
    %v1113 = vunpack.c.h.b16 %v214
    %v1114 = vunpack.c.l.b16 %v215
    %v1115 = vunpack.c.h.b16 %v215
    %v1116 = vunpack.c.l.b16 %v216
    %v1117 = vunpack.c.h.b16 %v216
    %v1118 = vunpack.c.l.b16 %v217
    %v1119 = vunpack.c.h.b16 %v217
    %v1120 = vunpack.c.l.b16 %v218
    %v1121 = vunpack.c.h.b16 %v218
    %v1122 = vunpack.c.l.b16 %v219
    %v1123 = vunpack.c.h.b16 %v219
    %v1124 = vunpack.c.l.b16 %v220
    %v1125 = vunpack.c.h.b16 %v220
    %v1126 = vunpack.c.l.b16 %v221
    %v1127 = vunpack.c.h.b16 %v221
    %v1128 = vunpack.c.l.b16 %v222
    %v1129 = vunpack.c.h.b16 %v222
    %v1130 = vunpack.c.l.b16 %v223
    %v1131 = vunpack.c.h.b16 %v223
    %v1132 = vunpack.c.l.b16 %v224
    %v1133 = vunpack.c.h.b16 %v224
    %v1134 = vunpack.c.l.b16 %v225
    %v1135 = vunpack.c.h.b16 %v225
    %v1136 = vunpack.c.l.b16 %v226
    %v1137 = vunpack.c.h.b16 %v226
    %v1138 = vunpack.c.l.b16 %v227
    %v1139 = vunpack.c.h.b16 %v227
    %v1140 = vunpack.c.l.b16 %v228
    %v1141 = vunpack.c.h.b16 %v228
    %v1142 = vunpack.c.l.b16 %v229
    %v1143 = vunpack.c.h.b16 %v229
    %v1144 = vunpack.c.l.b16 %v230
    %v1145 = vunpack.c.h.b16 %v230
    %v1146 = vunpack.c.l.b16 %v231
    %v1147 = vunpack.c.h.b16 %v231
    %v1148 = vunpack.c.l.b16 %v232
    %v1149 = vunpack.c.h.b16 %v232
    %v1150 = vunpack.c.l.b16 %v233
    %v1151 = vunpack.c.h.b16 %v233
    %v1152 = vunpack.c.l.b16 %v234
    %v1153 = vunpack.c.h.b16 %v234
    %v1154 = vunpack.c.l.b16 %v235
    %v1155 = vunpack.c.h.b16 %v235
    %v1156 = vunpack.c.l.b16 %v236
    %v1157 = vunpack.c.h.b16 %v236
    %v1158 = vunpack.c.l.b16 %v237
    %v1159 = vunpack.c.h.b16 %v237
    %v1160 = vunpack.c.l.b16 %v238
    %v1161 = vunpack.c.h.b16 %v238
    %v1162 = vunpack.c.l.b16 %v239
    %v1163 = vunpack.c.h.b16 %v239
    %v1164 = vunpack.c.l.b16 %v240
    %v1165 = vunpack.c.h.b16 %v240
    %v1166 = vunpack.c.l.b16 %v241
    %v1167 = vunpack.c.h.b16 %v241
    %v1168 = vunpack.c.l.b16 %v242
    %v1169 = vunpack.c.h.b16 %v242
    %v1170 = vunpack.c.l.b16 %v243
    %v1171 = vunpack.c.h.b16 %v243
    %v1172 = vunpack.c.l.b16 %v244
    %v1173 = vunpack.c.h.b16 %v244
    %v1174 = vunpack.c.l.b16 %v245
    %v1175 = vunpack.c.h.b16 %v245
    %v1176 = vunpack.c.l.b16 %v246
    %v1177 = vunpack.c.h.b16 %v246
    %v1178 = vunpack.c.l.b16 %v247
    %v1179 = vunpack.c.h.b16 %v247
    %v1180 = vunpack.c.l.b16 %v248
    %v1181 = vunpack.c.h.b16 %v248
    %v1182 = vunpack.c.l.b16 %v249
    %v1183 = vunpack.c.h.b16 %v249
    %v1184 = vunpack.c.l.b16 %v250
    %v1185 = vunpack.c.h.b16 %v250
    %v1186 = vunpack.c.l.b16 %v251
    %v1187 = vunpack.c.h.b16 %v251
    %v1188 = vunpack.c.l.b16 %v252
    %v1189 = vunpack.c.h.b16 %v252
    %v1190 = vunpack.c.l.b16 %v253
    %v1191 = vunpack.c.h.b16 %v253
    %v1192 = vunpack.c.l.b16 %v254
    %v1193 = vunpack.c.h.b16 %v254
    %v1194 = vunpack.c.l.b16 %v255
    %v1195 = vunpack.c.h.b16 %v255
    %v1196 = vunpack.c.l.b16 %v256
    %v1197 = vunpack.c.h.b16 %v256
    %v1198 = vunpack.c.l.b16 %v257
    %v1199 = vunpack.c.h.b16 %v257
    %v1200 = vunpack.c.l.b16 %v258
    %v1201 = vunpack.c.h.b16 %v258
    %v1202 = vunpack.c.l.b16 %v259
    %v1203 = vunpack.c.h.b16 %v259
    %v1204 = vunpack.c.l.b16 %v260
    %v1205 = vunpack.c.h.b16 %v260
    %v1206 = vunpack.c.l.b16 %v261
    %v1207 = vunpack.c.h.b16 %v261
    %v1208 = vunpack.c.l.b16 %v262
    %v1209 = vunpack.c.h.b16 %v262
    %v1210 = vunpack.c.l.b16 %v263
    %v1211 = vunpack.c.h.b16 %v263
    %v1212 = vunpack.c.l.b16 %v264
    %v1213 = vunpack.c.h.b16 %v264
    %v1214 = vunpack.c.l.b16 %v265
    %v1215 = vunpack.c.h.b16 %v265
    %v1216 = vunpack.c.l.b16 %v266
    %v1217 = vunpack.c.h.b16 %v266
    %v1218 = vunpack.c.l.b16 %v267
    %v1219 = vunpack.c.h.b16 %v267
    %v1220 = vunpack.c.l.b16 %v268
    %v1221 = vunpack.c.h.b16 %v268
    %v1222 = vunpack.c.l.b16 %v269
    %v1223 = vunpack.c.h.b16 %v269
    %v1224 = vunpack.c.l.b16 %v270
    %v1225 = vunpack.c.h.b16 %v270
    %v1226 = vunpack.c.l.b16 %v271
    %v1227 = vunpack.c.h.b16 %v271
    %v1228 = vunpack.c.l.b16 %v272
    %v1229 = vunpack.c.h.b16 %v272
    %v1230 = vunpack.c.l.b16 %v273
    %v1231 = vunpack.c.h.b16 %v273
    %v1232 = vunpack.c.l.b16 %v274
    %v1233 = vunpack.c.h.b16 %v274
    %v1234 = vunpack.c.l.b16 %v275
    %v1235 = vunpack.c.h.b16 %v275
    %v1236 = vunpack.c.l.b16 %v276
    %v1237 = vunpack.c.h.b16 %v276
    %v1238 = vunpack.c.l.b16 %v277
    %v1239 = vunpack.c.h.b16 %v277
    %v1240 = vunpack.c.l.b16 %v278
    %v1241 = vunpack.c.h.b16 %v278
    %v1242 = vunpack.c.l.b16 %v279
    %v1243 = vunpack.c.h.b16 %v279
    %v1244 = vunpack.c.l.b16 %v280
    %v1245 = vunpack.c.h.b16 %v280
    %v1246 = vunpack.c.l.b16 %v281
    %v1247 = vunpack.c.h.b16 %v281
    %v1248 = vunpack.c.l.b16 %v282
    %v1249 = vunpack.c.h.b16 %v282
    %v1250 = vunpack.c.l.b16 %v283
    %v1251 = vunpack.c.h.b16 %v283
    %v1252 = vunpack.c.l.b16 %v284
    %v1253 = vunpack.c.h.b16 %v284
    %v1254 = vunpack.c.l.b16 %v285
    %v1255 = vunpack.c.h.b16 %v285
    %v1256 = vunpack.c.l.b16 %v286
    %v1257 = vunpack.c.h.b16 %v286
    %v1258 = vunpack.c.l.b16 %v287
    %v1259 = vunpack.c.h.b16 %v287
    %v1260 = vunpack.c.l.b16 %v288
    %v1261 = vunpack.c.h.b16 %v288
    %v1262 = vunpack.c.l.b16 %v289
    %v1263 = vunpack.c.h.b16 %v289
    %v1264 = vunpack.c.l.b16 %v290
    %v1265 = vunpack.c.h.b16 %v290
    %v1266 = vunpack.c.l.b16 %v291
    %v1267 = vunpack.c.h.b16 %v291
    %v1268 = vunpack.c.l.b16 %v292
    %v1269 = vunpack.c.h.b16 %v292
    %v1270 = vunpack.c.l.b16 %v293
    %v1271 = vunpack.c.h.b16 %v293
    %v1272 = vunpack.c.l.b16 %v294
    %v1273 = vunpack.c.h.b16 %v294
    %v1274 = vunpack.c.l.b16 %v295
    %v1275 = vunpack.c.h.b16 %v295
    %v1276 = vunpack.c.l.b16 %v296
    %v1277 = vunpack.c.h.b16 %v296
    %v1278 = vunpack.c.l.b16 %v297
    %v1279 = vunpack.c.h.b16 %v297
    %v1280 = vunpack.c.l.b16 %v298
    %v1281 = vunpack.c.h.b16 %v298
    %v1282 = vunpack.c.l.b16 %v299
    %v1283 = vunpack.c.h.b16 %v299
    %v1284 = vunpack.c.l.b16 %v300
    %v1285 = vunpack.c.h.b16 %v300
    %v1286 = vunpack.c.l.b16 %v301
    %v1287 = vunpack.c.h.b16 %v301
    %v1288 = vunpack.c.l.b16 %v302
    %v1289 = vunpack.c.h.b16 %v302
    %v1290 = vunpack.c.l.b16 %v303
    %v1291 = vunpack.c.h.b16 %v303
    %v1292 = vunpack.c.l.b16 %v304
    %v1293 = vunpack.c.h.b16 %v304
    %v1294 = vunpack.c.l.b16 %v305
    %v1295 = vunpack.c.h.b16 %v305
    %v1296 = vunpack.c.l.b16 %v306
    %v1297 = vunpack.c.h.b16 %v306
    %v1298 = vunpack.c.l.b16 %v307
    %v1299 = vunpack.c.h.b16 %v307
    %v1300 = vunpack.c.l.b16 %v308
    %v1301 = vunpack.c.h.b16 %v308
    %v1302 = vunpack.c.l.b16 %v309
    %v1303 = vunpack.c.h.b16 %v309
    %v1304 = vunpack.c.l.b16 %v310
    %v1305 = vunpack.c.h.b16 %v310
    %v1306 = vunpack.c.l.b16 %v311
    %v1307 = vunpack.c.h.b16 %v311
    %v1308 = vunpack.c.l.b16 %v312
    %v1309 = vunpack.c.h.b16 %v312
    %v1310 = vunpack.c.l.b16 %v313
    %v1311 = vunpack.c.h.b16 %v313
    %v1312 = vunpack.c.l.b16 %v314
    %v1313 = vunpack.c.h.b16 %v314
    %v1314 = vunpack.c.l.b16 %v315
    %v1315 = vunpack.c.h.b16 %v315
    %v1316 = vunpack.c.l.b16 %v316
    %v1317 = vunpack.c.h.b16 %v316
    %v1318 = vunpack.c.l.b16 %v317
    %v1319 = vunpack.c.h.b16 %v317
    %v1320 = vunpack.c.l.b16 %v318
    %v1321 = vunpack.c.h.b16 %v318
    %v1322 = vunpack.c.l.b16 %v319
    %v1323 = vunpack.c.h.b16 %v319
    %v1324 = vunpack.c.l.b16 %v320
    %v1325 = vunpack.c.h.b16 %v320
    %v1326 = vunpack.c.l.b16 %v321
    %v1327 = vunpack.c.h.b16 %v321
    %v1328 = vunpack.c.l.b16 %v322
    %v1329 = vunpack.c.h.b16 %v322
    %v1330 = vunpack.c.l.b16 %v323
    %v1331 = vunpack.c.h.b16 %v323
    %v1332 = vunpack.c.l.b16 %v324
    %v1333 = vunpack.c.h.b16 %v324
    %v1334 = vunpack.c.l.b16 %v325
    %v1335 = vunpack.c.h.b16 %v325
    %v1336 = vunpack.c.l.b16 %v326
    %v1337 = vunpack.c.h.b16 %v326
    %v1338 = vunpack.c.l.b16 %v327
    %v1339 = vunpack.c.h.b16 %v327
    %v1340 = vunpack.c.l.b16 %v328
    %v1341 = vunpack.c.h.b16 %v328
    %v1342 = vunpack.c.l.b16 %v329
    %v1343 = vunpack.c.h.b16 %v329
    %v1344 = vunpack.c.l.b16 %v330
    %v1345 = vunpack.c.h.b16 %v330
    %v1346 = vunpack.c.l.b16 %v331
    %v1347 = vunpack.c.h.b16 %v331
    %v1348 = vunpack.c.l.b16 %v332
    %v1349 = vunpack.c.h.b16 %v332
    %v1350 = vunpack.c.l.b16 %v333
    %v1351 = vunpack.c.h.b16 %v333
    %v1352 = vunpack.c.l.b16 %v334
    %v1353 = vunpack.c.h.b16 %v334
    %v1354 = vunpack.c.l.b16 %v335
    %v1355 = vunpack.c.h.b16 %v335
    %v1356 = vunpack.c.l.b16 %v336
    %v1357 = vunpack.c.h.b16 %v336
    %v1358 = vunpack.c.l.b16 %v337
    %v1359 = vunpack.c.h.b16 %v337
    %v1360 = vunpack.c.l.b16 %v338
    %v1361 = vunpack.c.h.b16 %v338
    %v1362 = vunpack.c.l.b16 %v339
    %v1363 = vunpack.c.h.b16 %v339
    %v1364 = vunpack.c.l.b16 %v340
    %v1365 = vunpack.c.h.b16 %v340
    %v1366 = vunpack.c.l.b16 %v341
    %v1367 = vunpack.c.h.b16 %v341
    %v1368 = vunpack.c.l.b16 %v342
    %v1369 = vunpack.c.h.b16 %v342
    %v1370 = vunpack.c.l.b16 %v343
    %v1371 = vunpack.c.h.b16 %v343
    %v1372 = vunpack.c.l.b16 %v344
    %v1373 = vunpack.c.h.b16 %v344
    %v1374 = vunpack.c.l.b16 %v345
    %v1375 = vunpack.c.h.b16 %v345
    %v1376 = vunpack.c.l.b16 %v346
    %v1377 = vunpack.c.h.b16 %v346
    %v1378 = vunpack.c.l.b16 %v347
    %v1379 = vunpack.c.h.b16 %v347
    %v1380 = vunpack.c.l.b16 %v348
    %v1381 = vunpack.c.h.b16 %v348
    %v1382 = vunpack.c.l.b16 %v349
    %v1383 = vunpack.c.h.b16 %v349
    %v1384 = vunpack.c.l.b16 %v350
    %v1385 = vunpack.c.h.b16 %v350
    %v1386 = vunpack.c.l.b16 %v351
    %v1387 = vunpack.c.h.b16 %v351
    %v1388 = vunpack.c.l.b16 %v352
    %v1389 = vunpack.c.h.b16 %v352
    %v1390 = vunpack.c.l.b16 %v353
    %v1391 = vunpack.c.h.b16 %v353
    %v1392 = vunpack.c.l.b16 %v354
    %v1393 = vunpack.c.h.b16 %v354
    %v1394 = vunpack.c.l.b16 %v355
    %v1395 = vunpack.c.h.b16 %v355
    %v1396 = vunpack.c.l.b16 %v356
    %v1397 = vunpack.c.h.b16 %v356
    %v1398 = vunpack.c.l.b16 %v357
    %v1399 = vunpack.c.h.b16 %v357
    %v1400 = vunpack.c.l.b16 %v358
    %v1401 = vunpack.c.h.b16 %v358
    %v1402 = vunpack.c.l.b16 %v359
    %v1403 = vunpack.c.h.b16 %v359
    %v1404 = vunpack.c.l.b16 %v360
    %v1405 = vunpack.c.h.b16 %v360
    %v1406 = vunpack.c.l.b16 %v361
    %v1407 = vunpack.c.h.b16 %v361
    %v1408 = vunpack.c.l.b16 %v362
    %v1409 = vunpack.c.h.b16 %v362
    %v1410 = vunpack.c.l.b16 %v363
    %v1411 = vunpack.c.h.b16 %v363
    %v1412 = vunpack.c.l.b16 %v364
    %v1413 = vunpack.c.h.b16 %v364
    %v1414 = vunpack.c.l.b16 %v365
    %v1415 = vunpack.c.h.b16 %v365
    %v1416 = vunpack.c.l.b16 %v366
    %v1417 = vunpack.c.h.b16 %v366
    %v1418 = vunpack.c.l.b16 %v367
    %v1419 = vunpack.c.h.b16 %v367
    %v1420 = vunpack.c.l.b16 %v368
    %v1421 = vunpack.c.h.b16 %v368
    %v1422 = vunpack.c.l.b16 %v369
    %v1423 = vunpack.c.h.b16 %v369
    %v1424 = vunpack.c.l.b16 %v370
    %v1425 = vunpack.c.h.b16 %v370
    %v1426 = vunpack.c.l.b16 %v371
    %v1427 = vunpack.c.h.b16 %v371
    %v1428 = vunpack.c.l.b16 %v372
    %v1429 = vunpack.c.h.b16 %v372
    %v1430 = vunpack.c.l.b16 %v373
    %v1431 = vunpack.c.h.b16 %v373
    %v1432 = vunpack.c.l.b16 %v374
    %v1433 = vunpack.c.h.b16 %v374
    %v1434 = vunpack.c.l.b16 %v375
    %v1435 = vunpack.c.h.b16 %v375
    %v1436 = vunpack.c.l.b16 %v376
    %v1437 = vunpack.c.h.b16 %v376
    %v1438 = vunpack.c.l.b16 %v377
    %v1439 = vunpack.c.h.b16 %v377
    %v1440 = vunpack.c.l.b16 %v378
    %v1441 = vunpack.c.h.b16 %v378
    %v1442 = vunpack.c.l.b16 %v379
    %v1443 = vunpack.c.h.b16 %v379
    %v1444 = vunpack.c.l.b16 %v380
    %v1445 = vunpack.c.h.b16 %v380
    %v1446 = vunpack.c.l.b16 %v381
    %v1447 = vunpack.c.h.b16 %v381
    %v1448 = vunpack.c.l.b16 %v382
    %v1449 = vunpack.c.h.b16 %v382
    %v1450 = vunpack.c.l.b16 %v383
    %v1451 = vunpack.c.h.b16 %v383
    %v1452 = vunpack.c.l.b16 %v384
    %v1453 = vunpack.c.h.b16 %v384
    %v1454 = vunpack.c.l.b16 %v385
    %v1455 = vunpack.c.h.b16 %v385
    %v1456 = vunpack.c.l.b16 %v386
    %v1457 = vunpack.c.h.b16 %v386
    %v1458 = vunpack.c.l.b16 %v387
    %v1459 = vunpack.c.h.b16 %v387
    %v1460 = vunpack.c.l.b16 %v388
    %v1461 = vunpack.c.h.b16 %v388
    %v1462 = vunpack.c.l.b16 %v389
    %v1463 = vunpack.c.h.b16 %v389
    %v1464 = vunpack.c.l.b16 %v390
    %v1465 = vunpack.c.h.b16 %v390
    %v1466 = vunpack.c.l.b16 %v391
    %v1467 = vunpack.c.h.b16 %v391
    %v1468 = vunpack.c.l.b16 %v392
    %v1469 = vunpack.c.h.b16 %v392
    %v1470 = vunpack.c.l.b16 %v393
    %v1471 = vunpack.c.h.b16 %v393
    %v1472 = vunpack.c.l.b16 %v394
    %v1473 = vunpack.c.h.b16 %v394
    %v1474 = vunpack.c.l.b16 %v395
    %v1475 = vunpack.c.h.b16 %v395
    %v1476 = vunpack.c.l.b16 %v396
    %v1477 = vunpack.c.h.b16 %v396
    %v1478 = vunpack.c.l.b16 %v397
    %v1479 = vunpack.c.h.b16 %v397
    %v1480 = vunpack.c.l.b16 %v398
    %v1481 = vunpack.c.h.b16 %v398
    %v1482 = vunpack.c.l.b16 %v399
    %v1483 = vunpack.c.h.b16 %v399
    %v1484 = vunpack.c.l.b16 %v400
    %v1485 = vunpack.c.h.b16 %v400
    %v1486 = vunpack.c.l.b16 %v401
    %v1487 = vunpack.c.h.b16 %v401
    %v1488 = vunpack.c.l.b16 %v402
    %v1489 = vunpack.c.h.b16 %v402
    %v1490 = vunpack.c.l.b16 %v403
    %v1491 = vunpack.c.h.b16 %v403
    %v1492 = vunpack.c.l.b16 %v404
    %v1493 = vunpack.c.h.b16 %v404
    %v1494 = vunpack.c.l.b16 %v405
    %v1495 = vunpack.c.h.b16 %v405
    %v1496 = vunpack.c.l.b16 %v406
    %v1497 = vunpack.c.h.b16 %v406
    %v1498 = vunpack.c.l.b16 %v407
    %v1499 = vunpack.c.h.b16 %v407
    %v1500 = vunpack.c.l.b16 %v408
    %v1501 = vunpack.c.h.b16 %v408
    %v1502 = vunpack.c.l.b16 %v409
    %v1503 = vunpack.c.h.b16 %v409
    %v1504 = vunpack.c.l.b16 %v410
    %v1505 = vunpack.c.h.b16 %v410
    %v1506 = vunpack.c.l.b16 %v411
    %v1507 = vunpack.c.h.b16 %v411
    %v1508 = vunpack.c.l.b16 %v412
    %v1509 = vunpack.c.h.b16 %v412
    %v1510 = vunpack.c.l.b16 %v413
    %v1511 = vunpack.c.h.b16 %v413
    %v1512 = vunpack.c.l.b16 %v414
    %v1513 = vunpack.c.h.b16 %v414
    %v1514 = vunpack.c.l.b16 %v415
    %v1515 = vunpack.c.h.b16 %v415
    %v1516 = vunpack.c.l.b16 %v416
    %v1517 = vunpack.c.h.b16 %v416
    %v1518 = vunpack.c.l.b16 %v417
    %v1519 = vunpack.c.h.b16 %v417
    %v1520 = vunpack.c.l.b16 %v418
    %v1521 = vunpack.c.h.b16 %v418
    %v1522 = vunpack.c.l.b16 %v419
    %v1523 = vunpack.c.h.b16 %v419
    %v1524 = vunpack.c.l.b16 %v420
    %v1525 = vunpack.c.h.b16 %v420
    %v1526 = vunpack.c.l.b16 %v421
    %v1527 = vunpack.c.h.b16 %v421
    %v1528 = vunpack.c.l.b16 %v422
    %v1529 = vunpack.c.h.b16 %v422
    %v1530 = vunpack.c.l.b16 %v423
    %v1531 = vunpack.c.h.b16 %v423
    %v1532 = vunpack.c.l.b16 %v424
    %v1533 = vunpack.c.h.b16 %v424
    %v1534 = vunpack.c.l.b16 %v425
    %v1535 = vunpack.c.h.b16 %v425
    %v1536 = vunpack.c.l.b16 %v426
    %v1537 = vunpack.c.h.b16 %v426
    %v1538 = vunpack.c.l.b16 %v427
    %v1539 = vunpack.c.h.b16 %v427
    %v1540 = vunpack.c.l.b16 %v428
    %v1541 = vunpack.c.h.b16 %v428
    %v1542 = vunpack.c.l.b16 %v429
    %v1543 = vunpack.c.h.b16 %v429
    %v1544 = vunpack.c.l.b16 %v430
    %v1545 = vunpack.c.h.b16 %v430
    %v1546 = vunpack.c.l.b16 %v431
    %v1547 = vunpack.c.h.b16 %v431
    %v1548 = vunpack.c.l.b16 %v432
    %v1549 = vunpack.c.h.b16 %v432
    %v1550 = vunpack.c.l.b16 %v433
    %v1551 = vunpack.c.h.b16 %v433
    %v1552 = vunpack.c.l.b16 %v434
    %v1553 = vunpack.c.h.b16 %v434
    %v1554 = vunpack.c.l.b16 %v435
    %v1555 = vunpack.c.h.b16 %v435
    %v1556 = vunpack.c.l.b16 %v436
    %v1557 = vunpack.c.h.b16 %v436
    %v1558 = vunpack.c.l.b16 %v437
    %v1559 = vunpack.c.h.b16 %v437
    %v1560 = vunpack.c.l.b16 %v438
    %v1561 = vunpack.c.h.b16 %v438
    %v1562 = vunpack.c.l.b16 %v439
    %v1563 = vunpack.c.h.b16 %v439
    %v1564 = vunpack.c.l.b16 %v440
    %v1565 = vunpack.c.h.b16 %v440
    %v1566 = vunpack.c.l.b16 %v441
    %v1567 = vunpack.c.h.b16 %v441
    %v1568 = vunpack.c.l.b16 %v442
    %v1569 = vunpack.c.h.b16 %v442
    %v1570 = vunpack.c.l.b16 %v443
    %v1571 = vunpack.c.h.b16 %v443
    %v1572 = vunpack.c.l.b16 %v444
    %v1573 = vunpack.c.h.b16 %v444
    %v1574 = vunpack.c.l.b16 %v445
    %v1575 = vunpack.c.h.b16 %v445
    %v1576 = vunpack.c.l.b16 %v446
    %v1577 = vunpack.c.h.b16 %v446
    %v1578 = vunpack.c.l.b16 %v447
    %v1579 = vunpack.c.h.b16 %v447
    %v1580 = vunpack.c.l.b16 %v448
    %v1581 = vunpack.c.h.b16 %v448
    %v1582 = vunpack.c.l.b16 %v449
    %v1583 = vunpack.c.h.b16 %v449
    %v1584 = vunpack.c.l.b16 %v450
    %v1585 = vunpack.c.h.b16 %v450
    %v1586 = vunpack.c.l.b16 %v451
    %v1587 = vunpack.c.h.b16 %v451
    %v1588 = vunpack.c.l.b16 %v452
    %v1589 = vunpack.c.h.b16 %v452
    %v1590 = vunpack.c.l.b16 %v453
    %v1591 = vunpack.c.h.b16 %v453
    %v1592 = vunpack.c.l.b16 %v454
    %v1593 = vunpack.c.h.b16 %v454
    %v1594 = vunpack.c.l.b16 %v455
    %v1595 = vunpack.c.h.b16 %v455
    %v1596 = vunpack.c.l.b16 %v456
    %v1597 = vunpack.c.h.b16 %v456
    %v1598 = vunpack.c.l.b16 %v457
    %v1599 = vunpack.c.h.b16 %v457
    %v1600 = vunpack.c.l.b16 %v458
    %v1601 = vunpack.c.h.b16 %v458
    %v1602 = vunpack.c.l.b16 %v459
    %v1603 = vunpack.c.h.b16 %v459
    %v1604 = vunpack.c.l.b16 %v460
    %v1605 = vunpack.c.h.b16 %v460
    %v1606 = vunpack.c.l.b16 %v461
    %v1607 = vunpack.c.h.b16 %v461
    %v1608 = vunpack.c.l.b16 %v462
    %v1609 = vunpack.c.h.b16 %v462
    %v1610 = vunpack.c.l.b16 %v463
    %v1611 = vunpack.c.h.b16 %v463
    %v1612 = vunpack.c.l.b16 %v464
    %v1613 = vunpack.c.h.b16 %v464
    %v1614 = vunpack.c.l.b16 %v465
    %v1615 = vunpack.c.h.b16 %v465
    %v1616 = vunpack.c.l.b16 %v466
    %v1617 = vunpack.c.h.b16 %v466
    %v1618 = vunpack.c.l.b16 %v467
    %v1619 = vunpack.c.h.b16 %v467
    %v1620 = vpack.c.b16 %v864, %v852
    %v1621 = vpack.c.b16 %v865, %v853
    %v1622 = vpack.c.b16 %v866, %v854
    %v1623 = vpack.c.b16 %v867, %v855
    %v1624 = vpack.c.b16 %v868, %v856
    %v1625 = vpack.c.b16 %v869, %v857
    %v1626 = vpack.c.b16 %v870, %v858
    %v1627 = vpack.c.b16 %v871, %v859
    %v1628 = vpack.c.b16 %v872, %v860
    %v1629 = vpack.c.b16 %v873, %v861
    %v1630 = vpack.c.b16 %v874, %v862
    %v1631 = vpack.c.b16 %v875, %v863
    %v1632 = vpack.c.b16 %v888, %v876
    %v1633 = vpack.c.b16 %v889, %v877
    %v1634 = vpack.c.b16 %v890, %v878
    %v1635 = vpack.c.b16 %v891, %v879
    %v1636 = vpack.c.b16 %v892, %v880
    %v1637 = vpack.c.b16 %v893, %v881
    %v1638 = vpack.c.b16 %v894, %v882
    %v1639 = vpack.c.b16 %v895, %v883
    %v1640 = vpack.c.b16 %v896, %v884
    %v1641 = vpack.c.b16 %v897, %v885
    %v1642 = vpack.c.b16 %v898, %v886
    %v1643 = vpack.c.b16 %v899, %v887
    %v1644 = vpack.c.b16 %v912, %v900
    %v1645 = vpack.c.b16 %v913, %v901
    %v1646 = vpack.c.b16 %v914, %v902
    %v1647 = vpack.c.b16 %v915, %v903
    %v1648 = vpack.c.b16 %v916, %v904
    %v1649 = vpack.c.b16 %v917, %v905
    %v1650 = vpack.c.b16 %v918, %v906
    %v1651 = vpack.c.b16 %v919, %v907
    %v1652 = vpack.c.b16 %v920, %v908
    %v1653 = vpack.c.b16 %v921, %v909
    %v1654 = vpack.c.b16 %v922, %v910
    %v1655 = vpack.c.b16 %v923, %v911
    %v1656 = vpack.c.b16 %v936, %v924
    %v1657 = vpack.c.b16 %v937, %v925
    %v1658 = vpack.c.b16 %v938, %v926
    %v1659 = vpack.c.b16 %v939, %v927
    %v1660 = vpack.c.b16 %v940, %v928
    %v1661 = vpack.c.b16 %v941, %v929
    %v1662 = vpack.c.b16 %v942, %v930
    %v1663 = vpack.c.b16 %v943, %v931
    %v1664 = vpack.c.b16 %v944, %v932
    %v1665 = vpack.c.b16 %v945, %v933
    %v1666 = vpack.c.b16 %v946, %v934
    %v1667 = vpack.c.b16 %v947, %v935
    %v1668 = vpack.c.b16 %v960, %v948
    %v1669 = vpack.c.b16 %v961, %v949
    %v1670 = vpack.c.b16 %v962, %v950
    %v1671 = vpack.c.b16 %v963, %v951
    %v1672 = vpack.c.b16 %v964, %v952
    %v1673 = vpack.c.b16 %v965, %v953
    %v1674 = vpack.c.b16 %v966, %v954
    %v1675 = vpack.c.b16 %v967, %v955
    %v1676 = vpack.c.b16 %v968, %v956
    %v1677 = vpack.c.b16 %v969, %v957
    %v1678 = vpack.c.b16 %v970, %v958
    %v1679 = vpack.c.b16 %v971, %v959
    %v1680 = vpack.c.b16 %v984, %v972
    %v1681 = vpack.c.b16 %v985, %v973
    %v1682 = vpack.c.b16 %v986, %v974
    %v1683 = vpack.c.b16 %v987, %v975
    %v1684 = vpack.c.b16 %v988, %v976
    %v1685 = vpack.c.b16 %v989, %v977
    %v1686 = vpack.c.b16 %v990, %v978
    %v1687 = vpack.c.b16 %v991, %v979
    %v1688 = vpack.c.b16 %v992, %v980
    %v1689 = vpack.c.b16 %v993, %v981
    %v1690 = vpack.c.b16 %v994, %v982
    %v1691 = vpack.c.b16 %v995, %v983
    %v1692 = vpack.c.b16 %v1008, %v996
    %v1693 = vpack.c.b16 %v1009, %v997
    %v1694 = vpack.c.b16 %v1010, %v998
    %v1695 = vpack.c.b16 %v1011, %v999
    %v1696 = vpack.c.b16 %v1012, %v1000
    %v1697 = vpack.c.b16 %v1013, %v1001
    %v1698 = vpack.c.b16 %v1014, %v1002
    %v1699 = vpack.c.b16 %v1015, %v1003
    %v1700 = vpack.c.b16 %v1016, %v1004
    %v1701 = vpack.c.b16 %v1017, %v1005
    %v1702 = vpack.c.b16 %v1018, %v1006
    %v1703 = vpack.c.b16 %v1019, %v1007
    %v1704 = vpack.c.b16 %v1032, %v1020
    %v1705 = vpack.c.b16 %v1033, %v1021
    %v1706 = vpack.c.b16 %v1034, %v1022
    %v1707 = vpack.c.b16 %v1035, %v1023
    %v1708 = vpack.c.b16 %v1036, %v1024
    %v1709 = vpack.c.b16 %v1037, %v1025
    %v1710 = vpack.c.b16 %v1038, %v1026
    %v1711 = vpack.c.b16 %v1039, %v1027
    %v1712 = vpack.c.b16 %v1040, %v1028
    %v1713 = vpack.c.b16 %v1041, %v1029
    %v1714 = vpack.c.b16 %v1042, %v1030
    %v1715 = vpack.c.b16 %v1043, %v1031
    %v1716 = vpack.c.b16 %v1056, %v1044
    %v1717 = vpack.c.b16 %v1057, %v1045
    %v1718 = vpack.c.b16 %v1058, %v1046
    %v1719 = vpack.c.b16 %v1059, %v1047
    %v1720 = vpack.c.b16 %v1060, %v1048
    %v1721 = vpack.c.b16 %v1061, %v1049
    %v1722 = vpack.c.b16 %v1062, %v1050
    %v1723 = vpack.c.b16 %v1063, %v1051
    %v1724 = vpack.c.b16 %v1064, %v1052
    %v1725 = vpack.c.b16 %v1065, %v1053
    %v1726 = vpack.c.b16 %v1066, %v1054
    %v1727 = vpack.c.b16 %v1067, %v1055
    %v1728 = vpack.c.b16 %v1080, %v1068
    %v1729 = vpack.c.b16 %v1081, %v1069
    %v1730 = vpack.c.b16 %v1082, %v1070
    %v1731 = vpack.c.b16 %v1083, %v1071
    %v1732 = vpack.c.b16 %v1084, %v1072
    %v1733 = vpack.c.b16 %v1085, %v1073
    %v1734 = vpack.c.b16 %v1086, %v1074
    %v1735 = vpack.c.b16 %v1087, %v1075
    %v1736 = vpack.c.b16 %v1088, %v1076
    %v1737 = vpack.c.b16 %v1089, %v1077
    %v1738 = vpack.c.b16 %v1090, %v1078
    %v1739 = vpack.c.b16 %v1091, %v1079
    %v1740 = vpack.c.b16 %v1104, %v1092
    %v1741 = vpack.c.b16 %v1105, %v1093
    %v1742 = vpack.c.b16 %v1106, %v1094
    %v1743 = vpack.c.b16 %v1107, %v1095
    %v1744 = vpack.c.b16 %v1108, %v1096
    %v1745 = vpack.c.b16 %v1109, %v1097
    %v1746 = vpack.c.b16 %v1110, %v1098
    %v1747 = vpack.c.b16 %v1111, %v1099
    %v1748 = vpack.c.b16 %v1112, %v1100
    %v1749 = vpack.c.b16 %v1113, %v1101
    %v1750 = vpack.c.b16 %v1114, %v1102
    %v1751 = vpack.c.b16 %v1115, %v1103
    %v1752 = vpack.c.b16 %v1128, %v1116
    %v1753 = vpack.c.b16 %v1129, %v1117
    %v1754 = vpack.c.b16 %v1130, %v1118
    %v1755 = vpack.c.b16 %v1131, %v1119
    %v1756 = vpack.c.b16 %v1132, %v1120
    %v1757 = vpack.c.b16 %v1133, %v1121
    %v1758 = vpack.c.b16 %v1134, %v1122
    %v1759 = vpack.c.b16 %v1135, %v1123
    %v1760 = vpack.c.b16 %v1136, %v1124
    %v1761 = vpack.c.b16 %v1137, %v1125
    %v1762 = vpack.c.b16 %v1138, %v1126
    %v1763 = vpack.c.b16 %v1139, %v1127
    %v1764 = vpack.c.b16 %v1152, %v1140
    %v1765 = vpack.c.b16 %v1153, %v1141
    %v1766 = vpack.c.b16 %v1154, %v1142
    %v1767 = vpack.c.b16 %v1155, %v1143
    %v1768 = vpack.c.b16 %v1156, %v1144
    %v1769 = vpack.c.b16 %v1157, %v1145
    %v1770 = vpack.c.b16 %v1158, %v1146
    %v1771 = vpack.c.b16 %v1159, %v1147
    %v1772 = vpack.c.b16 %v1160, %v1148
    %v1773 = vpack.c.b16 %v1161, %v1149
    %v1774 = vpack.c.b16 %v1162, %v1150
    %v1775 = vpack.c.b16 %v1163, %v1151
    %v1776 = vpack.c.b16 %v1176, %v1164
    %v1777 = vpack.c.b16 %v1177, %v1165
    %v1778 = vpack.c.b16 %v1178, %v1166
    %v1779 = vpack.c.b16 %v1179, %v1167
    %v1780 = vpack.c.b16 %v1180, %v1168
    %v1781 = vpack.c.b16 %v1181, %v1169
    %v1782 = vpack.c.b16 %v1182, %v1170
    %v1783 = vpack.c.b16 %v1183, %v1171
    %v1784 = vpack.c.b16 %v1184, %v1172
    %v1785 = vpack.c.b16 %v1185, %v1173
    %v1786 = vpack.c.b16 %v1186, %v1174
    %v1787 = vpack.c.b16 %v1187, %v1175
    %v1788 = vpack.c.b16 %v1200, %v1188
    %v1789 = vpack.c.b16 %v1201, %v1189
    %v1790 = vpack.c.b16 %v1202, %v1190
    %v1791 = vpack.c.b16 %v1203, %v1191
    %v1792 = vpack.c.b16 %v1204, %v1192
    %v1793 = vpack.c.b16 %v1205, %v1193
    %v1794 = vpack.c.b16 %v1206, %v1194
    %v1795 = vpack.c.b16 %v1207, %v1195
    %v1796 = vpack.c.b16 %v1208, %v1196
    %v1797 = vpack.c.b16 %v1209, %v1197
    %v1798 = vpack.c.b16 %v1210, %v1198
    %v1799 = vpack.c.b16 %v1211, %v1199
    %v1800 = vpack.c.b16 %v1224, %v1212
    %v1801 = vpack.c.b16 %v1225, %v1213
    %v1802 = vpack.c.b16 %v1226, %v1214
    %v1803 = vpack.c.b16 %v1227, %v1215
    %v1804 = vpack.c.b16 %v1228, %v1216
    %v1805 = vpack.c.b16 %v1229, %v1217
    %v1806 = vpack.c.b16 %v1230, %v1218
    %v1807 = vpack.c.b16 %v1231, %v1219
    %v1808 = vpack.c.b16 %v1232, %v1220
    %v1809 = vpack.c.b16 %v1233, %v1221
    %v1810 = vpack.c.b16 %v1234, %v1222
    %v1811 = vpack.c.b16 %v1235, %v1223
    %v1812 = vpack.c.b16 %v1248, %v1236
    %v1813 = vpack.c.b16 %v1249, %v1237
    %v1814 = vpack.c.b16 %v1250, %v1238
    %v1815 = vpack.c.b16 %v1251, %v1239
    %v1816 = vpack.c.b16 %v1252, %v1240
    %v1817 = vpack.c.b16 %v1253, %v1241
    %v1818 = vpack.c.b16 %v1254, %v1242
    %v1819 = vpack.c.b16 %v1255, %v1243
    %v1820 = vpack.c.b16 %v1256, %v1244
    %v1821 = vpack.c.b16 %v1257, %v1245
    %v1822 = vpack.c.b16 %v1258, %v1246
    %v1823 = vpack.c.b16 %v1259, %v1247
    %v1824 = vpack.c.b16 %v1272, %v1260
    %v1825 = vpack.c.b16 %v1273, %v1261
    %v1826 = vpack.c.b16 %v1274, %v1262
    %v1827 = vpack.c.b16 %v1275, %v1263
    %v1828 = vpack.c.b16 %v1276, %v1264
    %v1829 = vpack.c.b16 %v1277, %v1265
    %v1830 = vpack.c.b16 %v1278, %v1266
    %v1831 = vpack.c.b16 %v1279, %v1267
    %v1832 = vpack.c.b16 %v1280, %v1268
    %v1833 = vpack.c.b16 %v1281, %v1269
    %v1834 = vpack.c.b16 %v1282, %v1270
    %v1835 = vpack.c.b16 %v1283, %v1271
    %v1836 = vpack.c.b16 %v1296, %v1284
    %v1837 = vpack.c.b16 %v1297, %v1285
    %v1838 = vpack.c.b16 %v1298, %v1286
    %v1839 = vpack.c.b16 %v1299, %v1287
    %v1840 = vpack.c.b16 %v1300, %v1288
    %v1841 = vpack.c.b16 %v1301, %v1289
    %v1842 = vpack.c.b16 %v1302, %v1290
    %v1843 = vpack.c.b16 %v1303, %v1291
    %v1844 = vpack.c.b16 %v1304, %v1292
    %v1845 = vpack.c.b16 %v1305, %v1293
    %v1846 = vpack.c.b16 %v1306, %v1294
    %v1847 = vpack.c.b16 %v1307, %v1295
    %v1848 = vpack.c.b16 %v1320, %v1308
    %v1849 = vpack.c.b16 %v1321, %v1309
    %v1850 = vpack.c.b16 %v1322, %v1310
    %v1851 = vpack.c.b16 %v1323, %v1311
    %v1852 = vpack.c.b16 %v1324, %v1312
    %v1853 = vpack.c.b16 %v1325, %v1313
    %v1854 = vpack.c.b16 %v1326, %v1314
    %v1855 = vpack.c.b16 %v1327, %v1315
    %v1856 = vpack.c.b16 %v1328, %v1316
    %v1857 = vpack.c.b16 %v1329, %v1317
    %v1858 = vpack.c.b16 %v1330, %v1318
    %v1859 = vpack.c.b16 %v1331, %v1319
    %v1860 = vpack.c.b16 %v1344, %v1332
    %v1861 = vpack.c.b16 %v1345, %v1333
    %v1862 = vpack.c.b16 %v1346, %v1334
    %v1863 = vpack.c.b16 %v1347, %v1335
    %v1864 = vpack.c.b16 %v1348, %v1336
    %v1865 = vpack.c.b16 %v1349, %v1337
    %v1866 = vpack.c.b16 %v1350, %v1338
    %v1867 = vpack.c.b16 %v1351, %v1339
    %v1868 = vpack.c.b16 %v1352, %v1340
    %v1869 = vpack.c.b16 %v1353, %v1341
    %v1870 = vpack.c.b16 %v1354, %v1342
    %v1871 = vpack.c.b16 %v1355, %v1343
    %v1872 = vpack.c.b16 %v1368, %v1356
    %v1873 = vpack.c.b16 %v1369, %v1357
    %v1874 = vpack.c.b16 %v1370, %v1358
    %v1875 = vpack.c.b16 %v1371, %v1359
    %v1876 = vpack.c.b16 %v1372, %v1360
    %v1877 = vpack.c.b16 %v1373, %v1361
    %v1878 = vpack.c.b16 %v1374, %v1362
    %v1879 = vpack.c.b16 %v1375, %v1363
    %v1880 = vpack.c.b16 %v1376, %v1364
    %v1881 = vpack.c.b16 %v1377, %v1365
    %v1882 = vpack.c.b16 %v1378, %v1366
    %v1883 = vpack.c.b16 %v1379, %v1367
    %v1884 = vpack.c.b16 %v1392, %v1380
    %v1885 = vpack.c.b16 %v1393, %v1381
    %v1886 = vpack.c.b16 %v1394, %v1382
    %v1887 = vpack.c.b16 %v1395, %v1383
    %v1888 = vpack.c.b16 %v1396, %v1384
    %v1889 = vpack.c.b16 %v1397, %v1385
    %v1890 = vpack.c.b16 %v1398, %v1386
    %v1891 = vpack.c.b16 %v1399, %v1387
    %v1892 = vpack.c.b16 %v1400, %v1388
    %v1893 = vpack.c.b16 %v1401, %v1389
    %v1894 = vpack.c.b16 %v1402, %v1390
    %v1895 = vpack.c.b16 %v1403, %v1391
    %v1896 = vpack.c.b16 %v1416, %v1404
    %v1897 = vpack.c.b16 %v1417, %v1405
    %v1898 = vpack.c.b16 %v1418, %v1406
    %v1899 = vpack.c.b16 %v1419, %v1407
    %v1900 = vpack.c.b16 %v1420, %v1408
    %v1901 = vpack.c.b16 %v1421, %v1409
    %v1902 = vpack.c.b16 %v1422, %v1410
    %v1903 = vpack.c.b16 %v1423, %v1411
    %v1904 = vpack.c.b16 %v1424, %v1412
    %v1905 = vpack.c.b16 %v1425, %v1413
    %v1906 = vpack.c.b16 %v1426, %v1414
    %v1907 = vpack.c.b16 %v1427, %v1415
    %v1908 = vpack.c.b16 %v1440, %v1428
    %v1909 = vpack.c.b16 %v1441, %v1429
    %v1910 = vpack.c.b16 %v1442, %v1430
    %v1911 = vpack.c.b16 %v1443, %v1431
    %v1912 = vpack.c.b16 %v1444, %v1432
    %v1913 = vpack.c.b16 %v1445, %v1433
    %v1914 = vpack.c.b16 %v1446, %v1434
    %v1915 = vpack.c.b16 %v1447, %v1435
    %v1916 = vpack.c.b16 %v1448, %v1436
    %v1917 = vpack.c.b16 %v1449, %v1437
    %v1918 = vpack.c.b16 %v1450, %v1438
    %v1919 = vpack.c.b16 %v1451, %v1439
    %v1920 = vpack.c.b16 %v1464, %v1452
    %v1921 = vpack.c.b16 %v1465, %v1453
    %v1922 = vpack.c.b16 %v1466, %v1454
    %v1923 = vpack.c.b16 %v1467, %v1455
    %v1924 = vpack.c.b16 %v1468, %v1456
    %v1925 = vpack.c.b16 %v1469, %v1457
    %v1926 = vpack.c.b16 %v1470, %v1458
    %v1927 = vpack.c.b16 %v1471, %v1459
    %v1928 = vpack.c.b16 %v1472, %v1460
    %v1929 = vpack.c.b16 %v1473, %v1461
    %v1930 = vpack.c.b16 %v1474, %v1462
    %v1931 = vpack.c.b16 %v1475, %v1463
    %v1932 = vpack.c.b16 %v1488, %v1476
    %v1933 = vpack.c.b16 %v1489, %v1477
    %v1934 = vpack.c.b16 %v1490, %v1478
    %v1935 = vpack.c.b16 %v1491, %v1479
    %v1936 = vpack.c.b16 %v1492, %v1480
    %v1937 = vpack.c.b16 %v1493, %v1481
    %v1938 = vpack.c.b16 %v1494, %v1482
    %v1939 = vpack.c.b16 %v1495, %v1483
    %v1940 = vpack.c.b16 %v1496, %v1484
    %v1941 = vpack.c.b16 %v1497, %v1485
    %v1942 = vpack.c.b16 %v1498, %v1486
    %v1943 = vpack.c.b16 %v1499, %v1487
    %v1944 = vpack.c.b16 %v1512, %v1500
    %v1945 = vpack.c.b16 %v1513, %v1501
    %v1946 = vpack.c.b16 %v1514, %v1502
    %v1947 = vpack.c.b16 %v1515, %v1503
    %v1948 = vpack.c.b16 %v1516, %v1504
    %v1949 = vpack.c.b16 %v1517, %v1505
    %v1950 = vpack.c.b16 %v1518, %v1506
    %v1951 = vpack.c.b16 %v1519, %v1507
    %v1952 = vpack.c.b16 %v1520, %v1508
    %v1953 = vpack.c.b16 %v1521, %v1509
    %v1954 = vpack.c.b16 %v1522, %v1510
    %v1955 = vpack.c.b16 %v1523, %v1511
    %v1956 = vpack.c.b16 %v1536, %v1524
    %v1957 = vpack.c.b16 %v1537, %v1525
    %v1958 = vpack.c.b16 %v1538, %v1526
    %v1959 = vpack.c.b16 %v1539, %v1527
    %v1960 = vpack.c.b16 %v1540, %v1528
    %v1961 = vpack.c.b16 %v1541, %v1529
    %v1962 = vpack.c.b16 %v1542, %v1530
    %v1963 = vpack.c.b16 %v1543, %v1531
    %v1964 = vpack.c.b16 %v1544, %v1532
    %v1965 = vpack.c.b16 %v1545, %v1533
    %v1966 = vpack.c.b16 %v1546, %v1534
    %v1967 = vpack.c.b16 %v1547, %v1535
    %v1968 = vpack.c.b16 %v1560, %v1548
    %v1969 = vpack.c.b16 %v1561, %v1549
    %v1970 = vpack.c.b16 %v1562, %v1550
    %v1971 = vpack.c.b16 %v1563, %v1551
    %v1972 = vpack.c.b16 %v1564, %v1552
    %v1973 = vpack.c.b16 %v1565, %v1553
    %v1974 = vpack.c.b16 %v1566, %v1554
    %v1975 = vpack.c.b16 %v1567, %v1555
    %v1976 = vpack.c.b16 %v1568, %v1556
    %v1977 = vpack.c.b16 %v1569, %v1557
    %v1978 = vpack.c.b16 %v1570, %v1558
    %v1979 = vpack.c.b16 %v1571, %v1559
    %v1980 = vpack.c.b16 %v1584, %v1572
    %v1981 = vpack.c.b16 %v1585, %v1573
    %v1982 = vpack.c.b16 %v1586, %v1574
    %v1983 = vpack.c.b16 %v1587, %v1575
    %v1984 = vpack.c.b16 %v1588, %v1576
    %v1985 = vpack.c.b16 %v1589, %v1577
    %v1986 = vpack.c.b16 %v1590, %v1578
    %v1987 = vpack.c.b16 %v1591, %v1579
    %v1988 = vpack.c.b16 %v1592, %v1580
    %v1989 = vpack.c.b16 %v1593, %v1581
    %v1990 = vpack.c.b16 %v1594, %v1582
    %v1991 = vpack.c.b16 %v1595, %v1583
    %v1992 = vpack.c.b16 %v1608, %v1596
    %v1993 = vpack.c.b16 %v1609, %v1597
    %v1994 = vpack.c.b16 %v1610, %v1598
    %v1995 = vpack.c.b16 %v1611, %v1599
    %v1996 = vpack.c.b16 %v1612, %v1600
    %v1997 = vpack.c.b16 %v1613, %v1601
    %v1998 = vpack.c.b16 %v1614, %v1602
    %v1999 = vpack.c.b16 %v1615, %v1603
    %v2000 = vpack.c.b16 %v1616, %v1604
    %v2001 = vpack.c.b16 %v1617, %v1605
    %v2002 = vpack.c.b16 %v1618, %v1606
    %v2003 = vpack.c.b16 %v1619, %v1607
    %2388 = vmatprep.subr.bf16.mxu0 %v1621
    %2389 = vmatpush1.bf16.msra.mxu0 %v1620
    %2390 = vmatprep.subr.bf16.mxu0 %v1633
    %2391 = vmatpush1.bf16.msra.mxu0 %v1632
    %2392 = vmatprep.subr.bf16.mxu0 %v1645
    %2393 = vmatpush1.bf16.msra.mxu0 %v1644
    %2394 = vmatprep.subr.bf16.mxu0 %v1657
    %2395 = vmatpush1.bf16.msra.mxu0 %v1656
    %2396 = vmatprep.subr.bf16.mxu0 %v1669
    %2397 = vmatpush1.bf16.msra.mxu0 %v1668
    %2398 = vmatprep.subr.bf16.mxu0 %v1681
    %2399 = vmatpush1.bf16.msra.mxu0 %v1680
    %2400 = vmatprep.subr.bf16.mxu0 %v1693
    %2401 = vmatpush1.bf16.msra.mxu0 %v1692
    %2402 = vmatprep.subr.bf16.mxu0 %v1705
    %2403 = vmatpush1.bf16.msra.mxu0 %v1704
    %2404 = vmatprep.subr.bf16.mxu0 %v1717
    %2405 = vmatpush1.bf16.msra.mxu0 %v1716
    %2406 = vmatprep.subr.bf16.mxu0 %v1729
    %2407 = vmatpush1.bf16.msra.mxu0 %v1728
    %2408 = vmatprep.subr.bf16.mxu0 %v1741
    %2409 = vmatpush1.bf16.msra.mxu0 %v1740
    %2410 = vmatprep.subr.bf16.mxu0 %v1753
    %2411 = vmatpush1.bf16.msra.mxu0 %v1752
    %2412 = vmatprep.subr.bf16.mxu0 %v1765
    %2413 = vmatpush1.bf16.msra.mxu0 %v1764
    %2414 = vmatprep.subr.bf16.mxu0 %v1777
    %2415 = vmatpush1.bf16.msra.mxu0 %v1776
    %2416 = vmatprep.subr.bf16.mxu0 %v1789
    %2417 = vmatpush1.bf16.msra.mxu0 %v1788
    %2418 = vmatprep.subr.bf16.mxu0 %v1801
    %2419 = vmatpush1.bf16.msra.mxu0 %v1800
    %2420 = vmatprep.mubr.bf16.mxu0 %v81
    %2421 = vmatmul.mubr.bf16.gmra.mrb[0].mxu0 %v80
    %v2422 = vpop.f32.mrb[0].mxu0
    %v2423 = vadd.f32 0.0, %v2422
    %v2424 = vpop.f32.mrb[0].mxu0
    %v2425 = vadd.f32 0.0, %v2424
    %v2426 = vpop.f32.mrb[0].mxu0
    %v2427 = vadd.f32 0.0, %v2426
    %v2428 = vpop.f32.mrb[0].mxu0
    %v2429 = vadd.f32 0.0, %v2428
    %2430 = vdwg.mxu0
    %2431 = vmatprep.subr.bf16.mxu0 %v1813
    %2432 = vmatpush1.bf16.msra.mxu0 %v1812
    %2433 = vmatprep.subr.bf16.mxu0 %v1825
    %2434 = vmatpush1.bf16.msra.mxu0 %v1824
    %2435 = vmatprep.subr.bf16.mxu0 %v1837
    %2436 = vmatpush1.bf16.msra.mxu0 %v1836
    %2437 = vmatprep.subr.bf16.mxu0 %v1849
    %2438 = vmatpush1.bf16.msra.mxu0 %v1848
    %2439 = vmatprep.subr.bf16.mxu0 %v1861
    %2440 = vmatpush1.bf16.msra.mxu0 %v1860
    %2441 = vmatprep.subr.bf16.mxu0 %v1873
    %2442 = vmatpush1.bf16.msra.mxu0 %v1872
    %2443 = vmatprep.subr.bf16.mxu0 %v1885
    %2444 = vmatpush1.bf16.msra.mxu0 %v1884
    %2445 = vmatprep.subr.bf16.mxu0 %v1897
    %2446 = vmatpush1.bf16.msra.mxu0 %v1896
    %2447 = vmatprep.subr.bf16.mxu0 %v1909
    %2448 = vmatpush1.bf16.msra.mxu0 %v1908
    %2449 = vmatprep.subr.bf16.mxu0 %v1921
    %2450 = vmatpush1.bf16.msra.mxu0 %v1920
    %2451 = vmatprep.subr.bf16.mxu0 %v1933
    %2452 = vmatpush1.bf16.msra.mxu0 %v1932
    %2453 = vmatprep.subr.bf16.mxu0 %v1945
    %2454 = vmatpush1.bf16.msra.mxu0 %v1944
    %2455 = vmatprep.subr.bf16.mxu0 %v1957
    %2456 = vmatpush1.bf16.msra.mxu0 %v1956
    %2457 = vmatprep.subr.bf16.mxu0 %v1969
    %2458 = vmatpush1.bf16.msra.mxu0 %v1968
    %2459 = vmatprep.subr.bf16.mxu0 %v1981
    %2460 = vmatpush1.bf16.msra.mxu0 %v1980
    %2461 = vmatprep.subr.bf16.mxu0 %v1993
    %2462 = vmatpush1.bf16.msra.mxu0 %v1992
    %2463 = vmatprep.mubr.bf16.mxu0 %v83
    %2464 = vmatmul.mubr.bf16.gmra.mrb[0].mxu0 %v82
    %v2465 = vpop.f32.mrb[0].mxu0
    %v2466 = vadd.f32 %v2423, %v2465
    %v2467 = vpop.f32.mrb[0].mxu0
    %v2468 = vadd.f32 %v2425, %v2467
    %v2469 = vpop.f32.mrb[0].mxu0
    %v2470 = vadd.f32 %v2427, %v2469
    %v2471 = vpop.f32.mrb[0].mxu0
    %v2472 = vadd.f32 %v2429, %v2471
    %2473 = vdwg.mxu0
    %2474 = vmatprep.subr.bf16.mxu0 %v1623
    %2475 = vmatpush1.bf16.msra.mxu0 %v1622
    %2476 = vmatprep.subr.bf16.mxu0 %v1635
    %2477 = vmatpush1.bf16.msra.mxu0 %v1634
    %2478 = vmatprep.subr.bf16.mxu0 %v1647
    %2479 = vmatpush1.bf16.msra.mxu0 %v1646
    %2480 = vmatprep.subr.bf16.mxu0 %v1659
    %2481 = vmatpush1.bf16.msra.mxu0 %v1658
    %2482 = vmatprep.subr.bf16.mxu0 %v1671
    %2483 = vmatpush1.bf16.msra.mxu0 %v1670
    %2484 = vmatprep.subr.bf16.mxu0 %v1683
    %2485 = vmatpush1.bf16.msra.mxu0 %v1682
    %2486 = vmatprep.subr.bf16.mxu0 %v1695
    %2487 = vmatpush1.bf16.msra.mxu0 %v1694
    %2488 = vmatprep.subr.bf16.mxu0 %v1707
    %2489 = vmatpush1.bf16.msra.mxu0 %v1706
    %2490 = vmatprep.subr.bf16.mxu0 %v1719
    %2491 = vmatpush1.bf16.msra.mxu0 %v1718
    %2492 = vmatprep.subr.bf16.mxu0 %v1731
    %2493 = vmatpush1.bf16.msra.mxu0 %v1730
    %2494 = vmatprep.subr.bf16.mxu0 %v1743
    %2495 = vmatpush1.bf16.msra.mxu0 %v1742
    %2496 = vmatprep.subr.bf16.mxu0 %v1755
    %2497 = vmatpush1.bf16.msra.mxu0 %v1754
    %2498 = vmatprep.subr.bf16.mxu0 %v1767
    %2499 = vmatpush1.bf16.msra.mxu0 %v1766
    %2500 = vmatprep.subr.bf16.mxu0 %v1779
    %2501 = vmatpush1.bf16.msra.mxu0 %v1778
    %2502 = vmatprep.subr.bf16.mxu0 %v1791
    %2503 = vmatpush1.bf16.msra.mxu0 %v1790
    %2504 = vmatprep.subr.bf16.mxu0 %v1803
    %2505 = vmatpush1.bf16.msra.mxu0 %v1802
    %2506 = vmatprep.mubr.bf16.mxu0 %v81
    %2507 = vmatmul.mubr.bf16.gmra.mrb[0].mxu0 %v80
    %v2508 = vpop.f32.mrb[0].mxu0
    %v2509 = vadd.f32 0.0, %v2508
    %v2510 = vpop.f32.mrb[0].mxu0
    %v2511 = vadd.f32 0.0, %v2510
    %v2512 = vpop.f32.mrb[0].mxu0
    %v2513 = vadd.f32 0.0, %v2512
    %v2514 = vpop.f32.mrb[0].mxu0
    %v2515 = vadd.f32 0.0, %v2514
    %2516 = vdwg.mxu0
    %2517 = vmatprep.subr.bf16.mxu0 %v1815
    %2518 = vmatpush1.bf16.msra.mxu0 %v1814
    %2519 = vmatprep.subr.bf16.mxu0 %v1827
    %2520 = vmatpush1.bf16.msra.mxu0 %v1826
    %2521 = vmatprep.subr.bf16.mxu0 %v1839
    %2522 = vmatpush1.bf16.msra.mxu0 %v1838
    %2523 = vmatprep.subr.bf16.mxu0 %v1851
    %2524 = vmatpush1.bf16.msra.mxu0 %v1850
    %2525 = vmatprep.subr.bf16.mxu0 %v1863
    %2526 = vmatpush1.bf16.msra.mxu0 %v1862
    %2527 = vmatprep.subr.bf16.mxu0 %v1875
    %2528 = vmatpush1.bf16.msra.mxu0 %v1874
    %2529 = vmatprep.subr.bf16.mxu0 %v1887
    %2530 = vmatpush1.bf16.msra.mxu0 %v1886
    %2531 = vmatprep.subr.bf16.mxu0 %v1899
    %2532 = vmatpush1.bf16.msra.mxu0 %v1898
    %2533 = vmatprep.subr.bf16.mxu0 %v1911
    %2534 = vmatpush1.bf16.msra.mxu0 %v1910
    %2535 = vmatprep.subr.bf16.mxu0 %v1923
    %2536 = vmatpush1.bf16.msra.mxu0 %v1922
    %2537 = vmatprep.subr.bf16.mxu0 %v1935
    %2538 = vmatpush1.bf16.msra.mxu0 %v1934
    %2539 = vmatprep.subr.bf16.mxu0 %v1947
    %2540 = vmatpush1.bf16.msra.mxu0 %v1946
    %2541 = vmatprep.subr.bf16.mxu0 %v1959
    %2542 = vmatpush1.bf16.msra.mxu0 %v1958
    %2543 = vmatprep.subr.bf16.mxu0 %v1971
    %2544 = vmatpush1.bf16.msra.mxu0 %v1970
    %2545 = vmatprep.subr.bf16.mxu0 %v1983
    %2546 = vmatpush1.bf16.msra.mxu0 %v1982
    %2547 = vmatprep.subr.bf16.mxu0 %v1995
    %2548 = vmatpush1.bf16.msra.mxu0 %v1994
    %2549 = vmatprep.mubr.bf16.mxu0 %v83
    %2550 = vmatmul.mubr.bf16.gmra.mrb[0].mxu0 %v82
    %v2551 = vpop.f32.mrb[0].mxu0
    %v2552 = vadd.f32 %v2509, %v2551
    %v2553 = vpop.f32.mrb[0].mxu0
    %v2554 = vadd.f32 %v2511, %v2553
    %v2555 = vpop.f32.mrb[0].mxu0
    %v2556 = vadd.f32 %v2513, %v2555
    %v2557 = vpop.f32.mrb[0].mxu0
    %v2558 = vadd.f32 %v2515, %v2557
    %2559 = vdwg.mxu0
    %2560 = vmatprep.subr.bf16.mxu0 %v1625
    %2561 = vmatpush1.bf16.msra.mxu0 %v1624
    %2562 = vmatprep.subr.bf16.mxu0 %v1637
    %2563 = vmatpush1.bf16.msra.mxu0 %v1636
    %2564 = vmatprep.subr.bf16.mxu0 %v1649
    %2565 = vmatpush1.bf16.msra.mxu0 %v1648
    %2566 = vmatprep.subr.bf16.mxu0 %v1661
    %2567 = vmatpush1.bf16.msra.mxu0 %v1660
    %2568 = vmatprep.subr.bf16.mxu0 %v1673
    %2569 = vmatpush1.bf16.msra.mxu0 %v1672
    %2570 = vmatprep.subr.bf16.mxu0 %v1685
    %2571 = vmatpush1.bf16.msra.mxu0 %v1684
    %2572 = vmatprep.subr.bf16.mxu0 %v1697
    %2573 = vmatpush1.bf16.msra.mxu0 %v1696
    %2574 = vmatprep.subr.bf16.mxu0 %v1709
    %2575 = vmatpush1.bf16.msra.mxu0 %v1708
    %2576 = vmatprep.subr.bf16.mxu0 %v1721
    %2577 = vmatpush1.bf16.msra.mxu0 %v1720
    %2578 = vmatprep.subr.bf16.mxu0 %v1733
    %2579 = vmatpush1.bf16.msra.mxu0 %v1732
    %2580 = vmatprep.subr.bf16.mxu0 %v1745
    %2581 = vmatpush1.bf16.msra.mxu0 %v1744
    %2582 = vmatprep.subr.bf16.mxu0 %v1757
    %2583 = vmatpush1.bf16.msra.mxu0 %v1756
    %2584 = vmatprep.subr.bf16.mxu0 %v1769
    %2585 = vmatpush1.bf16.msra.mxu0 %v1768
    %2586 = vmatprep.subr.bf16.mxu0 %v1781
    %2587 = vmatpush1.bf16.msra.mxu0 %v1780
    %2588 = vmatprep.subr.bf16.mxu0 %v1793
    %2589 = vmatpush1.bf16.msra.mxu0 %v1792
    %2590 = vmatprep.subr.bf16.mxu0 %v1805
    %2591 = vmatpush1.bf16.msra.mxu0 %v1804
    %2592 = vmatprep.mubr.bf16.mxu0 %v81
    %2593 = vmatmul.mubr.bf16.gmra.mrb[0].mxu0 %v80
    %v2594 = vpop.f32.mrb[0].mxu0
    %v2595 = vadd.f32 0.0, %v2594
    %v2596 = vpop.f32.mrb[0].mxu0
    %v2597 = vadd.f32 0.0, %v2596
    %v2598 = vpop.f32.mrb[0].mxu0
    %v2599 = vadd.f32 0.0, %v2598
    %v2600 = vpop.f32.mrb[0].mxu0
    %v2601 = vadd.f32 0.0, %v2600
    %2602 = vdwg.mxu0
    %2603 = vmatprep.subr.bf16.mxu0 %v1817
    %2604 = vmatpush1.bf16.msra.mxu0 %v1816
    %2605 = vmatprep.subr.bf16.mxu0 %v1829
    %2606 = vmatpush1.bf16.msra.mxu0 %v1828
    %2607 = vmatprep.subr.bf16.mxu0 %v1841
    %2608 = vmatpush1.bf16.msra.mxu0 %v1840
    %2609 = vmatprep.subr.bf16.mxu0 %v1853
    %2610 = vmatpush1.bf16.msra.mxu0 %v1852
    %2611 = vmatprep.subr.bf16.mxu0 %v1865
    %2612 = vmatpush1.bf16.msra.mxu0 %v1864
    %2613 = vmatprep.subr.bf16.mxu0 %v1877
    %2614 = vmatpush1.bf16.msra.mxu0 %v1876
    %2615 = vmatprep.subr.bf16.mxu0 %v1889
    %2616 = vmatpush1.bf16.msra.mxu0 %v1888
    %2617 = vmatprep.subr.bf16.mxu0 %v1901
    %2618 = vmatpush1.bf16.msra.mxu0 %v1900
    %2619 = vmatprep.subr.bf16.mxu0 %v1913
    %2620 = vmatpush1.bf16.msra.mxu0 %v1912
    %2621 = vmatprep.subr.bf16.mxu0 %v1925
    %2622 = vmatpush1.bf16.msra.mxu0 %v1924
    %2623 = vmatprep.subr.bf16.mxu0 %v1937
    %2624 = vmatpush1.bf16.msra.mxu0 %v1936
    %2625 = vmatprep.subr.bf16.mxu0 %v1949
    %2626 = vmatpush1.bf16.msra.mxu0 %v1948
    %2627 = vmatprep.subr.bf16.mxu0 %v1961
    %2628 = vmatpush1.bf16.msra.mxu0 %v1960
    %2629 = vmatprep.subr.bf16.mxu0 %v1973
    %2630 = vmatpush1.bf16.msra.mxu0 %v1972
    %2631 = vmatprep.subr.bf16.mxu0 %v1985
    %2632 = vmatpush1.bf16.msra.mxu0 %v1984
    %2633 = vmatprep.subr.bf16.mxu0 %v1997
    %2634 = vmatpush1.bf16.msra.mxu0 %v1996
    %2635 = vmatprep.mubr.bf16.mxu0 %v83
    %2636 = vmatmul.mubr.bf16.gmra.mrb[0].mxu0 %v82
    %v2637 = vpop.f32.mrb[0].mxu0
    %v2638 = vadd.f32 %v2595, %v2637
    %v2639 = vpop.f32.mrb[0].mxu0
    %v2640 = vadd.f32 %v2597, %v2639
    %v2641 = vpop.f32.mrb[0].mxu0
    %v2642 = vadd.f32 %v2599, %v2641
    %v2643 = vpop.f32.mrb[0].mxu0
    %v2644 = vadd.f32 %v2601, %v2643
    %2645 = vdwg.mxu0
    %2646 = vmatprep.subr.bf16.mxu0 %v1627
    %2647 = vmatpush1.bf16.msra.mxu0 %v1626
    %2648 = vmatprep.subr.bf16.mxu0 %v1639
    %2649 = vmatpush1.bf16.msra.mxu0 %v1638
    %2650 = vmatprep.subr.bf16.mxu0 %v1651
    %2651 = vmatpush1.bf16.msra.mxu0 %v1650
    %2652 = vmatprep.subr.bf16.mxu0 %v1663
    %2653 = vmatpush1.bf16.msra.mxu0 %v1662
    %2654 = vmatprep.subr.bf16.mxu0 %v1675
    %2655 = vmatpush1.bf16.msra.mxu0 %v1674
    %2656 = vmatprep.subr.bf16.mxu0 %v1687
    %2657 = vmatpush1.bf16.msra.mxu0 %v1686
    %2658 = vmatprep.subr.bf16.mxu0 %v1699
    %2659 = vmatpush1.bf16.msra.mxu0 %v1698
    %2660 = vmatprep.subr.bf16.mxu0 %v1711
    %2661 = vmatpush1.bf16.msra.mxu0 %v1710
    %2662 = vmatprep.subr.bf16.mxu0 %v1723
    %2663 = vmatpush1.bf16.msra.mxu0 %v1722
    %2664 = vmatprep.subr.bf16.mxu0 %v1735
    %2665 = vmatpush1.bf16.msra.mxu0 %v1734
    %2666 = vmatprep.subr.bf16.mxu0 %v1747
    %2667 = vmatpush1.bf16.msra.mxu0 %v1746
    %2668 = vmatprep.subr.bf16.mxu0 %v1759
    %2669 = vmatpush1.bf16.msra.mxu0 %v1758
    %2670 = vmatprep.subr.bf16.mxu0 %v1771
    %2671 = vmatpush1.bf16.msra.mxu0 %v1770
    %2672 = vmatprep.subr.bf16.mxu0 %v1783
    %2673 = vmatpush1.bf16.msra.mxu0 %v1782
    %2674 = vmatprep.subr.bf16.mxu0 %v1795
    %2675 = vmatpush1.bf16.msra.mxu0 %v1794
    %2676 = vmatprep.subr.bf16.mxu0 %v1807
    %2677 = vmatpush1.bf16.msra.mxu0 %v1806
    %2678 = vmatprep.mubr.bf16.mxu0 %v81
    %2679 = vmatmul.mubr.bf16.gmra.mrb[0].mxu0 %v80
    %v2680 = vpop.f32.mrb[0].mxu0
    %v2681 = vadd.f32 0.0, %v2680
    %v2682 = vpop.f32.mrb[0].mxu0
    %v2683 = vadd.f32 0.0, %v2682
    %v2684 = vpop.f32.mrb[0].mxu0
    %v2685 = vadd.f32 0.0, %v2684
    %v2686 = vpop.f32.mrb[0].mxu0
    %v2687 = vadd.f32 0.0, %v2686
    %2688 = vdwg.mxu0
    %2689 = vmatprep.subr.bf16.mxu0 %v1819
    %2690 = vmatpush1.bf16.msra.mxu0 %v1818
    %2691 = vmatprep.subr.bf16.mxu0 %v1831
    %2692 = vmatpush1.bf16.msra.mxu0 %v1830
    %2693 = vmatprep.subr.bf16.mxu0 %v1843
    %2694 = vmatpush1.bf16.msra.mxu0 %v1842
    %2695 = vmatprep.subr.bf16.mxu0 %v1855
    %2696 = vmatpush1.bf16.msra.mxu0 %v1854
    %2697 = vmatprep.subr.bf16.mxu0 %v1867
    %2698 = vmatpush1.bf16.msra.mxu0 %v1866
    %2699 = vmatprep.subr.bf16.mxu0 %v1879
    %2700 = vmatpush1.bf16.msra.mxu0 %v1878
    %2701 = vmatprep.subr.bf16.mxu0 %v1891
    %2702 = vmatpush1.bf16.msra.mxu0 %v1890
    %2703 = vmatprep.subr.bf16.mxu0 %v1903
    %2704 = vmatpush1.bf16.msra.mxu0 %v1902
    %2705 = vmatprep.subr.bf16.mxu0 %v1915
    %2706 = vmatpush1.bf16.msra.mxu0 %v1914
    %2707 = vmatprep.subr.bf16.mxu0 %v1927
    %2708 = vmatpush1.bf16.msra.mxu0 %v1926
    %2709 = vmatprep.subr.bf16.mxu0 %v1939
    %2710 = vmatpush1.bf16.msra.mxu0 %v1938
    %2711 = vmatprep.subr.bf16.mxu0 %v1951
    %2712 = vmatpush1.bf16.msra.mxu0 %v1950
    %2713 = vmatprep.subr.bf16.mxu0 %v1963
    %2714 = vmatpush1.bf16.msra.mxu0 %v1962
    %2715 = vmatprep.subr.bf16.mxu0 %v1975
    %2716 = vmatpush1.bf16.msra.mxu0 %v1974
    %2717 = vmatprep.subr.bf16.mxu0 %v1987
    %2718 = vmatpush1.bf16.msra.mxu0 %v1986
    %2719 = vmatprep.subr.bf16.mxu0 %v1999
    %2720 = vmatpush1.bf16.msra.mxu0 %v1998
    %2721 = vmatprep.mubr.bf16.mxu0 %v83
    %2722 = vmatmul.mubr.bf16.gmra.mrb[0].mxu0 %v82
    %v2723 = vpop.f32.mrb[0].mxu0
    %v2724 = vadd.f32 %v2681, %v2723
    %v2725 = vpop.f32.mrb[0].mxu0
    %v2726 = vadd.f32 %v2683, %v2725
    %v2727 = vpop.f32.mrb[0].mxu0
    %v2728 = vadd.f32 %v2685, %v2727
    %v2729 = vpop.f32.mrb[0].mxu0
    %v2730 = vadd.f32 %v2687, %v2729
    %2731 = vdwg.mxu0
    %2732 = vmatprep.subr.bf16.mxu0 %v1629
    %2733 = vmatpush1.bf16.msra.mxu0 %v1628
    %2734 = vmatprep.subr.bf16.mxu0 %v1641
    %2735 = vmatpush1.bf16.msra.mxu0 %v1640
    %2736 = vmatprep.subr.bf16.mxu0 %v1653
    %2737 = vmatpush1.bf16.msra.mxu0 %v1652
    %2738 = vmatprep.subr.bf16.mxu0 %v1665
    %2739 = vmatpush1.bf16.msra.mxu0 %v1664
    %2740 = vmatprep.subr.bf16.mxu0 %v1677
    %2741 = vmatpush1.bf16.msra.mxu0 %v1676
    %2742 = vmatprep.subr.bf16.mxu0 %v1689
    %2743 = vmatpush1.bf16.msra.mxu0 %v1688
    %2744 = vmatprep.subr.bf16.mxu0 %v1701
    %2745 = vmatpush1.bf16.msra.mxu0 %v1700
    %2746 = vmatprep.subr.bf16.mxu0 %v1713
    %2747 = vmatpush1.bf16.msra.mxu0 %v1712
    %2748 = vmatprep.subr.bf16.mxu0 %v1725
    %2749 = vmatpush1.bf16.msra.mxu0 %v1724
    %2750 = vmatprep.subr.bf16.mxu0 %v1737
    %2751 = vmatpush1.bf16.msra.mxu0 %v1736
    %2752 = vmatprep.subr.bf16.mxu0 %v1749
    %2753 = vmatpush1.bf16.msra.mxu0 %v1748
    %2754 = vmatprep.subr.bf16.mxu0 %v1761
    %2755 = vmatpush1.bf16.msra.mxu0 %v1760
    %2756 = vmatprep.subr.bf16.mxu0 %v1773
    %2757 = vmatpush1.bf16.msra.mxu0 %v1772
    %2758 = vmatprep.subr.bf16.mxu0 %v1785
    %2759 = vmatpush1.bf16.msra.mxu0 %v1784
    %2760 = vmatprep.subr.bf16.mxu0 %v1797
    %2761 = vmatpush1.bf16.msra.mxu0 %v1796
    %2762 = vmatprep.subr.bf16.mxu0 %v1809
    %2763 = vmatpush1.bf16.msra.mxu0 %v1808
    %2764 = vmatprep.mubr.bf16.mxu0 %v81
    %2765 = vmatmul.mubr.bf16.gmra.mrb[0].mxu0 %v80
    %v2766 = vpop.f32.mrb[0].mxu0
    %v2767 = vadd.f32 0.0, %v2766
    %v2768 = vpop.f32.mrb[0].mxu0
    %v2769 = vadd.f32 0.0, %v2768
    %v2770 = vpop.f32.mrb[0].mxu0
    %v2771 = vadd.f32 0.0, %v2770
    %v2772 = vpop.f32.mrb[0].mxu0
    %v2773 = vadd.f32 0.0, %v2772
    %2774 = vdwg.mxu0
    %2775 = vmatprep.subr.bf16.mxu0 %v1821
    %2776 = vmatpush1.bf16.msra.mxu0 %v1820
    %2777 = vmatprep.subr.bf16.mxu0 %v1833
    %2778 = vmatpush1.bf16.msra.mxu0 %v1832
    %2779 = vmatprep.subr.bf16.mxu0 %v1845
    %2780 = vmatpush1.bf16.msra.mxu0 %v1844
    %2781 = vmatprep.subr.bf16.mxu0 %v1857
    %2782 = vmatpush1.bf16.msra.mxu0 %v1856
    %2783 = vmatprep.subr.bf16.mxu0 %v1869
    %2784 = vmatpush1.bf16.msra.mxu0 %v1868
    %2785 = vmatprep.subr.bf16.mxu0 %v1881
    %2786 = vmatpush1.bf16.msra.mxu0 %v1880
    %2787 = vmatprep.subr.bf16.mxu0 %v1893
    %2788 = vmatpush1.bf16.msra.mxu0 %v1892
    %2789 = vmatprep.subr.bf16.mxu0 %v1905
    %2790 = vmatpush1.bf16.msra.mxu0 %v1904
    %2791 = vmatprep.subr.bf16.mxu0 %v1917
    %2792 = vmatpush1.bf16.msra.mxu0 %v1916
    %2793 = vmatprep.subr.bf16.mxu0 %v1929
    %2794 = vmatpush1.bf16.msra.mxu0 %v1928
    %2795 = vmatprep.subr.bf16.mxu0 %v1941
    %2796 = vmatpush1.bf16.msra.mxu0 %v1940
    %2797 = vmatprep.subr.bf16.mxu0 %v1953
    %2798 = vmatpush1.bf16.msra.mxu0 %v1952
    %2799 = vmatprep.subr.bf16.mxu0 %v1965
    %2800 = vmatpush1.bf16.msra.mxu0 %v1964
    %2801 = vmatprep.subr.bf16.mxu0 %v1977
    %2802 = vmatpush1.bf16.msra.mxu0 %v1976
    %2803 = vmatprep.subr.bf16.mxu0 %v1989
    %2804 = vmatpush1.bf16.msra.mxu0 %v1988
    %2805 = vmatprep.subr.bf16.mxu0 %v2001
    %2806 = vmatpush1.bf16.msra.mxu0 %v2000
    %2807 = vmatprep.mubr.bf16.mxu0 %v83
    %2808 = vmatmul.mubr.bf16.gmra.mrb[0].mxu0 %v82
    %v2809 = vpop.f32.mrb[0].mxu0
    %v2810 = vadd.f32 %v2767, %v2809
    %v2811 = vpop.f32.mrb[0].mxu0
    %v2812 = vadd.f32 %v2769, %v2811
    %v2813 = vpop.f32.mrb[0].mxu0
    %v2814 = vadd.f32 %v2771, %v2813
    %v2815 = vpop.f32.mrb[0].mxu0
    %v2816 = vadd.f32 %v2773, %v2815
    %2817 = vdwg.mxu0
    %2818 = vmatprep.subr.bf16.mxu0 %v1631
    %2819 = vmatpush1.bf16.msra.mxu0 %v1630
    %2820 = vmatprep.subr.bf16.mxu0 %v1643
    %2821 = vmatpush1.bf16.msra.mxu0 %v1642
    %2822 = vmatprep.subr.bf16.mxu0 %v1655
    %2823 = vmatpush1.bf16.msra.mxu0 %v1654
    %2824 = vmatprep.subr.bf16.mxu0 %v1667
    %2825 = vmatpush1.bf16.msra.mxu0 %v1666
    %2826 = vmatprep.subr.bf16.mxu0 %v1679
    %2827 = vmatpush1.bf16.msra.mxu0 %v1678
    %2828 = vmatprep.subr.bf16.mxu0 %v1691
    %2829 = vmatpush1.bf16.msra.mxu0 %v1690
    %2830 = vmatprep.subr.bf16.mxu0 %v1703
    %2831 = vmatpush1.bf16.msra.mxu0 %v1702
    %2832 = vmatprep.subr.bf16.mxu0 %v1715
    %2833 = vmatpush1.bf16.msra.mxu0 %v1714
    %2834 = vmatprep.subr.bf16.mxu0 %v1727
    %2835 = vmatpush1.bf16.msra.mxu0 %v1726
    %2836 = vmatprep.subr.bf16.mxu0 %v1739
    %2837 = vmatpush1.bf16.msra.mxu0 %v1738
    %2838 = vmatprep.subr.bf16.mxu0 %v1751
    %2839 = vmatpush1.bf16.msra.mxu0 %v1750
    %2840 = vmatprep.subr.bf16.mxu0 %v1763
    %2841 = vmatpush1.bf16.msra.mxu0 %v1762
    %2842 = vmatprep.subr.bf16.mxu0 %v1775
    %2843 = vmatpush1.bf16.msra.mxu0 %v1774
    %2844 = vmatprep.subr.bf16.mxu0 %v1787
    %2845 = vmatpush1.bf16.msra.mxu0 %v1786
    %2846 = vmatprep.subr.bf16.mxu0 %v1799
    %2847 = vmatpush1.bf16.msra.mxu0 %v1798
    %2848 = vmatprep.subr.bf16.mxu0 %v1811
    %2849 = vmatpush1.bf16.msra.mxu0 %v1810
    %2850 = vmatprep.mubr.bf16.mxu0 %v81
    %2851 = vmatmul.mubr.bf16.gmra.mrb[0].mxu0 %v80
    %v2852 = vpop.f32.mrb[0].mxu0
    %v2853 = vadd.f32 0.0, %v2852
    %v2854 = vpop.f32.mrb[0].mxu0
    %v2855 = vadd.f32 0.0, %v2854
    %v2856 = vpop.f32.mrb[0].mxu0
    %v2857 = vadd.f32 0.0, %v2856
    %v2858 = vpop.f32.mrb[0].mxu0
    %v2859 = vadd.f32 0.0, %v2858
    %2860 = vdwg.mxu0
    %2861 = vmatprep.subr.bf16.mxu0 %v1823
    %2862 = vmatpush1.bf16.msra.mxu0 %v1822
    %2863 = vmatprep.subr.bf16.mxu0 %v1835
    %2864 = vmatpush1.bf16.msra.mxu0 %v1834
    %2865 = vmatprep.subr.bf16.mxu0 %v1847
    %2866 = vmatpush1.bf16.msra.mxu0 %v1846
    %2867 = vmatprep.subr.bf16.mxu0 %v1859
    %2868 = vmatpush1.bf16.msra.mxu0 %v1858
    %2869 = vmatprep.subr.bf16.mxu0 %v1871
    %2870 = vmatpush1.bf16.msra.mxu0 %v1870
    %2871 = vmatprep.subr.bf16.mxu0 %v1883
    %2872 = vmatpush1.bf16.msra.mxu0 %v1882
    %2873 = vmatprep.subr.bf16.mxu0 %v1895
    %2874 = vmatpush1.bf16.msra.mxu0 %v1894
    %2875 = vmatprep.subr.bf16.mxu0 %v1907
    %2876 = vmatpush1.bf16.msra.mxu0 %v1906
    %2877 = vmatprep.subr.bf16.mxu0 %v1919
    %2878 = vmatpush1.bf16.msra.mxu0 %v1918
    %2879 = vmatprep.subr.bf16.mxu0 %v1931
    %2880 = vmatpush1.bf16.msra.mxu0 %v1930
    %2881 = vmatprep.subr.bf16.mxu0 %v1943
    %2882 = vmatpush1.bf16.msra.mxu0 %v1942
    %2883 = vmatprep.subr.bf16.mxu0 %v1955
    %2884 = vmatpush1.bf16.msra.mxu0 %v1954
    %2885 = vmatprep.subr.bf16.mxu0 %v1967
    %2886 = vmatpush1.bf16.msra.mxu0 %v1966
    %2887 = vmatprep.subr.bf16.mxu0 %v1979
    %2888 = vmatpush1.bf16.msra.mxu0 %v1978
    %2889 = vmatprep.subr.bf16.mxu0 %v1991
    %2890 = vmatpush1.bf16.msra.mxu0 %v1990
    %2891 = vmatprep.subr.bf16.mxu0 %v2003
    %2892 = vmatpush1.bf16.msra.mxu0 %v2002
    %2893 = vmatprep.mubr.bf16.mxu0 %v83
    %2894 = vmatmul.mubr.bf16.gmra.mrb[0].mxu0 %v82
    %v2895 = vpop.f32.mrb[0].mxu0
    %v2896 = vadd.f32 %v2853, %v2895
    %v2897 = vpop.f32.mrb[0].mxu0
    %v2898 = vadd.f32 %v2855, %v2897
    %v2899 = vpop.f32.mrb[0].mxu0
    %v2900 = vadd.f32 %v2857, %v2899
    %v2901 = vpop.f32.mrb[0].mxu0
    %v2902 = vadd.f32 %v2859, %v2901
    %2903 = vdwg.mxu0
    %v2904 = vpack.c.bf16 %v2470, %v2466
    %v2905 = vpack.c.bf16 %v2472, %v2468
    %v2906 = vpack.c.bf16 %v2556, %v2552
    %v2907 = vpack.c.bf16 %v2558, %v2554
    %v2908 = vpack.c.bf16 %v2642, %v2638
    %v2909 = vpack.c.bf16 %v2644, %v2640
    %v2910 = vpack.c.bf16 %v2728, %v2724
    %v2911 = vpack.c.bf16 %v2730, %v2726
    %v2912 = vpack.c.bf16 %v2814, %v2810
    %v2913 = vpack.c.bf16 %v2816, %v2812
    %v2914 = vpack.c.bf16 %v2900, %v2896
    %v2915 = vpack.c.bf16 %v2902, %v2898
    %v2928 = vunpack.c.l.b16 %v2904
    %v2929 = vunpack.c.l.b16 %v2905
    %v2930 = vunpack.c.l.b16 %v2906
    %v2931 = vunpack.c.l.b16 %v2907
    %v2932 = vunpack.c.l.b16 %v2908
    %v2933 = vunpack.c.l.b16 %v2909
    %v2934 = vunpack.c.l.b16 %v2910
    %v2935 = vunpack.c.l.b16 %v2911
    %v2936 = vunpack.c.l.b16 %v2912
    %v2937 = vunpack.c.l.b16 %v2913
    %v2938 = vunpack.c.l.b16 %v2914
    %v2939 = vunpack.c.l.b16 %v2915
    %v2940 = vunpack.c.h.b16 %v2904
    %v2941 = vunpack.c.h.b16 %v2905
    %v2942 = vunpack.c.h.b16 %v2906
    %v2943 = vunpack.c.h.b16 %v2907
    %v2944 = vunpack.c.h.b16 %v2908
    %v2945 = vunpack.c.h.b16 %v2909
    %v2946 = vunpack.c.h.b16 %v2910
    %v2947 = vunpack.c.h.b16 %v2911
    %v2948 = vunpack.c.h.b16 %v2912
    %v2949 = vunpack.c.h.b16 %v2913
    %v2950 = vunpack.c.h.b16 %v2914
    %v2951 = vunpack.c.h.b16 %v2915
    %v2952 = vpack.c.b16 %v2929, %v2928
    %v2953 = vpack.c.b16 %v2931, %v2930
    %v2954 = vpack.c.b16 %v2933, %v2932
    %v2955 = vpack.c.b16 %v2935, %v2934
    %v2956 = vpack.c.b16 %v2937, %v2936
    %v2957 = vpack.c.b16 %v2939, %v2938
    %v2958 = vpack.c.b16 %v2941, %v2940
    %v2959 = vpack.c.b16 %v2943, %v2942
    %v2960 = vpack.c.b16 %v2945, %v2944
    %v2961 = vpack.c.b16 %v2947, %v2946
    %v2962 = vpack.c.b16 %v2949, %v2948
    %v2963 = vpack.c.b16 %v2951, %v2950
    %v2972 = vlaneseq
    %v2973 = vshrl.u32 %v2972, 7
    %v2974 = vlaneseq
    %v2975 = vand.u32 %v2974, 127
    %2976 = vmatprep.subr.bf16.mxu0 0
    %2977 = vmatpush1.bf16.xpose.msra.mxu0 %v2954
    %2978 = vmatprep.subr.bf16.mxu0 0
    %2979 = vmatpush1.bf16.xpose.msra.mxu0 0
    %2980 = vmatprep.subr.bf16.mxu0 0
    %2981 = vmatpush1.bf16.xpose.msra.mxu0 0
    %2982 = vmatprep.subr.bf16.mxu0 0
    %2983 = vmatpush1.bf16.xpose.msra.mxu0 0
    %2984 = vmatprep.subr.bf16.mxu0 0
    %2985 = vmatpush1.bf16.xpose.msra.mxu0 0
    %2986 = vmatprep.subr.bf16.mxu0 0
    %2987 = vmatpush1.bf16.xpose.msra.mxu0 0
    %2988 = vmatprep.subr.bf16.mxu0 0
    %2989 = vmatpush1.bf16.xpose.msra.mxu0 0
    %2990 = vmatprep.subr.bf16.mxu0 0
    %2991 = vmatpush1.bf16.xpose.msra.mxu0 0
    %2992 = vmatprep.subr.bf16.mxu0 0
    %2993 = vmatpush1.bf16.xpose.msra.mxu0 0
    %2994 = vmatprep.subr.bf16.mxu0 0
    %2995 = vmatpush1.bf16.xpose.msra.mxu0 0
    %2996 = vmatprep.subr.bf16.mxu0 0
    %2997 = vmatpush1.bf16.xpose.msra.mxu0 0
    %2998 = vmatprep.subr.bf16.mxu0 0
    %2999 = vmatpush1.bf16.xpose.msra.mxu0 0
    %3000 = vmatprep.subr.bf16.mxu0 0
    %3001 = vmatpush1.bf16.xpose.msra.mxu0 0
    %3002 = vmatprep.subr.bf16.mxu0 0
    %3003 = vmatpush1.bf16.xpose.msra.mxu0 0
    %3004 = vmatprep.subr.bf16.mxu0 0
    %3005 = vmatpush1.bf16.xpose.msra.mxu0 0
    %3006 = vmatprep.subr.bf16.mxu0 0
    %3007 = vmatpush1.bf16.xpose.msra.mxu0 0
    %3008 = vmatprep.mubr.bf16.mxu0 0
    %3009 = vmatmul.mubr.bf16.gmra.mrb[0].mxu0 %v2952
    %v3010 = vpop.f32.mrb[0].mxu0
    %v3011 = vadd.f32 0.0, %v3010
    %v3012 = vpop.f32.mrb[0].mxu0
    %v3013 = vpop.f32.mrb[0].mxu0
    %v3014 = vpop.f32.mrb[0].mxu0
    %3015 = vdwg.mxu0
    %3016 = vmatprep.subr.bf16.mxu0 0
    %3017 = vmatpush1.bf16.xpose.msra.mxu0 %v2960
    %3018 = vmatprep.subr.bf16.mxu0 0
    %3019 = vmatpush1.bf16.xpose.msra.mxu0 0
    %3020 = vmatprep.subr.bf16.mxu0 0
    %3021 = vmatpush1.bf16.xpose.msra.mxu0 0
    %3022 = vmatprep.subr.bf16.mxu0 0
    %3023 = vmatpush1.bf16.xpose.msra.mxu0 0
    %3024 = vmatprep.subr.bf16.mxu0 0
    %3025 = vmatpush1.bf16.xpose.msra.mxu0 0
    %3026 = vmatprep.subr.bf16.mxu0 0
    %3027 = vmatpush1.bf16.xpose.msra.mxu0 0
    %3028 = vmatprep.subr.bf16.mxu0 0
    %3029 = vmatpush1.bf16.xpose.msra.mxu0 0
    %3030 = vmatprep.subr.bf16.mxu0 0
    %3031 = vmatpush1.bf16.xpose.msra.mxu0 0
    %3032 = vmatprep.subr.bf16.mxu0 0
    %3033 = vmatpush1.bf16.xpose.msra.mxu0 0
    %3034 = vmatprep.subr.bf16.mxu0 0
    %3035 = vmatpush1.bf16.xpose.msra.mxu0 0
    %3036 = vmatprep.subr.bf16.mxu0 0
    %3037 = vmatpush1.bf16.xpose.msra.mxu0 0
    %3038 = vmatprep.subr.bf16.mxu0 0
    %3039 = vmatpush1.bf16.xpose.msra.mxu0 0
    %3040 = vmatprep.subr.bf16.mxu0 0
    %3041 = vmatpush1.bf16.xpose.msra.mxu0 0
    %3042 = vmatprep.subr.bf16.mxu0 0
    %3043 = vmatpush1.bf16.xpose.msra.mxu0 0
    %3044 = vmatprep.subr.bf16.mxu0 0
    %3045 = vmatpush1.bf16.xpose.msra.mxu0 0
    %3046 = vmatprep.subr.bf16.mxu0 0
    %3047 = vmatpush1.bf16.xpose.msra.mxu0 0
    %3048 = vmatprep.mubr.bf16.mxu0 0
    %3049 = vmatmul.mubr.bf16.gmra.mrb[0].mxu0 %v2958
    %v3050 = vpop.f32.mrb[0].mxu0
    %v3051 = vadd.f32 0.0, %v3050
    %v3052 = vpop.f32.mrb[0].mxu0
    %v3053 = vpop.f32.mrb[0].mxu0
    %v3054 = vpop.f32.mrb[0].mxu0
    %3055 = vdwg.mxu0
    %vm3056 = vcmp.le.s32.totalorder %v2975, %v2973
    %v3057 = vsel %vm3056, 1, 0
    %vm3058 = vcmp.eq.s32.totalorder %v3057, 1
    %v3059 = vsel %vm3058, %v3011, -1e+30
    %v3060 = vsel %vm3058, %v3051, -1e+30
    %vm3061 = vcmask 64512
    %v3062 = vsel %vm3061, %v3059, -inf
    %3063 = vmax.xlane.f32.xlu0 %v3062
    %v3064 = vpop.xlane.xlu0 %3063
    %v3065 = vsel %vm3061, %v3060, -inf
    %3066 = vmax.xlane.f32.xlu0 %v3065
    %v3067 = vpop.xlane.xlu0 %3066
    %v3068 = vsub.f32 %v3059, %v3064
    %v3069 = vsub.f32 %v3060, %v3067
    %v3070 = vmul.f32 %v3068, 1.442695
    %v3071 = vpow.pop %v3070
    %v3072 = vmul.f32 %v3069, 1.442695
    %v3073 = vpow.pop %v3072
    %v3074 = vsel %vm3061, %v3071, 0.0
    %3075 = vadd.xlane.f32.xlu0 %v3074
    %v3076 = vpop.xlane.xlu0 %3075
    %v3077 = vsel %vm3061, %v3073, 0.0
    %3078 = vadd.xlane.f32.xlu0 %v3077
    %v3079 = vpop.xlane.xlu0 %3078
    %v3080 = vpack.c.bf16 %v3071, %v3071
    %v3081 = vpack.c.bf16 %v3073, %v3073
    %v3083 = vsel %vm3061, %v3080, 0
    %vm3085 = vcmask 1043456
    %v3087 = vsel %vm3085, %v2956, 0
    %3089 = vmatprep.subr.bf16.mxu0 0
    %3090 = vmatpush1.bf16.msra.mxu0 %v3087
    %3091 = vmatprep.subr.bf16.mxu0 0
    %3092 = vmatpush1.bf16.msra.mxu0 0
    %3093 = vmatprep.subr.bf16.mxu0 0
    %3094 = vmatpush1.bf16.msra.mxu0 0
    %3095 = vmatprep.subr.bf16.mxu0 0
    %3096 = vmatpush1.bf16.msra.mxu0 0
    %3097 = vmatprep.subr.bf16.mxu0 0
    %3098 = vmatpush1.bf16.msra.mxu0 0
    %3099 = vmatprep.subr.bf16.mxu0 0
    %3100 = vmatpush1.bf16.msra.mxu0 0
    %3101 = vmatprep.subr.bf16.mxu0 0
    %3102 = vmatpush1.bf16.msra.mxu0 0
    %3103 = vmatprep.subr.bf16.mxu0 0
    %3104 = vmatpush1.bf16.msra.mxu0 0
    %3105 = vmatprep.subr.bf16.mxu0 0
    %3106 = vmatpush1.bf16.msra.mxu0 0
    %3107 = vmatprep.subr.bf16.mxu0 0
    %3108 = vmatpush1.bf16.msra.mxu0 0
    %3109 = vmatprep.subr.bf16.mxu0 0
    %3110 = vmatpush1.bf16.msra.mxu0 0
    %3111 = vmatprep.subr.bf16.mxu0 0
    %3112 = vmatpush1.bf16.msra.mxu0 0
    %3113 = vmatprep.subr.bf16.mxu0 0
    %3114 = vmatpush1.bf16.msra.mxu0 0
    %3115 = vmatprep.subr.bf16.mxu0 0
    %3116 = vmatpush1.bf16.msra.mxu0 0
    %3117 = vmatprep.subr.bf16.mxu0 0
    %3118 = vmatpush1.bf16.msra.mxu0 0
    %3119 = vmatprep.subr.bf16.mxu0 0
    %3120 = vmatpush1.bf16.msra.mxu0 0
    %3121 = vmatprep.mubr.bf16.mxu0 0
    %3122 = vmatmul.mubr.bf16.gmra.mrb[0].mxu0 %v3083
    %v3123 = vpop.f32.mrb[0].mxu0
    %v3124 = vadd.f32 0.0, %v3123
    %v3125 = vpop.f32.mrb[0].mxu0
    %v3126 = vpop.f32.mrb[0].mxu0
    %v3127 = vpop.f32.mrb[0].mxu0
    %3128 = vdwg.mxu0
    %v3130 = vsel %vm3061, %v3081, 0
    %v3133 = vsel %vm3085, %v2962, 0
    %3135 = vmatprep.subr.bf16.mxu0 0
    %3136 = vmatpush1.bf16.msra.mxu0 %v3133
    %3137 = vmatprep.subr.bf16.mxu0 0
    %3138 = vmatpush1.bf16.msra.mxu0 0
    %3139 = vmatprep.subr.bf16.mxu0 0
    %3140 = vmatpush1.bf16.msra.mxu0 0
    %3141 = vmatprep.subr.bf16.mxu0 0
    %3142 = vmatpush1.bf16.msra.mxu0 0
    %3143 = vmatprep.subr.bf16.mxu0 0
    %3144 = vmatpush1.bf16.msra.mxu0 0
    %3145 = vmatprep.subr.bf16.mxu0 0
    %3146 = vmatpush1.bf16.msra.mxu0 0
    %3147 = vmatprep.subr.bf16.mxu0 0
    %3148 = vmatpush1.bf16.msra.mxu0 0
    %3149 = vmatprep.subr.bf16.mxu0 0
    %3150 = vmatpush1.bf16.msra.mxu0 0
    %3151 = vmatprep.subr.bf16.mxu0 0
    %3152 = vmatpush1.bf16.msra.mxu0 0
    %3153 = vmatprep.subr.bf16.mxu0 0
    %3154 = vmatpush1.bf16.msra.mxu0 0
    %3155 = vmatprep.subr.bf16.mxu0 0
    %3156 = vmatpush1.bf16.msra.mxu0 0
    %3157 = vmatprep.subr.bf16.mxu0 0
    %3158 = vmatpush1.bf16.msra.mxu0 0
    %3159 = vmatprep.subr.bf16.mxu0 0
    %3160 = vmatpush1.bf16.msra.mxu0 0
    %3161 = vmatprep.subr.bf16.mxu0 0
    %3162 = vmatpush1.bf16.msra.mxu0 0
    %3163 = vmatprep.subr.bf16.mxu0 0
    %3164 = vmatpush1.bf16.msra.mxu0 0
    %3165 = vmatprep.subr.bf16.mxu0 0
    %3166 = vmatpush1.bf16.msra.mxu0 0
    %3167 = vmatprep.mubr.bf16.mxu0 0
    %3168 = vmatmul.mubr.bf16.gmra.mrb[0].mxu0 %v3130
    %v3169 = vpop.f32.mrb[0].mxu0
    %v3170 = vadd.f32 0.0, %v3169
    %v3171 = vpop.f32.mrb[0].mxu0
    %v3172 = vpop.f32.mrb[0].mxu0
    %v3173 = vpop.f32.mrb[0].mxu0
    %3174 = vdwg.mxu0
    %v3175 = vrcp.pop %v3076
    %v3176 = vrcp.pop %v3079
    %v3177 = vmul.f32 %v3124, %v3175
    %v3178 = vmul.f32 %v3170, %v3176
    %v3179 = vpack.c.bf16 %v3177, %v3177
    %v3180 = vpack.c.bf16 %v3178, %v3178
    %3181 = vst [vmem:[#allocation2] sm:$0xf] %v3179
    %3182 = vst [vmem:[#allocation2 + $0x10] sm:$0xf] %v3180
    %v3183 = vrot.slane %v2952, 4
    %v3185 = vrot.slane %v2954, 4
    %3187 = vmatprep.subr.bf16.mxu0 0
    %3188 = vmatpush1.bf16.xpose.msra.mxu0 %v3185
    %3189 = vmatprep.subr.bf16.mxu0 0
    %3190 = vmatpush1.bf16.xpose.msra.mxu0 0
    %3191 = vmatprep.subr.bf16.mxu0 0
    %3192 = vmatpush1.bf16.xpose.msra.mxu0 0
    %3193 = vmatprep.subr.bf16.mxu0 0
    %3194 = vmatpush1.bf16.xpose.msra.mxu0 0
    %3195 = vmatprep.subr.bf16.mxu0 0
    %3196 = vmatpush1.bf16.xpose.msra.mxu0 0
    %3197 = vmatprep.subr.bf16.mxu0 0
    %3198 = vmatpush1.bf16.xpose.msra.mxu0 0
    %3199 = vmatprep.subr.bf16.mxu0 0
    %3200 = vmatpush1.bf16.xpose.msra.mxu0 0
    %3201 = vmatprep.subr.bf16.mxu0 0
    %3202 = vmatpush1.bf16.xpose.msra.mxu0 0
    %3203 = vmatprep.subr.bf16.mxu0 0
    %3204 = vmatpush1.bf16.xpose.msra.mxu0 0
    %3205 = vmatprep.subr.bf16.mxu0 0
    %3206 = vmatpush1.bf16.xpose.msra.mxu0 0
    %3207 = vmatprep.subr.bf16.mxu0 0
    %3208 = vmatpush1.bf16.xpose.msra.mxu0 0
    %3209 = vmatprep.subr.bf16.mxu0 0
    %3210 = vmatpush1.bf16.xpose.msra.mxu0 0
    %3211 = vmatprep.subr.bf16.mxu0 0
    %3212 = vmatpush1.bf16.xpose.msra.mxu0 0
    %3213 = vmatprep.subr.bf16.mxu0 0
    %3214 = vmatpush1.bf16.xpose.msra.mxu0 0
    %3215 = vmatprep.subr.bf16.mxu0 0
    %3216 = vmatpush1.bf16.xpose.msra.mxu0 0
    %3217 = vmatprep.subr.bf16.mxu0 0
    %3218 = vmatpush1.bf16.xpose.msra.mxu0 0
    %3219 = vmatprep.mubr.bf16.mxu0 0
    %3220 = vmatmul.mubr.bf16.gmra.mrb[0].mxu0 %v3183
    %v3221 = vpop.f32.mrb[0].mxu0
    %v3222 = vadd.f32 0.0, %v3221
    %v3223 = vpop.f32.mrb[0].mxu0
    %v3224 = vpop.f32.mrb[0].mxu0
    %v3225 = vpop.f32.mrb[0].mxu0
    %3226 = vdwg.mxu0
    %v3227 = vrot.slane %v2958, 4
    %v3229 = vrot.slane %v2960, 4
    %3231 = vmatprep.subr.bf16.mxu0 0
    %3232 = vmatpush1.bf16.xpose.msra.mxu0 %v3229
    %3233 = vmatprep.subr.bf16.mxu0 0
    %3234 = vmatpush1.bf16.xpose.msra.mxu0 0
    %3235 = vmatprep.subr.bf16.mxu0 0
    %3236 = vmatpush1.bf16.xpose.msra.mxu0 0
    %3237 = vmatprep.subr.bf16.mxu0 0
    %3238 = vmatpush1.bf16.xpose.msra.mxu0 0
    %3239 = vmatprep.subr.bf16.mxu0 0
    %3240 = vmatpush1.bf16.xpose.msra.mxu0 0
    %3241 = vmatprep.subr.bf16.mxu0 0
    %3242 = vmatpush1.bf16.xpose.msra.mxu0 0
    %3243 = vmatprep.subr.bf16.mxu0 0
    %3244 = vmatpush1.bf16.xpose.msra.mxu0 0
    %3245 = vmatprep.subr.bf16.mxu0 0
    %3246 = vmatpush1.bf16.xpose.msra.mxu0 0
    %3247 = vmatprep.subr.bf16.mxu0 0
    %3248 = vmatpush1.bf16.xpose.msra.mxu0 0
    %3249 = vmatprep.subr.bf16.mxu0 0
    %3250 = vmatpush1.bf16.xpose.msra.mxu0 0
    %3251 = vmatprep.subr.bf16.mxu0 0
    %3252 = vmatpush1.bf16.xpose.msra.mxu0 0
    %3253 = vmatprep.subr.bf16.mxu0 0
    %3254 = vmatpush1.bf16.xpose.msra.mxu0 0
    %3255 = vmatprep.subr.bf16.mxu0 0
    %3256 = vmatpush1.bf16.xpose.msra.mxu0 0
    %3257 = vmatprep.subr.bf16.mxu0 0
    %3258 = vmatpush1.bf16.xpose.msra.mxu0 0
    %3259 = vmatprep.subr.bf16.mxu0 0
    %3260 = vmatpush1.bf16.xpose.msra.mxu0 0
    %3261 = vmatprep.subr.bf16.mxu0 0
    %3262 = vmatpush1.bf16.xpose.msra.mxu0 0
    %3263 = vmatprep.mubr.bf16.mxu0 0
    %3264 = vmatmul.mubr.bf16.gmra.mrb[0].mxu0 %v3227
    %v3265 = vpop.f32.mrb[0].mxu0
    %v3266 = vadd.f32 0.0, %v3265
    %v3267 = vpop.f32.mrb[0].mxu0
    %v3268 = vpop.f32.mrb[0].mxu0
    %v3269 = vpop.f32.mrb[0].mxu0
    %3270 = vdwg.mxu0
    %v3271 = vsel %vm3058, %v3222, -1e+30
    %v3272 = vsel %vm3058, %v3266, -1e+30
    %v3273 = vsel %vm3061, %v3271, -inf
    %3274 = vmax.xlane.f32.xlu0 %v3273
    %v3275 = vpop.xlane.xlu0 %3274
    %v3276 = vsel %vm3061, %v3272, -inf
    %3277 = vmax.xlane.f32.xlu0 %v3276
    %v3278 = vpop.xlane.xlu0 %3277
    %v3279 = vsub.f32 %v3271, %v3275
    %v3280 = vsub.f32 %v3272, %v3278
    %v3281 = vmul.f32 %v3279, 1.442695
    %v3282 = vpow.pop %v3281
    %v3283 = vmul.f32 %v3280, 1.442695
    %v3284 = vpow.pop %v3283
    %v3285 = vsel %vm3061, %v3282, 0.0
    %3286 = vadd.xlane.f32.xlu0 %v3285
    %v3287 = vpop.xlane.xlu0 %3286
    %v3288 = vsel %vm3061, %v3284, 0.0
    %3289 = vadd.xlane.f32.xlu0 %v3288
    %v3290 = vpop.xlane.xlu0 %3289
    %v3291 = vpack.c.bf16 %v3282, %v3282
    %v3292 = vpack.c.bf16 %v3284, %v3284
    %v3293 = vrot.slane %v2956, 4
    %v3295 = vsel %vm3061, %v3291, 0
    %v3298 = vsel %vm3085, %v3293, 0
    %3300 = vmatprep.subr.bf16.mxu0 0
    %3301 = vmatpush1.bf16.msra.mxu0 %v3298
    %3302 = vmatprep.subr.bf16.mxu0 0
    %3303 = vmatpush1.bf16.msra.mxu0 0
    %3304 = vmatprep.subr.bf16.mxu0 0
    %3305 = vmatpush1.bf16.msra.mxu0 0
    %3306 = vmatprep.subr.bf16.mxu0 0
    %3307 = vmatpush1.bf16.msra.mxu0 0
    %3308 = vmatprep.subr.bf16.mxu0 0
    %3309 = vmatpush1.bf16.msra.mxu0 0
    %3310 = vmatprep.subr.bf16.mxu0 0
    %3311 = vmatpush1.bf16.msra.mxu0 0
    %3312 = vmatprep.subr.bf16.mxu0 0
    %3313 = vmatpush1.bf16.msra.mxu0 0
    %3314 = vmatprep.subr.bf16.mxu0 0
    %3315 = vmatpush1.bf16.msra.mxu0 0
    %3316 = vmatprep.subr.bf16.mxu0 0
    %3317 = vmatpush1.bf16.msra.mxu0 0
    %3318 = vmatprep.subr.bf16.mxu0 0
    %3319 = vmatpush1.bf16.msra.mxu0 0
    %3320 = vmatprep.subr.bf16.mxu0 0
    %3321 = vmatpush1.bf16.msra.mxu0 0
    %3322 = vmatprep.subr.bf16.mxu0 0
    %3323 = vmatpush1.bf16.msra.mxu0 0
    %3324 = vmatprep.subr.bf16.mxu0 0
    %3325 = vmatpush1.bf16.msra.mxu0 0
    %3326 = vmatprep.subr.bf16.mxu0 0
    %3327 = vmatpush1.bf16.msra.mxu0 0
    %3328 = vmatprep.subr.bf16.mxu0 0
    %3329 = vmatpush1.bf16.msra.mxu0 0
    %3330 = vmatprep.subr.bf16.mxu0 0
    %3331 = vmatpush1.bf16.msra.mxu0 0
    %3332 = vmatprep.mubr.bf16.mxu0 0
    %3333 = vmatmul.mubr.bf16.gmra.mrb[0].mxu0 %v3295
    %v3334 = vpop.f32.mrb[0].mxu0
    %v3335 = vadd.f32 0.0, %v3334
    %v3336 = vpop.f32.mrb[0].mxu0
    %v3337 = vpop.f32.mrb[0].mxu0
    %v3338 = vpop.f32.mrb[0].mxu0
    %3339 = vdwg.mxu0
    %v3340 = vrot.slane %v2962, 4
    %v3342 = vsel %vm3061, %v3292, 0
    %v3345 = vsel %vm3085, %v3340, 0
    %3347 = vmatprep.subr.bf16.mxu0 0
    %3348 = vmatpush1.bf16.msra.mxu0 %v3345
    %3349 = vmatprep.subr.bf16.mxu0 0
    %3350 = vmatpush1.bf16.msra.mxu0 0
    %3351 = vmatprep.subr.bf16.mxu0 0
    %3352 = vmatpush1.bf16.msra.mxu0 0
    %3353 = vmatprep.subr.bf16.mxu0 0
    %3354 = vmatpush1.bf16.msra.mxu0 0
    %3355 = vmatprep.subr.bf16.mxu0 0
    %3356 = vmatpush1.bf16.msra.mxu0 0
    %3357 = vmatprep.subr.bf16.mxu0 0
    %3358 = vmatpush1.bf16.msra.mxu0 0
    %3359 = vmatprep.subr.bf16.mxu0 0
    %3360 = vmatpush1.bf16.msra.mxu0 0
    %3361 = vmatprep.subr.bf16.mxu0 0
    %3362 = vmatpush1.bf16.msra.mxu0 0
    %3363 = vmatprep.subr.bf16.mxu0 0
    %3364 = vmatpush1.bf16.msra.mxu0 0
    %3365 = vmatprep.subr.bf16.mxu0 0
    %3366 = vmatpush1.bf16.msra.mxu0 0
    %3367 = vmatprep.subr.bf16.mxu0 0
    %3368 = vmatpush1.bf16.msra.mxu0 0
    %3369 = vmatprep.subr.bf16.mxu0 0
    %3370 = vmatpush1.bf16.msra.mxu0 0
    %3371 = vmatprep.subr.bf16.mxu0 0
    %3372 = vmatpush1.bf16.msra.mxu0 0
    %3373 = vmatprep.subr.bf16.mxu0 0
    %3374 = vmatpush1.bf16.msra.mxu0 0
    %3375 = vmatprep.subr.bf16.mxu0 0
    %3376 = vmatpush1.bf16.msra.mxu0 0
    %3377 = vmatprep.subr.bf16.mxu0 0
    %3378 = vmatpush1.bf16.msra.mxu0 0
    %3379 = vmatprep.mubr.bf16.mxu0 0
    %3380 = vmatmul.mubr.bf16.gmra.mrb[0].mxu0 %v3342
    %v3381 = vpop.f32.mrb[0].mxu0
    %v3382 = vadd.f32 0.0, %v3381
    %v3383 = vpop.f32.mrb[0].mxu0
    %v3384 = vpop.f32.mrb[0].mxu0
    %v3385 = vpop.f32.mrb[0].mxu0
    %3386 = vdwg.mxu0
    %v3387 = vrcp.pop %v3287
    %v3388 = vrcp.pop %v3290
    %v3389 = vmul.f32 %v3335, %v3387
    %v3390 = vmul.f32 %v3382, %v3388
    %v3391 = vpack.c.bf16 %v3389, %v3389
    %v3392 = vpack.c.bf16 %v3390, %v3390
    %3393 = vst [vmem:[#allocation2 + $0x4] sm:$0xf] %v3391
    %3394 = vst [vmem:[#allocation2 + $0x14] sm:$0xf] %v3392
    %3395 = vmatprep.subr.bf16.mxu0 0
    %3396 = vmatpush1.bf16.xpose.msra.mxu0 %v2955
    %3397 = vmatprep.subr.bf16.mxu0 0
    %3398 = vmatpush1.bf16.xpose.msra.mxu0 0
    %3399 = vmatprep.subr.bf16.mxu0 0
    %3400 = vmatpush1.bf16.xpose.msra.mxu0 0
    %3401 = vmatprep.subr.bf16.mxu0 0
    %3402 = vmatpush1.bf16.xpose.msra.mxu0 0
    %3403 = vmatprep.subr.bf16.mxu0 0
    %3404 = vmatpush1.bf16.xpose.msra.mxu0 0
    %3405 = vmatprep.subr.bf16.mxu0 0
    %3406 = vmatpush1.bf16.xpose.msra.mxu0 0
    %3407 = vmatprep.subr.bf16.mxu0 0
    %3408 = vmatpush1.bf16.xpose.msra.mxu0 0
    %3409 = vmatprep.subr.bf16.mxu0 0
    %3410 = vmatpush1.bf16.xpose.msra.mxu0 0
    %3411 = vmatprep.subr.bf16.mxu0 0
    %3412 = vmatpush1.bf16.xpose.msra.mxu0 0
    %3413 = vmatprep.subr.bf16.mxu0 0
    %3414 = vmatpush1.bf16.xpose.msra.mxu0 0
    %3415 = vmatprep.subr.bf16.mxu0 0
    %3416 = vmatpush1.bf16.xpose.msra.mxu0 0
    %3417 = vmatprep.subr.bf16.mxu0 0
    %3418 = vmatpush1.bf16.xpose.msra.mxu0 0
    %3419 = vmatprep.subr.bf16.mxu0 0
    %3420 = vmatpush1.bf16.xpose.msra.mxu0 0
    %3421 = vmatprep.subr.bf16.mxu0 0
    %3422 = vmatpush1.bf16.xpose.msra.mxu0 0
    %3423 = vmatprep.subr.bf16.mxu0 0
    %3424 = vmatpush1.bf16.xpose.msra.mxu0 0
    %3425 = vmatprep.subr.bf16.mxu0 0
    %3426 = vmatpush1.bf16.xpose.msra.mxu0 0
    %3427 = vmatprep.mubr.bf16.mxu0 0
    %3428 = vmatmul.mubr.bf16.gmra.mrb[0].mxu0 %v2953
    %v3429 = vpop.f32.mrb[0].mxu0
    %v3430 = vadd.f32 0.0, %v3429
    %v3431 = vpop.f32.mrb[0].mxu0
    %v3432 = vpop.f32.mrb[0].mxu0
    %v3433 = vpop.f32.mrb[0].mxu0
    %3434 = vdwg.mxu0
    %3435 = vmatprep.subr.bf16.mxu0 0
    %3436 = vmatpush1.bf16.xpose.msra.mxu0 %v2961
    %3437 = vmatprep.subr.bf16.mxu0 0
    %3438 = vmatpush1.bf16.xpose.msra.mxu0 0
    %3439 = vmatprep.subr.bf16.mxu0 0
    %3440 = vmatpush1.bf16.xpose.msra.mxu0 0
    %3441 = vmatprep.subr.bf16.mxu0 0
    %3442 = vmatpush1.bf16.xpose.msra.mxu0 0
    %3443 = vmatprep.subr.bf16.mxu0 0
    %3444 = vmatpush1.bf16.xpose.msra.mxu0 0
    %3445 = vmatprep.subr.bf16.mxu0 0
    %3446 = vmatpush1.bf16.xpose.msra.mxu0 0
    %3447 = vmatprep.subr.bf16.mxu0 0
    %3448 = vmatpush1.bf16.xpose.msra.mxu0 0
    %3449 = vmatprep.subr.bf16.mxu0 0
    %3450 = vmatpush1.bf16.xpose.msra.mxu0 0
    %3451 = vmatprep.subr.bf16.mxu0 0
    %3452 = vmatpush1.bf16.xpose.msra.mxu0 0
    %3453 = vmatprep.subr.bf16.mxu0 0
    %3454 = vmatpush1.bf16.xpose.msra.mxu0 0
    %3455 = vmatprep.subr.bf16.mxu0 0
    %3456 = vmatpush1.bf16.xpose.msra.mxu0 0
    %3457 = vmatprep.subr.bf16.mxu0 0
    %3458 = vmatpush1.bf16.xpose.msra.mxu0 0
    %3459 = vmatprep.subr.bf16.mxu0 0
    %3460 = vmatpush1.bf16.xpose.msra.mxu0 0
    %3461 = vmatprep.subr.bf16.mxu0 0
    %3462 = vmatpush1.bf16.xpose.msra.mxu0 0
    %3463 = vmatprep.subr.bf16.mxu0 0
    %3464 = vmatpush1.bf16.xpose.msra.mxu0 0
    %3465 = vmatprep.subr.bf16.mxu0 0
    %3466 = vmatpush1.bf16.xpose.msra.mxu0 0
    %3467 = vmatprep.mubr.bf16.mxu0 0
    %3468 = vmatmul.mubr.bf16.gmra.mrb[0].mxu0 %v2959
    %v3469 = vpop.f32.mrb[0].mxu0
    %v3470 = vadd.f32 0.0, %v3469
    %v3471 = vpop.f32.mrb[0].mxu0
    %v3472 = vpop.f32.mrb[0].mxu0
    %v3473 = vpop.f32.mrb[0].mxu0
    %3474 = vdwg.mxu0
    %v3475 = vsel %vm3058, %v3430, -1e+30
    %v3476 = vsel %vm3058, %v3470, -1e+30
    %v3477 = vsel %vm3061, %v3475, -inf
    %3478 = vmax.xlane.f32.xlu0 %v3477
    %v3479 = vpop.xlane.xlu0 %3478
    %v3480 = vsel %vm3061, %v3476, -inf
    %3481 = vmax.xlane.f32.xlu0 %v3480
    %v3482 = vpop.xlane.xlu0 %3481
    %v3483 = vsub.f32 %v3475, %v3479
    %v3484 = vsub.f32 %v3476, %v3482
    %v3485 = vmul.f32 %v3483, 1.442695
    %v3486 = vpow.pop %v3485
    %v3487 = vmul.f32 %v3484, 1.442695
    %v3488 = vpow.pop %v3487
    %v3489 = vsel %vm3061, %v3486, 0.0
    %3490 = vadd.xlane.f32.xlu0 %v3489
    %v3491 = vpop.xlane.xlu0 %3490
    %v3492 = vsel %vm3061, %v3488, 0.0
    %3493 = vadd.xlane.f32.xlu0 %v3492
    %v3494 = vpop.xlane.xlu0 %3493
    %v3495 = vpack.c.bf16 %v3486, %v3486
    %v3496 = vpack.c.bf16 %v3488, %v3488
    %v3498 = vsel %vm3061, %v3495, 0
    %v3501 = vsel %vm3085, %v2957, 0
    %3503 = vmatprep.subr.bf16.mxu0 0
    %3504 = vmatpush1.bf16.msra.mxu0 %v3501
    %3505 = vmatprep.subr.bf16.mxu0 0
    %3506 = vmatpush1.bf16.msra.mxu0 0
    %3507 = vmatprep.subr.bf16.mxu0 0
    %3508 = vmatpush1.bf16.msra.mxu0 0
    %3509 = vmatprep.subr.bf16.mxu0 0
    %3510 = vmatpush1.bf16.msra.mxu0 0
    %3511 = vmatprep.subr.bf16.mxu0 0
    %3512 = vmatpush1.bf16.msra.mxu0 0
    %3513 = vmatprep.subr.bf16.mxu0 0
    %3514 = vmatpush1.bf16.msra.mxu0 0
    %3515 = vmatprep.subr.bf16.mxu0 0
    %3516 = vmatpush1.bf16.msra.mxu0 0
    %3517 = vmatprep.subr.bf16.mxu0 0
    %3518 = vmatpush1.bf16.msra.mxu0 0
    %3519 = vmatprep.subr.bf16.mxu0 0
    %3520 = vmatpush1.bf16.msra.mxu0 0
    %3521 = vmatprep.subr.bf16.mxu0 0
    %3522 = vmatpush1.bf16.msra.mxu0 0
    %3523 = vmatprep.subr.bf16.mxu0 0
    %3524 = vmatpush1.bf16.msra.mxu0 0
    %3525 = vmatprep.subr.bf16.mxu0 0
    %3526 = vmatpush1.bf16.msra.mxu0 0
    %3527 = vmatprep.subr.bf16.mxu0 0
    %3528 = vmatpush1.bf16.msra.mxu0 0
    %3529 = vmatprep.subr.bf16.mxu0 0
    %3530 = vmatpush1.bf16.msra.mxu0 0
    %3531 = vmatprep.subr.bf16.mxu0 0
    %3532 = vmatpush1.bf16.msra.mxu0 0
    %3533 = vmatprep.subr.bf16.mxu0 0
    %3534 = vmatpush1.bf16.msra.mxu0 0
    %3535 = vmatprep.mubr.bf16.mxu0 0
    %3536 = vmatmul.mubr.bf16.gmra.mrb[0].mxu0 %v3498
    %v3537 = vpop.f32.mrb[0].mxu0
    %v3538 = vadd.f32 0.0, %v3537
    %v3539 = vpop.f32.mrb[0].mxu0
    %v3540 = vpop.f32.mrb[0].mxu0
    %v3541 = vpop.f32.mrb[0].mxu0
    %3542 = vdwg.mxu0
    %v3544 = vsel %vm3061, %v3496, 0
    %v3547 = vsel %vm3085, %v2963, 0
    %3549 = vmatprep.subr.bf16.mxu0 0
    %3550 = vmatpush1.bf16.msra.mxu0 %v3547
    %3551 = vmatprep.subr.bf16.mxu0 0
    %3552 = vmatpush1.bf16.msra.mxu0 0
    %3553 = vmatprep.subr.bf16.mxu0 0
    %3554 = vmatpush1.bf16.msra.mxu0 0
    %3555 = vmatprep.subr.bf16.mxu0 0
    %3556 = vmatpush1.bf16.msra.mxu0 0
    %3557 = vmatprep.subr.bf16.mxu0 0
    %3558 = vmatpush1.bf16.msra.mxu0 0
    %3559 = vmatprep.subr.bf16.mxu0 0
    %3560 = vmatpush1.bf16.msra.mxu0 0
    %3561 = vmatprep.subr.bf16.mxu0 0
    %3562 = vmatpush1.bf16.msra.mxu0 0
    %3563 = vmatprep.subr.bf16.mxu0 0
    %3564 = vmatpush1.bf16.msra.mxu0 0
    %3565 = vmatprep.subr.bf16.mxu0 0
    %3566 = vmatpush1.bf16.msra.mxu0 0
    %3567 = vmatprep.subr.bf16.mxu0 0
    %3568 = vmatpush1.bf16.msra.mxu0 0
    %3569 = vmatprep.subr.bf16.mxu0 0
    %3570 = vmatpush1.bf16.msra.mxu0 0
    %3571 = vmatprep.subr.bf16.mxu0 0
    %3572 = vmatpush1.bf16.msra.mxu0 0
    %3573 = vmatprep.subr.bf16.mxu0 0
    %3574 = vmatpush1.bf16.msra.mxu0 0
    %3575 = vmatprep.subr.bf16.mxu0 0
    %3576 = vmatpush1.bf16.msra.mxu0 0
    %3577 = vmatprep.subr.bf16.mxu0 0
    %3578 = vmatpush1.bf16.msra.mxu0 0
    %3579 = vmatprep.subr.bf16.mxu0 0
    %3580 = vmatpush1.bf16.msra.mxu0 0
    %3581 = vmatprep.mubr.bf16.mxu0 0
    %3582 = vmatmul.mubr.bf16.gmra.mrb[0].mxu0 %v3544
    %v3583 = vpop.f32.mrb[0].mxu0
    %v3584 = vadd.f32 0.0, %v3583
    %v3585 = vpop.f32.mrb[0].mxu0
    %v3586 = vpop.f32.mrb[0].mxu0
    %v3587 = vpop.f32.mrb[0].mxu0
    %3588 = vdwg.mxu0
    %v3589 = vrcp.pop %v3491
    %v3590 = vrcp.pop %v3494
    %v3591 = vmul.f32 %v3538, %v3589
    %v3592 = vmul.f32 %v3584, %v3590
    %v3593 = vpack.c.bf16 %v3591, %v3591
    %v3594 = vpack.c.bf16 %v3592, %v3592
    %3595 = vst [vmem:[#allocation2 + $0x8] sm:$0xf] %v3593
    %3596 = vst [vmem:[#allocation2 + $0x18] sm:$0xf] %v3594
    %v3597 = vrot.slane %v2953, 4
    %v3599 = vrot.slane %v2955, 4
    %3601 = vmatprep.subr.bf16.mxu0 0
    %3602 = vmatpush1.bf16.xpose.msra.mxu0 %v3599
    %3603 = vmatprep.subr.bf16.mxu0 0
    %3604 = vmatpush1.bf16.xpose.msra.mxu0 0
    %3605 = vmatprep.subr.bf16.mxu0 0
    %3606 = vmatpush1.bf16.xpose.msra.mxu0 0
    %3607 = vmatprep.subr.bf16.mxu0 0
    %3608 = vmatpush1.bf16.xpose.msra.mxu0 0
    %3609 = vmatprep.subr.bf16.mxu0 0
    %3610 = vmatpush1.bf16.xpose.msra.mxu0 0
    %3611 = vmatprep.subr.bf16.mxu0 0
    %3612 = vmatpush1.bf16.xpose.msra.mxu0 0
    %3613 = vmatprep.subr.bf16.mxu0 0
    %3614 = vmatpush1.bf16.xpose.msra.mxu0 0
    %3615 = vmatprep.subr.bf16.mxu0 0
    %3616 = vmatpush1.bf16.xpose.msra.mxu0 0
    %3617 = vmatprep.subr.bf16.mxu0 0
    %3618 = vmatpush1.bf16.xpose.msra.mxu0 0
    %3619 = vmatprep.subr.bf16.mxu0 0
    %3620 = vmatpush1.bf16.xpose.msra.mxu0 0
    %3621 = vmatprep.subr.bf16.mxu0 0
    %3622 = vmatpush1.bf16.xpose.msra.mxu0 0
    %3623 = vmatprep.subr.bf16.mxu0 0
    %3624 = vmatpush1.bf16.xpose.msra.mxu0 0
    %3625 = vmatprep.subr.bf16.mxu0 0
    %3626 = vmatpush1.bf16.xpose.msra.mxu0 0
    %3627 = vmatprep.subr.bf16.mxu0 0
    %3628 = vmatpush1.bf16.xpose.msra.mxu0 0
    %3629 = vmatprep.subr.bf16.mxu0 0
    %3630 = vmatpush1.bf16.xpose.msra.mxu0 0
    %3631 = vmatprep.subr.bf16.mxu0 0
    %3632 = vmatpush1.bf16.xpose.msra.mxu0 0
    %3633 = vmatprep.mubr.bf16.mxu0 0
    %3634 = vmatmul.mubr.bf16.gmra.mrb[0].mxu0 %v3597
    %v3635 = vpop.f32.mrb[0].mxu0
    %v3636 = vadd.f32 0.0, %v3635
    %v3637 = vpop.f32.mrb[0].mxu0
    %v3638 = vpop.f32.mrb[0].mxu0
    %v3639 = vpop.f32.mrb[0].mxu0
    %3640 = vdwg.mxu0
    %v3641 = vrot.slane %v2959, 4
    %v3643 = vrot.slane %v2961, 4
    %3645 = vmatprep.subr.bf16.mxu0 0
    %3646 = vmatpush1.bf16.xpose.msra.mxu0 %v3643
    %3647 = vmatprep.subr.bf16.mxu0 0
    %3648 = vmatpush1.bf16.xpose.msra.mxu0 0
    %3649 = vmatprep.subr.bf16.mxu0 0
    %3650 = vmatpush1.bf16.xpose.msra.mxu0 0
    %3651 = vmatprep.subr.bf16.mxu0 0
    %3652 = vmatpush1.bf16.xpose.msra.mxu0 0
    %3653 = vmatprep.subr.bf16.mxu0 0
    %3654 = vmatpush1.bf16.xpose.msra.mxu0 0
    %3655 = vmatprep.subr.bf16.mxu0 0
    %3656 = vmatpush1.bf16.xpose.msra.mxu0 0
    %3657 = vmatprep.subr.bf16.mxu0 0
    %3658 = vmatpush1.bf16.xpose.msra.mxu0 0
    %3659 = vmatprep.subr.bf16.mxu0 0
    %3660 = vmatpush1.bf16.xpose.msra.mxu0 0
    %3661 = vmatprep.subr.bf16.mxu0 0
    %3662 = vmatpush1.bf16.xpose.msra.mxu0 0
    %3663 = vmatprep.subr.bf16.mxu0 0
    %3664 = vmatpush1.bf16.xpose.msra.mxu0 0
    %3665 = vmatprep.subr.bf16.mxu0 0
    %3666 = vmatpush1.bf16.xpose.msra.mxu0 0
    %3667 = vmatprep.subr.bf16.mxu0 0
    %3668 = vmatpush1.bf16.xpose.msra.mxu0 0
    %3669 = vmatprep.subr.bf16.mxu0 0
    %3670 = vmatpush1.bf16.xpose.msra.mxu0 0
    %3671 = vmatprep.subr.bf16.mxu0 0
    %3672 = vmatpush1.bf16.xpose.msra.mxu0 0
    %3673 = vmatprep.subr.bf16.mxu0 0
    %3674 = vmatpush1.bf16.xpose.msra.mxu0 0
    %3675 = vmatprep.subr.bf16.mxu0 0
    %3676 = vmatpush1.bf16.xpose.msra.mxu0 0
    %3677 = vmatprep.mubr.bf16.mxu0 0
    %3678 = vmatmul.mubr.bf16.gmra.mrb[0].mxu0 %v3641
    %v3679 = vpop.f32.mrb[0].mxu0
    %v3680 = vadd.f32 0.0, %v3679
    %v3681 = vpop.f32.mrb[0].mxu0
    %v3682 = vpop.f32.mrb[0].mxu0
    %v3683 = vpop.f32.mrb[0].mxu0
    %3684 = vdwg.mxu0
    %v3685 = vsel %vm3058, %v3636, -1e+30
    %v3686 = vsel %vm3058, %v3680, -1e+30
    %v3687 = vsel %vm3061, %v3685, -inf
    %3688 = vmax.xlane.f32.xlu0 %v3687
    %v3689 = vpop.xlane.xlu0 %3688
    %v3690 = vsel %vm3061, %v3686, -inf
    %3691 = vmax.xlane.f32.xlu0 %v3690
    %v3692 = vpop.xlane.xlu0 %3691
    %v3693 = vsub.f32 %v3685, %v3689
    %v3694 = vsub.f32 %v3686, %v3692
    %v3695 = vmul.f32 %v3693, 1.442695
    %v3696 = vpow.pop %v3695
    %v3697 = vmul.f32 %v3694, 1.442695
    %v3698 = vpow.pop %v3697
    %v3699 = vsel %vm3061, %v3696, 0.0
    %3700 = vadd.xlane.f32.xlu0 %v3699
    %v3701 = vpop.xlane.xlu0 %3700
    %v3702 = vsel %vm3061, %v3698, 0.0
    %3703 = vadd.xlane.f32.xlu0 %v3702
    %v3704 = vpop.xlane.xlu0 %3703
    %v3705 = vpack.c.bf16 %v3696, %v3696
    %v3706 = vpack.c.bf16 %v3698, %v3698
    %v3707 = vrot.slane %v2957, 4
    %v3709 = vsel %vm3061, %v3705, 0
    %v3712 = vsel %vm3085, %v3707, 0
    %3714 = vmatprep.subr.bf16.mxu0 0
    %3715 = vmatpush1.bf16.msra.mxu0 %v3712
    %3716 = vmatprep.subr.bf16.mxu0 0
    %3717 = vmatpush1.bf16.msra.mxu0 0
    %3718 = vmatprep.subr.bf16.mxu0 0
    %3719 = vmatpush1.bf16.msra.mxu0 0
    %3720 = vmatprep.subr.bf16.mxu0 0
    %3721 = vmatpush1.bf16.msra.mxu0 0
    %3722 = vmatprep.subr.bf16.mxu0 0
    %3723 = vmatpush1.bf16.msra.mxu0 0
    %3724 = vmatprep.subr.bf16.mxu0 0
    %3725 = vmatpush1.bf16.msra.mxu0 0
    %3726 = vmatprep.subr.bf16.mxu0 0
    %3727 = vmatpush1.bf16.msra.mxu0 0
    %3728 = vmatprep.subr.bf16.mxu0 0
    %3729 = vmatpush1.bf16.msra.mxu0 0
    %3730 = vmatprep.subr.bf16.mxu0 0
    %3731 = vmatpush1.bf16.msra.mxu0 0
    %3732 = vmatprep.subr.bf16.mxu0 0
    %3733 = vmatpush1.bf16.msra.mxu0 0
    %3734 = vmatprep.subr.bf16.mxu0 0
    %3735 = vmatpush1.bf16.msra.mxu0 0
    %3736 = vmatprep.subr.bf16.mxu0 0
    %3737 = vmatpush1.bf16.msra.mxu0 0
    %3738 = vmatprep.subr.bf16.mxu0 0
    %3739 = vmatpush1.bf16.msra.mxu0 0
    %3740 = vmatprep.subr.bf16.mxu0 0
    %3741 = vmatpush1.bf16.msra.mxu0 0
    %3742 = vmatprep.subr.bf16.mxu0 0
    %3743 = vmatpush1.bf16.msra.mxu0 0
    %3744 = vmatprep.subr.bf16.mxu0 0
    %3745 = vmatpush1.bf16.msra.mxu0 0
    %3746 = vmatprep.mubr.bf16.mxu0 0
    %3747 = vmatmul.mubr.bf16.gmra.mrb[0].mxu0 %v3709
    %v3748 = vpop.f32.mrb[0].mxu0
    %v3749 = vadd.f32 0.0, %v3748
    %v3750 = vpop.f32.mrb[0].mxu0
    %v3751 = vpop.f32.mrb[0].mxu0
    %v3752 = vpop.f32.mrb[0].mxu0
    %3753 = vdwg.mxu0
    %v3754 = vrot.slane %v2963, 4
    %v3756 = vsel %vm3061, %v3706, 0
    %v3759 = vsel %vm3085, %v3754, 0
    %3761 = vmatprep.subr.bf16.mxu0 0
    %3762 = vmatpush1.bf16.msra.mxu0 %v3759
    %3763 = vmatprep.subr.bf16.mxu0 0
    %3764 = vmatpush1.bf16.msra.mxu0 0
    %3765 = vmatprep.subr.bf16.mxu0 0
    %3766 = vmatpush1.bf16.msra.mxu0 0
    %3767 = vmatprep.subr.bf16.mxu0 0
    %3768 = vmatpush1.bf16.msra.mxu0 0
    %3769 = vmatprep.subr.bf16.mxu0 0
    %3770 = vmatpush1.bf16.msra.mxu0 0
    %3771 = vmatprep.subr.bf16.mxu0 0
    %3772 = vmatpush1.bf16.msra.mxu0 0
    %3773 = vmatprep.subr.bf16.mxu0 0
    %3774 = vmatpush1.bf16.msra.mxu0 0
    %3775 = vmatprep.subr.bf16.mxu0 0
    %3776 = vmatpush1.bf16.msra.mxu0 0
    %3777 = vmatprep.subr.bf16.mxu0 0
    %3778 = vmatpush1.bf16.msra.mxu0 0
    %3779 = vmatprep.subr.bf16.mxu0 0
    %3780 = vmatpush1.bf16.msra.mxu0 0
    %3781 = vmatprep.subr.bf16.mxu0 0
    %3782 = vmatpush1.bf16.msra.mxu0 0
    %3783 = vmatprep.subr.bf16.mxu0 0
    %3784 = vmatpush1.bf16.msra.mxu0 0
    %3785 = vmatprep.subr.bf16.mxu0 0
    %3786 = vmatpush1.bf16.msra.mxu0 0
    %3787 = vmatprep.subr.bf16.mxu0 0
    %3788 = vmatpush1.bf16.msra.mxu0 0
    %3789 = vmatprep.subr.bf16.mxu0 0
    %3790 = vmatpush1.bf16.msra.mxu0 0
    %3791 = vmatprep.subr.bf16.mxu0 0
    %3792 = vmatpush1.bf16.msra.mxu0 0
    %3793 = vmatprep.mubr.bf16.mxu0 0
    %3794 = vmatmul.mubr.bf16.gmra.mrb[0].mxu0 %v3756
    %v3795 = vpop.f32.mrb[0].mxu0
    %v3796 = vadd.f32 0.0, %v3795
    %v3797 = vpop.f32.mrb[0].mxu0
    %v3798 = vpop.f32.mrb[0].mxu0
    %v3799 = vpop.f32.mrb[0].mxu0
    %3800 = vdwg.mxu0
    %v3801 = vrcp.pop %v3701
    %v3802 = vrcp.pop %v3704
    %v3803 = vmul.f32 %v3749, %v3801
    %v3804 = vmul.f32 %v3796, %v3802
    %v3805 = vpack.c.bf16 %v3803, %v3803
    %v3806 = vpack.c.bf16 %v3804, %v3804
    %3807 = vst [vmem:[#allocation2 + $0xc] sm:$0xf] %v3805
    %3808 = vst [vmem:[#allocation2 + $0x1c] sm:$0xf] %v3806
    %v3809 = vld [vmem:[#allocation2] sm:$0xff]
    %v3810 = vld [vmem:[#allocation2 + $0x8] sm:$0xff]
    %v3811 = vld [vmem:[#allocation2 + $0x10] sm:$0xff]
    %v3812 = vld [vmem:[#allocation2 + $0x18] sm:$0xff]
    %v3813 = vld [vmem:[#allocation8] sm:$0xff]
    %v3814 = vld [vmem:[#allocation8 + $0x8] sm:$0xff]
    %v3815 = vld [vmem:[#allocation8 + $0x10] sm:$0xff]
    %v3816 = vld [vmem:[#allocation8 + $0x18] sm:$0xff]
    %v3817 = vld [vmem:[#allocation8 + $0x20] sm:$0xff]
    %v3818 = vld [vmem:[#allocation8 + $0x28] sm:$0xff]
    %v3819 = vld [vmem:[#allocation8 + $0x30] sm:$0xff]
    %v3820 = vld [vmem:[#allocation8 + $0x38] sm:$0xff]
    %v3821 = vld [vmem:[#allocation8 + $0x40] sm:$0xff]
    %v3822 = vld [vmem:[#allocation8 + $0x48] sm:$0xff]
    %v3823 = vld [vmem:[#allocation8 + $0x50] sm:$0xff]
    %v3824 = vld [vmem:[#allocation8 + $0x58] sm:$0xff]
    %v3825 = vld [vmem:[#allocation8 + $0x60] sm:$0xff]
    %v3826 = vld [vmem:[#allocation8 + $0x68] sm:$0xff]
    %v3827 = vld [vmem:[#allocation8 + $0x70] sm:$0xff]
    %v3828 = vld [vmem:[#allocation8 + $0x78] sm:$0xff]
    %v3829 = vld [vmem:[#allocation8 + $0x80] sm:$0xff]
    %v3830 = vld [vmem:[#allocation8 + $0x88] sm:$0xff]
    %v3831 = vld [vmem:[#allocation8 + $0x90] sm:$0xff]
    %v3832 = vld [vmem:[#allocation8 + $0x98] sm:$0xff]
    %v3833 = vld [vmem:[#allocation8 + $0xa0] sm:$0xff]
    %v3834 = vld [vmem:[#allocation8 + $0xa8] sm:$0xff]
    %v3835 = vld [vmem:[#allocation8 + $0xb0] sm:$0xff]
    %v3836 = vld [vmem:[#allocation8 + $0xb8] sm:$0xff]
    %v3837 = vld [vmem:[#allocation8 + $0xc0] sm:$0xff]
    %v3838 = vld [vmem:[#allocation8 + $0xc8] sm:$0xff]
    %v3839 = vld [vmem:[#allocation8 + $0xd0] sm:$0xff]
    %v3840 = vld [vmem:[#allocation8 + $0xd8] sm:$0xff]
    %v3841 = vld [vmem:[#allocation8 + $0xe0] sm:$0xff]
    %v3842 = vld [vmem:[#allocation8 + $0xe8] sm:$0xff]
    %v3843 = vld [vmem:[#allocation8 + $0xf0] sm:$0xff]
    %v3844 = vld [vmem:[#allocation8 + $0xf8] sm:$0xff]
    %v3845 = vld [vmem:[#allocation8 + $0x100] sm:$0xff]
    %v3846 = vld [vmem:[#allocation8 + $0x108] sm:$0xff]
    %v3847 = vld [vmem:[#allocation8 + $0x110] sm:$0xff]
    %v3848 = vld [vmem:[#allocation8 + $0x118] sm:$0xff]
    %v3849 = vld [vmem:[#allocation8 + $0x120] sm:$0xff]
    %v3850 = vld [vmem:[#allocation8 + $0x128] sm:$0xff]
    %v3851 = vld [vmem:[#allocation8 + $0x130] sm:$0xff]
    %v3852 = vld [vmem:[#allocation8 + $0x138] sm:$0xff]
    %v3853 = vld [vmem:[#allocation8 + $0x140] sm:$0xff]
    %v3854 = vld [vmem:[#allocation8 + $0x148] sm:$0xff]
    %v3855 = vld [vmem:[#allocation8 + $0x150] sm:$0xff]
    %v3856 = vld [vmem:[#allocation8 + $0x158] sm:$0xff]
    %v3857 = vld [vmem:[#allocation8 + $0x160] sm:$0xff]
    %v3858 = vld [vmem:[#allocation8 + $0x168] sm:$0xff]
    %v3859 = vld [vmem:[#allocation8 + $0x170] sm:$0xff]
    %v3860 = vld [vmem:[#allocation8 + $0x178] sm:$0xff]
    %v3861 = vld [vmem:[#allocation8 + $0x180] sm:$0xff]
    %v3862 = vld [vmem:[#allocation8 + $0x188] sm:$0xff]
    %v3863 = vld [vmem:[#allocation8 + $0x190] sm:$0xff]
    %v3864 = vld [vmem:[#allocation8 + $0x198] sm:$0xff]
    %v3865 = vld [vmem:[#allocation8 + $0x1a0] sm:$0xff]
    %v3866 = vld [vmem:[#allocation8 + $0x1a8] sm:$0xff]
    %v3867 = vld [vmem:[#allocation8 + $0x1b0] sm:$0xff]
    %v3868 = vld [vmem:[#allocation8 + $0x1b8] sm:$0xff]
    %v3869 = vld [vmem:[#allocation8 + $0x1c0] sm:$0xff]
    %v3870 = vld [vmem:[#allocation8 + $0x1c8] sm:$0xff]
    %v3871 = vld [vmem:[#allocation8 + $0x1d0] sm:$0xff]
    %v3872 = vld [vmem:[#allocation8 + $0x1d8] sm:$0xff]
    %v3873 = vld [vmem:[#allocation8 + $0x1e0] sm:$0xff]
    %v3874 = vld [vmem:[#allocation8 + $0x1e8] sm:$0xff]
    %v3875 = vld [vmem:[#allocation8 + $0x1f0] sm:$0xff]
    %v3876 = vld [vmem:[#allocation8 + $0x1f8] sm:$0xff]
    %v3877 = vld [vmem:[#allocation8 + $0x200] sm:$0xff]
    %v3878 = vld [vmem:[#allocation8 + $0x208] sm:$0xff]
    %v3879 = vld [vmem:[#allocation8 + $0x210] sm:$0xff]
    %v3880 = vld [vmem:[#allocation8 + $0x218] sm:$0xff]
    %v3881 = vld [vmem:[#allocation8 + $0x220] sm:$0xff]
    %v3882 = vld [vmem:[#allocation8 + $0x228] sm:$0xff]
    %v3883 = vld [vmem:[#allocation8 + $0x230] sm:$0xff]
    %v3884 = vld [vmem:[#allocation8 + $0x238] sm:$0xff]
    %v3885 = vld [vmem:[#allocation8 + $0x240] sm:$0xff]
    %v3886 = vld [vmem:[#allocation8 + $0x248] sm:$0xff]
    %v3887 = vld [vmem:[#allocation8 + $0x250] sm:$0xff]
    %v3888 = vld [vmem:[#allocation8 + $0x258] sm:$0xff]
    %v3889 = vld [vmem:[#allocation8 + $0x260] sm:$0xff]
    %v3890 = vld [vmem:[#allocation8 + $0x268] sm:$0xff]
    %v3891 = vld [vmem:[#allocation8 + $0x270] sm:$0xff]
    %v3892 = vld [vmem:[#allocation8 + $0x278] sm:$0xff]
    %v3893 = vld [vmem:[#allocation8 + $0x280] sm:$0xff]
    %v3894 = vld [vmem:[#allocation8 + $0x288] sm:$0xff]
    %v3895 = vld [vmem:[#allocation8 + $0x290] sm:$0xff]
    %v3896 = vld [vmem:[#allocation8 + $0x298] sm:$0xff]
    %v3897 = vld [vmem:[#allocation8 + $0x2a0] sm:$0xff]
    %v3898 = vld [vmem:[#allocation8 + $0x2a8] sm:$0xff]
    %v3899 = vld [vmem:[#allocation8 + $0x2b0] sm:$0xff]
    %v3900 = vld [vmem:[#allocation8 + $0x2b8] sm:$0xff]
    %v3901 = vld [vmem:[#allocation8 + $0x2c0] sm:$0xff]
    %v3902 = vld [vmem:[#allocation8 + $0x2c8] sm:$0xff]
    %v3903 = vld [vmem:[#allocation8 + $0x2d0] sm:$0xff]
    %v3904 = vld [vmem:[#allocation8 + $0x2d8] sm:$0xff]
    %v3905 = vld [vmem:[#allocation8 + $0x2e0] sm:$0xff]
    %v3906 = vld [vmem:[#allocation8 + $0x2e8] sm:$0xff]
    %v3907 = vld [vmem:[#allocation8 + $0x2f0] sm:$0xff]
    %v3908 = vld [vmem:[#allocation8 + $0x2f8] sm:$0xff]
    %v3909 = vld [vmem:[#allocation8 + $0x300] sm:$0xff]
    %v3910 = vld [vmem:[#allocation8 + $0x308] sm:$0xff]
    %v3911 = vld [vmem:[#allocation8 + $0x310] sm:$0xff]
    %v3912 = vld [vmem:[#allocation8 + $0x318] sm:$0xff]
    %v3913 = vld [vmem:[#allocation8 + $0x320] sm:$0xff]
    %v3914 = vld [vmem:[#allocation8 + $0x328] sm:$0xff]
    %v3915 = vld [vmem:[#allocation8 + $0x330] sm:$0xff]
    %v3916 = vld [vmem:[#allocation8 + $0x338] sm:$0xff]
    %v3917 = vld [vmem:[#allocation8 + $0x340] sm:$0xff]
    %v3918 = vld [vmem:[#allocation8 + $0x348] sm:$0xff]
    %v3919 = vld [vmem:[#allocation8 + $0x350] sm:$0xff]
    %v3920 = vld [vmem:[#allocation8 + $0x358] sm:$0xff]
    %v3921 = vld [vmem:[#allocation8 + $0x360] sm:$0xff]
    %v3922 = vld [vmem:[#allocation8 + $0x368] sm:$0xff]
    %v3923 = vld [vmem:[#allocation8 + $0x370] sm:$0xff]
    %v3924 = vld [vmem:[#allocation8 + $0x378] sm:$0xff]
    %v3925 = vld [vmem:[#allocation8 + $0x380] sm:$0xff]
    %v3926 = vld [vmem:[#allocation8 + $0x388] sm:$0xff]
    %v3927 = vld [vmem:[#allocation8 + $0x390] sm:$0xff]
    %v3928 = vld [vmem:[#allocation8 + $0x398] sm:$0xff]
    %v3929 = vld [vmem:[#allocation8 + $0x3a0] sm:$0xff]
    %v3930 = vld [vmem:[#allocation8 + $0x3a8] sm:$0xff]
    %v3931 = vld [vmem:[#allocation8 + $0x3b0] sm:$0xff]
    %v3932 = vld [vmem:[#allocation8 + $0x3b8] sm:$0xff]
    %v3933 = vld [vmem:[#allocation8 + $0x3c0] sm:$0xff]
    %v3934 = vld [vmem:[#allocation8 + $0x3c8] sm:$0xff]
    %v3935 = vld [vmem:[#allocation8 + $0x3d0] sm:$0xff]
    %v3936 = vld [vmem:[#allocation8 + $0x3d8] sm:$0xff]
    %v3937 = vld [vmem:[#allocation8 + $0x3e0] sm:$0xff]
    %v3938 = vld [vmem:[#allocation8 + $0x3e8] sm:$0xff]
    %v3939 = vld [vmem:[#allocation8 + $0x3f0] sm:$0xff]
    %v3940 = vld [vmem:[#allocation8 + $0x3f8] sm:$0xff]
    %v3941 = vld [vmem:[#allocation9] sm:$0xf]
    %v3943 = vlaneseq
    %v3944 = vshrl.u32 %v3943, 7
    %v3945 = vsub.s32 0, %v3944
    %v3946 = vrot.slane %v3941, %v3945
    %v3947 = vlaneseq
    %v3948 = vshrl.u32 %v3947, 7
    %v3949 = vsub.s32 1, %v3948
    %v3950 = vrot.slane %v3941, %v3949
    %v3951 = vlaneseq
    %v3952 = vshrl.u32 %v3951, 7
    %v3953 = vsub.s32 2, %v3952
    %v3954 = vrot.slane %v3941, %v3953
    %v3955 = vlaneseq
    %v3956 = vshrl.u32 %v3955, 7
    %v3957 = vsub.s32 3, %v3956
    %v3958 = vrot.slane %v3941, %v3957
    %v3967 = vunpack.c.l.b16 %v3809
    %v3968 = vunpack.c.h.b16 %v3809
    %v3969 = vunpack.c.l.b16 %v3810
    %v3970 = vunpack.c.h.b16 %v3810
    %v3971 = vunpack.c.l.b16 %v3811
    %v3972 = vunpack.c.h.b16 %v3811
    %v3973 = vunpack.c.l.b16 %v3812
    %v3974 = vunpack.c.h.b16 %v3812
    %v3975 = vpack.c.b16 %v3971, %v3967
    %v3976 = vpack.c.b16 %v3972, %v3968
    %v3977 = vpack.c.b16 %v3973, %v3969
    %v3978 = vpack.c.b16 %v3974, %v3970
    %v4111 = vunpack.c.l.b16 %v3813
    %v4112 = vunpack.c.h.b16 %v3813
    %v4113 = vunpack.c.l.b16 %v3814
    %v4114 = vunpack.c.h.b16 %v3814
    %v4115 = vunpack.c.l.b16 %v3815
    %v4116 = vunpack.c.h.b16 %v3815
    %v4117 = vunpack.c.l.b16 %v3816
    %v4118 = vunpack.c.h.b16 %v3816
    %v4119 = vunpack.c.l.b16 %v3817
    %v4120 = vunpack.c.h.b16 %v3817
    %v4121 = vunpack.c.l.b16 %v3818
    %v4122 = vunpack.c.h.b16 %v3818
    %v4123 = vunpack.c.l.b16 %v3819
    %v4124 = vunpack.c.h.b16 %v3819
    %v4125 = vunpack.c.l.b16 %v3820
    %v4126 = vunpack.c.h.b16 %v3820
    %v4127 = vunpack.c.l.b16 %v3821
    %v4128 = vunpack.c.h.b16 %v3821
    %v4129 = vunpack.c.l.b16 %v3822
    %v4130 = vunpack.c.h.b16 %v3822
    %v4131 = vunpack.c.l.b16 %v3823
    %v4132 = vunpack.c.h.b16 %v3823
    %v4133 = vunpack.c.l.b16 %v3824
    %v4134 = vunpack.c.h.b16 %v3824
    %v4135 = vunpack.c.l.b16 %v3825
    %v4136 = vunpack.c.h.b16 %v3825
    %v4137 = vunpack.c.l.b16 %v3826
    %v4138 = vunpack.c.h.b16 %v3826
    %v4139 = vunpack.c.l.b16 %v3827
    %v4140 = vunpack.c.h.b16 %v3827
    %v4141 = vunpack.c.l.b16 %v3828
    %v4142 = vunpack.c.h.b16 %v3828
    %v4143 = vunpack.c.l.b16 %v3829
    %v4144 = vunpack.c.h.b16 %v3829
    %v4145 = vunpack.c.l.b16 %v3830
    %v4146 = vunpack.c.h.b16 %v3830
    %v4147 = vunpack.c.l.b16 %v3831
    %v4148 = vunpack.c.h.b16 %v3831
    %v4149 = vunpack.c.l.b16 %v3832
    %v4150 = vunpack.c.h.b16 %v3832
    %v4151 = vunpack.c.l.b16 %v3833
    %v4152 = vunpack.c.h.b16 %v3833
    %v4153 = vunpack.c.l.b16 %v3834
    %v4154 = vunpack.c.h.b16 %v3834
    %v4155 = vunpack.c.l.b16 %v3835
    %v4156 = vunpack.c.h.b16 %v3835
    %v4157 = vunpack.c.l.b16 %v3836
    %v4158 = vunpack.c.h.b16 %v3836
    %v4159 = vunpack.c.l.b16 %v3837
    %v4160 = vunpack.c.h.b16 %v3837
    %v4161 = vunpack.c.l.b16 %v3838
    %v4162 = vunpack.c.h.b16 %v3838
    %v4163 = vunpack.c.l.b16 %v3839
    %v4164 = vunpack.c.h.b16 %v3839
    %v4165 = vunpack.c.l.b16 %v3840
    %v4166 = vunpack.c.h.b16 %v3840
    %v4167 = vunpack.c.l.b16 %v3841
    %v4168 = vunpack.c.h.b16 %v3841
    %v4169 = vunpack.c.l.b16 %v3842
    %v4170 = vunpack.c.h.b16 %v3842
    %v4171 = vunpack.c.l.b16 %v3843
    %v4172 = vunpack.c.h.b16 %v3843
    %v4173 = vunpack.c.l.b16 %v3844
    %v4174 = vunpack.c.h.b16 %v3844
    %v4175 = vunpack.c.l.b16 %v3845
    %v4176 = vunpack.c.h.b16 %v3845
    %v4177 = vunpack.c.l.b16 %v3846
    %v4178 = vunpack.c.h.b16 %v3846
    %v4179 = vunpack.c.l.b16 %v3847
    %v4180 = vunpack.c.h.b16 %v3847
    %v4181 = vunpack.c.l.b16 %v3848
    %v4182 = vunpack.c.h.b16 %v3848
    %v4183 = vunpack.c.l.b16 %v3849
    %v4184 = vunpack.c.h.b16 %v3849
    %v4185 = vunpack.c.l.b16 %v3850
    %v4186 = vunpack.c.h.b16 %v3850
    %v4187 = vunpack.c.l.b16 %v3851
    %v4188 = vunpack.c.h.b16 %v3851
    %v4189 = vunpack.c.l.b16 %v3852
    %v4190 = vunpack.c.h.b16 %v3852
    %v4191 = vunpack.c.l.b16 %v3853
    %v4192 = vunpack.c.h.b16 %v3853
    %v4193 = vunpack.c.l.b16 %v3854
    %v4194 = vunpack.c.h.b16 %v3854
    %v4195 = vunpack.c.l.b16 %v3855
    %v4196 = vunpack.c.h.b16 %v3855
    %v4197 = vunpack.c.l.b16 %v3856
    %v4198 = vunpack.c.h.b16 %v3856
    %v4199 = vunpack.c.l.b16 %v3857
    %v4200 = vunpack.c.h.b16 %v3857
    %v4201 = vunpack.c.l.b16 %v3858
    %v4202 = vunpack.c.h.b16 %v3858
    %v4203 = vunpack.c.l.b16 %v3859
    %v4204 = vunpack.c.h.b16 %v3859
    %v4205 = vunpack.c.l.b16 %v3860
    %v4206 = vunpack.c.h.b16 %v3860
    %v4207 = vunpack.c.l.b16 %v3861
    %v4208 = vunpack.c.h.b16 %v3861
    %v4209 = vunpack.c.l.b16 %v3862
    %v4210 = vunpack.c.h.b16 %v3862
    %v4211 = vunpack.c.l.b16 %v3863
    %v4212 = vunpack.c.h.b16 %v3863
    %v4213 = vunpack.c.l.b16 %v3864
    %v4214 = vunpack.c.h.b16 %v3864
    %v4215 = vunpack.c.l.b16 %v3865
    %v4216 = vunpack.c.h.b16 %v3865
    %v4217 = vunpack.c.l.b16 %v3866
    %v4218 = vunpack.c.h.b16 %v3866
    %v4219 = vunpack.c.l.b16 %v3867
    %v4220 = vunpack.c.h.b16 %v3867
    %v4221 = vunpack.c.l.b16 %v3868
    %v4222 = vunpack.c.h.b16 %v3868
    %v4223 = vunpack.c.l.b16 %v3869
    %v4224 = vunpack.c.h.b16 %v3869
    %v4225 = vunpack.c.l.b16 %v3870
    %v4226 = vunpack.c.h.b16 %v3870
    %v4227 = vunpack.c.l.b16 %v3871
    %v4228 = vunpack.c.h.b16 %v3871
    %v4229 = vunpack.c.l.b16 %v3872
    %v4230 = vunpack.c.h.b16 %v3872
    %v4231 = vunpack.c.l.b16 %v3873
    %v4232 = vunpack.c.h.b16 %v3873
    %v4233 = vunpack.c.l.b16 %v3874
    %v4234 = vunpack.c.h.b16 %v3874
    %v4235 = vunpack.c.l.b16 %v3875
    %v4236 = vunpack.c.h.b16 %v3875
    %v4237 = vunpack.c.l.b16 %v3876
    %v4238 = vunpack.c.h.b16 %v3876
    %v4239 = vunpack.c.l.b16 %v3877
    %v4240 = vunpack.c.h.b16 %v3877
    %v4241 = vunpack.c.l.b16 %v3878
    %v4242 = vunpack.c.h.b16 %v3878
    %v4243 = vunpack.c.l.b16 %v3879
    %v4244 = vunpack.c.h.b16 %v3879
    %v4245 = vunpack.c.l.b16 %v3880
    %v4246 = vunpack.c.h.b16 %v3880
    %v4247 = vunpack.c.l.b16 %v3881
    %v4248 = vunpack.c.h.b16 %v3881
    %v4249 = vunpack.c.l.b16 %v3882
    %v4250 = vunpack.c.h.b16 %v3882
    %v4251 = vunpack.c.l.b16 %v3883
    %v4252 = vunpack.c.h.b16 %v3883
    %v4253 = vunpack.c.l.b16 %v3884
    %v4254 = vunpack.c.h.b16 %v3884
    %v4255 = vunpack.c.l.b16 %v3885
    %v4256 = vunpack.c.h.b16 %v3885
    %v4257 = vunpack.c.l.b16 %v3886
    %v4258 = vunpack.c.h.b16 %v3886
    %v4259 = vunpack.c.l.b16 %v3887
    %v4260 = vunpack.c.h.b16 %v3887
    %v4261 = vunpack.c.l.b16 %v3888
    %v4262 = vunpack.c.h.b16 %v3888
    %v4263 = vunpack.c.l.b16 %v3889
    %v4264 = vunpack.c.h.b16 %v3889
    %v4265 = vunpack.c.l.b16 %v3890
    %v4266 = vunpack.c.h.b16 %v3890
    %v4267 = vunpack.c.l.b16 %v3891
    %v4268 = vunpack.c.h.b16 %v3891
    %v4269 = vunpack.c.l.b16 %v3892
    %v4270 = vunpack.c.h.b16 %v3892
    %v4271 = vunpack.c.l.b16 %v3893
    %v4272 = vunpack.c.h.b16 %v3893
    %v4273 = vunpack.c.l.b16 %v3894
    %v4274 = vunpack.c.h.b16 %v3894
    %v4275 = vunpack.c.l.b16 %v3895
    %v4276 = vunpack.c.h.b16 %v3895
    %v4277 = vunpack.c.l.b16 %v3896
    %v4278 = vunpack.c.h.b16 %v3896
    %v4279 = vunpack.c.l.b16 %v3897
    %v4280 = vunpack.c.h.b16 %v3897
    %v4281 = vunpack.c.l.b16 %v3898
    %v4282 = vunpack.c.h.b16 %v3898
    %v4283 = vunpack.c.l.b16 %v3899
    %v4284 = vunpack.c.h.b16 %v3899
    %v4285 = vunpack.c.l.b16 %v3900
    %v4286 = vunpack.c.h.b16 %v3900
    %v4287 = vunpack.c.l.b16 %v3901
    %v4288 = vunpack.c.h.b16 %v3901
    %v4289 = vunpack.c.l.b16 %v3902
    %v4290 = vunpack.c.h.b16 %v3902
    %v4291 = vunpack.c.l.b16 %v3903
    %v4292 = vunpack.c.h.b16 %v3903
    %v4293 = vunpack.c.l.b16 %v3904
    %v4294 = vunpack.c.h.b16 %v3904
    %v4295 = vunpack.c.l.b16 %v3905
    %v4296 = vunpack.c.h.b16 %v3905
    %v4297 = vunpack.c.l.b16 %v3906
    %v4298 = vunpack.c.h.b16 %v3906
    %v4299 = vunpack.c.l.b16 %v3907
    %v4300 = vunpack.c.h.b16 %v3907
    %v4301 = vunpack.c.l.b16 %v3908
    %v4302 = vunpack.c.h.b16 %v3908
    %v4303 = vunpack.c.l.b16 %v3909
    %v4304 = vunpack.c.h.b16 %v3909
    %v4305 = vunpack.c.l.b16 %v3910
    %v4306 = vunpack.c.h.b16 %v3910
    %v4307 = vunpack.c.l.b16 %v3911
    %v4308 = vunpack.c.h.b16 %v3911
    %v4309 = vunpack.c.l.b16 %v3912
    %v4310 = vunpack.c.h.b16 %v3912
    %v4311 = vunpack.c.l.b16 %v3913
    %v4312 = vunpack.c.h.b16 %v3913
    %v4313 = vunpack.c.l.b16 %v3914
    %v4314 = vunpack.c.h.b16 %v3914
    %v4315 = vunpack.c.l.b16 %v3915
    %v4316 = vunpack.c.h.b16 %v3915
    %v4317 = vunpack.c.l.b16 %v3916
    %v4318 = vunpack.c.h.b16 %v3916
    %v4319 = vunpack.c.l.b16 %v3917
    %v4320 = vunpack.c.h.b16 %v3917
    %v4321 = vunpack.c.l.b16 %v3918
    %v4322 = vunpack.c.h.b16 %v3918
    %v4323 = vunpack.c.l.b16 %v3919
    %v4324 = vunpack.c.h.b16 %v3919
    %v4325 = vunpack.c.l.b16 %v3920
    %v4326 = vunpack.c.h.b16 %v3920
    %v4327 = vunpack.c.l.b16 %v3921
    %v4328 = vunpack.c.h.b16 %v3921
    %v4329 = vunpack.c.l.b16 %v3922
    %v4330 = vunpack.c.h.b16 %v3922
    %v4331 = vunpack.c.l.b16 %v3923
    %v4332 = vunpack.c.h.b16 %v3923
    %v4333 = vunpack.c.l.b16 %v3924
    %v4334 = vunpack.c.h.b16 %v3924
    %v4335 = vunpack.c.l.b16 %v3925
    %v4336 = vunpack.c.h.b16 %v3925
    %v4337 = vunpack.c.l.b16 %v3926
    %v4338 = vunpack.c.h.b16 %v3926
    %v4339 = vunpack.c.l.b16 %v3927
    %v4340 = vunpack.c.h.b16 %v3927
    %v4341 = vunpack.c.l.b16 %v3928
    %v4342 = vunpack.c.h.b16 %v3928
    %v4343 = vunpack.c.l.b16 %v3929
    %v4344 = vunpack.c.h.b16 %v3929
    %v4345 = vunpack.c.l.b16 %v3930
    %v4346 = vunpack.c.h.b16 %v3930
    %v4347 = vunpack.c.l.b16 %v3931
    %v4348 = vunpack.c.h.b16 %v3931
    %v4349 = vunpack.c.l.b16 %v3932
    %v4350 = vunpack.c.h.b16 %v3932
    %v4351 = vunpack.c.l.b16 %v3933
    %v4352 = vunpack.c.h.b16 %v3933
    %v4353 = vunpack.c.l.b16 %v3934
    %v4354 = vunpack.c.h.b16 %v3934
    %v4355 = vunpack.c.l.b16 %v3935
    %v4356 = vunpack.c.h.b16 %v3935
    %v4357 = vunpack.c.l.b16 %v3936
    %v4358 = vunpack.c.h.b16 %v3936
    %v4359 = vunpack.c.l.b16 %v3937
    %v4360 = vunpack.c.h.b16 %v3937
    %v4361 = vunpack.c.l.b16 %v3938
    %v4362 = vunpack.c.h.b16 %v3938
    %v4363 = vunpack.c.l.b16 %v3939
    %v4364 = vunpack.c.h.b16 %v3939
    %v4365 = vunpack.c.l.b16 %v3940
    %v4366 = vunpack.c.h.b16 %v3940
    %v4367 = vpack.c.b16 %v4115, %v4111
    %v4368 = vpack.c.b16 %v4116, %v4112
    %v4369 = vpack.c.b16 %v4117, %v4113
    %v4370 = vpack.c.b16 %v4118, %v4114
    %v4371 = vpack.c.b16 %v4123, %v4119
    %v4372 = vpack.c.b16 %v4124, %v4120
    %v4373 = vpack.c.b16 %v4125, %v4121
    %v4374 = vpack.c.b16 %v4126, %v4122
    %v4375 = vpack.c.b16 %v4131, %v4127
    %v4376 = vpack.c.b16 %v4132, %v4128
    %v4377 = vpack.c.b16 %v4133, %v4129
    %v4378 = vpack.c.b16 %v4134, %v4130
    %v4379 = vpack.c.b16 %v4139, %v4135
    %v4380 = vpack.c.b16 %v4140, %v4136
    %v4381 = vpack.c.b16 %v4141, %v4137
    %v4382 = vpack.c.b16 %v4142, %v4138
    %v4383 = vpack.c.b16 %v4147, %v4143
    %v4384 = vpack.c.b16 %v4148, %v4144
    %v4385 = vpack.c.b16 %v4149, %v4145
    %v4386 = vpack.c.b16 %v4150, %v4146
    %v4387 = vpack.c.b16 %v4155, %v4151
    %v4388 = vpack.c.b16 %v4156, %v4152
    %v4389 = vpack.c.b16 %v4157, %v4153
    %v4390 = vpack.c.b16 %v4158, %v4154
    %v4391 = vpack.c.b16 %v4163, %v4159
    %v4392 = vpack.c.b16 %v4164, %v4160
    %v4393 = vpack.c.b16 %v4165, %v4161
    %v4394 = vpack.c.b16 %v4166, %v4162
    %v4395 = vpack.c.b16 %v4171, %v4167
    %v4396 = vpack.c.b16 %v4172, %v4168
    %v4397 = vpack.c.b16 %v4173, %v4169
    %v4398 = vpack.c.b16 %v4174, %v4170
    %v4399 = vpack.c.b16 %v4179, %v4175
    %v4400 = vpack.c.b16 %v4180, %v4176
    %v4401 = vpack.c.b16 %v4181, %v4177
    %v4402 = vpack.c.b16 %v4182, %v4178
    %v4403 = vpack.c.b16 %v4187, %v4183
    %v4404 = vpack.c.b16 %v4188, %v4184
    %v4405 = vpack.c.b16 %v4189, %v4185
    %v4406 = vpack.c.b16 %v4190, %v4186
    %v4407 = vpack.c.b16 %v4195, %v4191
    %v4408 = vpack.c.b16 %v4196, %v4192
    %v4409 = vpack.c.b16 %v4197, %v4193
    %v4410 = vpack.c.b16 %v4198, %v4194
    %v4411 = vpack.c.b16 %v4203, %v4199
    %v4412 = vpack.c.b16 %v4204, %v4200
    %v4413 = vpack.c.b16 %v4205, %v4201
    %v4414 = vpack.c.b16 %v4206, %v4202
    %v4415 = vpack.c.b16 %v4211, %v4207
    %v4416 = vpack.c.b16 %v4212, %v4208
    %v4417 = vpack.c.b16 %v4213, %v4209
    %v4418 = vpack.c.b16 %v4214, %v4210
    %v4419 = vpack.c.b16 %v4219, %v4215
    %v4420 = vpack.c.b16 %v4220, %v4216
    %v4421 = vpack.c.b16 %v4221, %v4217
    %v4422 = vpack.c.b16 %v4222, %v4218
    %v4423 = vpack.c.b16 %v4227, %v4223
    %v4424 = vpack.c.b16 %v4228, %v4224
    %v4425 = vpack.c.b16 %v4229, %v4225
    %v4426 = vpack.c.b16 %v4230, %v4226
    %v4427 = vpack.c.b16 %v4235, %v4231
    %v4428 = vpack.c.b16 %v4236, %v4232
    %v4429 = vpack.c.b16 %v4237, %v4233
    %v4430 = vpack.c.b16 %v4238, %v4234
    %v4431 = vpack.c.b16 %v4243, %v4239
    %v4432 = vpack.c.b16 %v4244, %v4240
    %v4433 = vpack.c.b16 %v4245, %v4241
    %v4434 = vpack.c.b16 %v4246, %v4242
    %v4435 = vpack.c.b16 %v4251, %v4247
    %v4436 = vpack.c.b16 %v4252, %v4248
    %v4437 = vpack.c.b16 %v4253, %v4249
    %v4438 = vpack.c.b16 %v4254, %v4250
    %v4439 = vpack.c.b16 %v4259, %v4255
    %v4440 = vpack.c.b16 %v4260, %v4256
    %v4441 = vpack.c.b16 %v4261, %v4257
    %v4442 = vpack.c.b16 %v4262, %v4258
    %v4443 = vpack.c.b16 %v4267, %v4263
    %v4444 = vpack.c.b16 %v4268, %v4264
    %v4445 = vpack.c.b16 %v4269, %v4265
    %v4446 = vpack.c.b16 %v4270, %v4266
    %v4447 = vpack.c.b16 %v4275, %v4271
    %v4448 = vpack.c.b16 %v4276, %v4272
    %v4449 = vpack.c.b16 %v4277, %v4273
    %v4450 = vpack.c.b16 %v4278, %v4274
    %v4451 = vpack.c.b16 %v4283, %v4279
    %v4452 = vpack.c.b16 %v4284, %v4280
    %v4453 = vpack.c.b16 %v4285, %v4281
    %v4454 = vpack.c.b16 %v4286, %v4282
    %v4455 = vpack.c.b16 %v4291, %v4287
    %v4456 = vpack.c.b16 %v4292, %v4288
    %v4457 = vpack.c.b16 %v4293, %v4289
    %v4458 = vpack.c.b16 %v4294, %v4290
    %v4459 = vpack.c.b16 %v4299, %v4295
    %v4460 = vpack.c.b16 %v4300, %v4296
    %v4461 = vpack.c.b16 %v4301, %v4297
    %v4462 = vpack.c.b16 %v4302, %v4298
    %v4463 = vpack.c.b16 %v4307, %v4303
    %v4464 = vpack.c.b16 %v4308, %v4304
    %v4465 = vpack.c.b16 %v4309, %v4305
    %v4466 = vpack.c.b16 %v4310, %v4306
    %v4467 = vpack.c.b16 %v4315, %v4311
    %v4468 = vpack.c.b16 %v4316, %v4312
    %v4469 = vpack.c.b16 %v4317, %v4313
    %v4470 = vpack.c.b16 %v4318, %v4314
    %v4471 = vpack.c.b16 %v4323, %v4319
    %v4472 = vpack.c.b16 %v4324, %v4320
    %v4473 = vpack.c.b16 %v4325, %v4321
    %v4474 = vpack.c.b16 %v4326, %v4322
    %v4475 = vpack.c.b16 %v4331, %v4327
    %v4476 = vpack.c.b16 %v4332, %v4328
    %v4477 = vpack.c.b16 %v4333, %v4329
    %v4478 = vpack.c.b16 %v4334, %v4330
    %v4479 = vpack.c.b16 %v4339, %v4335
    %v4480 = vpack.c.b16 %v4340, %v4336
    %v4481 = vpack.c.b16 %v4341, %v4337
    %v4482 = vpack.c.b16 %v4342, %v4338
    %v4483 = vpack.c.b16 %v4347, %v4343
    %v4484 = vpack.c.b16 %v4348, %v4344
    %v4485 = vpack.c.b16 %v4349, %v4345
    %v4486 = vpack.c.b16 %v4350, %v4346
    %v4487 = vpack.c.b16 %v4355, %v4351
    %v4488 = vpack.c.b16 %v4356, %v4352
    %v4489 = vpack.c.b16 %v4357, %v4353
    %v4490 = vpack.c.b16 %v4358, %v4354
    %v4491 = vpack.c.b16 %v4363, %v4359
    %v4492 = vpack.c.b16 %v4364, %v4360
    %v4493 = vpack.c.b16 %v4365, %v4361
    %v4494 = vpack.c.b16 %v4366, %v4362
    %4623 = vmatprep.subr.bf16.mxu0 %v4368
    %4624 = vmatpush1.bf16.msra.mxu0 %v4367
    %4625 = vmatprep.subr.bf16.mxu0 %v4372
    %4626 = vmatpush1.bf16.msra.mxu0 %v4371
    %4627 = vmatprep.subr.bf16.mxu0 %v4376
    %4628 = vmatpush1.bf16.msra.mxu0 %v4375
    %4629 = vmatprep.subr.bf16.mxu0 %v4380
    %4630 = vmatpush1.bf16.msra.mxu0 %v4379
    %4631 = vmatprep.subr.bf16.mxu0 %v4384
    %4632 = vmatpush1.bf16.msra.mxu0 %v4383
    %4633 = vmatprep.subr.bf16.mxu0 %v4388
    %4634 = vmatpush1.bf16.msra.mxu0 %v4387
    %4635 = vmatprep.subr.bf16.mxu0 %v4392
    %4636 = vmatpush1.bf16.msra.mxu0 %v4391
    %4637 = vmatprep.subr.bf16.mxu0 %v4396
    %4638 = vmatpush1.bf16.msra.mxu0 %v4395
    %4639 = vmatprep.subr.bf16.mxu0 %v4400
    %4640 = vmatpush1.bf16.msra.mxu0 %v4399
    %4641 = vmatprep.subr.bf16.mxu0 %v4404
    %4642 = vmatpush1.bf16.msra.mxu0 %v4403
    %4643 = vmatprep.subr.bf16.mxu0 %v4408
    %4644 = vmatpush1.bf16.msra.mxu0 %v4407
    %4645 = vmatprep.subr.bf16.mxu0 %v4412
    %4646 = vmatpush1.bf16.msra.mxu0 %v4411
    %4647 = vmatprep.subr.bf16.mxu0 %v4416
    %4648 = vmatpush1.bf16.msra.mxu0 %v4415
    %4649 = vmatprep.subr.bf16.mxu0 %v4420
    %4650 = vmatpush1.bf16.msra.mxu0 %v4419
    %4651 = vmatprep.subr.bf16.mxu0 %v4424
    %4652 = vmatpush1.bf16.msra.mxu0 %v4423
    %4653 = vmatprep.subr.bf16.mxu0 %v4428
    %4654 = vmatpush1.bf16.msra.mxu0 %v4427
    %4655 = vmatprep.mubr.bf16.mxu0 %v3976
    %4656 = vmatmul.mubr.bf16.gmra.mrb[0].mxu0 %v3975
    %v4657 = vpop.f32.mrb[0].mxu0
    %v4658 = vadd.f32 %v3946, %v4657
    %v4659 = vpop.f32.mrb[0].mxu0
    %v4660 = vadd.f32 %v3950, %v4659
    %v4661 = vpop.f32.mrb[0].mxu0
    %v4662 = vadd.f32 %v3946, %v4661
    %v4663 = vpop.f32.mrb[0].mxu0
    %v4664 = vadd.f32 %v3950, %v4663
    %4665 = vdwg.mxu0
    %4666 = vmatprep.subr.bf16.mxu0 %v4432
    %4667 = vmatpush1.bf16.msra.mxu0 %v4431
    %4668 = vmatprep.subr.bf16.mxu0 %v4436
    %4669 = vmatpush1.bf16.msra.mxu0 %v4435
    %4670 = vmatprep.subr.bf16.mxu0 %v4440
    %4671 = vmatpush1.bf16.msra.mxu0 %v4439
    %4672 = vmatprep.subr.bf16.mxu0 %v4444
    %4673 = vmatpush1.bf16.msra.mxu0 %v4443
    %4674 = vmatprep.subr.bf16.mxu0 %v4448
    %4675 = vmatpush1.bf16.msra.mxu0 %v4447
    %4676 = vmatprep.subr.bf16.mxu0 %v4452
    %4677 = vmatpush1.bf16.msra.mxu0 %v4451
    %4678 = vmatprep.subr.bf16.mxu0 %v4456
    %4679 = vmatpush1.bf16.msra.mxu0 %v4455
    %4680 = vmatprep.subr.bf16.mxu0 %v4460
    %4681 = vmatpush1.bf16.msra.mxu0 %v4459
    %4682 = vmatprep.subr.bf16.mxu0 %v4464
    %4683 = vmatpush1.bf16.msra.mxu0 %v4463
    %4684 = vmatprep.subr.bf16.mxu0 %v4468
    %4685 = vmatpush1.bf16.msra.mxu0 %v4467
    %4686 = vmatprep.subr.bf16.mxu0 %v4472
    %4687 = vmatpush1.bf16.msra.mxu0 %v4471
    %4688 = vmatprep.subr.bf16.mxu0 %v4476
    %4689 = vmatpush1.bf16.msra.mxu0 %v4475
    %4690 = vmatprep.subr.bf16.mxu0 %v4480
    %4691 = vmatpush1.bf16.msra.mxu0 %v4479
    %4692 = vmatprep.subr.bf16.mxu0 %v4484
    %4693 = vmatpush1.bf16.msra.mxu0 %v4483
    %4694 = vmatprep.subr.bf16.mxu0 %v4488
    %4695 = vmatpush1.bf16.msra.mxu0 %v4487
    %4696 = vmatprep.subr.bf16.mxu0 %v4492
    %4697 = vmatpush1.bf16.msra.mxu0 %v4491
    %4698 = vmatprep.mubr.bf16.mxu0 %v3978
    %4699 = vmatmul.mubr.bf16.gmra.mrb[0].mxu0 %v3977
    %v4700 = vpop.f32.mrb[0].mxu0
    %v4701 = vadd.f32 %v4658, %v4700
    %v4702 = vpop.f32.mrb[0].mxu0
    %v4703 = vadd.f32 %v4660, %v4702
    %v4704 = vpop.f32.mrb[0].mxu0
    %v4705 = vadd.f32 %v4662, %v4704
    %v4706 = vpop.f32.mrb[0].mxu0
    %v4707 = vadd.f32 %v4664, %v4706
    %4708 = vdwg.mxu0
    %4709 = vmatprep.subr.bf16.mxu0 %v4370
    %4710 = vmatpush1.bf16.msra.mxu0 %v4369
    %4711 = vmatprep.subr.bf16.mxu0 %v4374
    %4712 = vmatpush1.bf16.msra.mxu0 %v4373
    %4713 = vmatprep.subr.bf16.mxu0 %v4378
    %4714 = vmatpush1.bf16.msra.mxu0 %v4377
    %4715 = vmatprep.subr.bf16.mxu0 %v4382
    %4716 = vmatpush1.bf16.msra.mxu0 %v4381
    %4717 = vmatprep.subr.bf16.mxu0 %v4386
    %4718 = vmatpush1.bf16.msra.mxu0 %v4385
    %4719 = vmatprep.subr.bf16.mxu0 %v4390
    %4720 = vmatpush1.bf16.msra.mxu0 %v4389
    %4721 = vmatprep.subr.bf16.mxu0 %v4394
    %4722 = vmatpush1.bf16.msra.mxu0 %v4393
    %4723 = vmatprep.subr.bf16.mxu0 %v4398
    %4724 = vmatpush1.bf16.msra.mxu0 %v4397
    %4725 = vmatprep.subr.bf16.mxu0 %v4402
    %4726 = vmatpush1.bf16.msra.mxu0 %v4401
    %4727 = vmatprep.subr.bf16.mxu0 %v4406
    %4728 = vmatpush1.bf16.msra.mxu0 %v4405
    %4729 = vmatprep.subr.bf16.mxu0 %v4410
    %4730 = vmatpush1.bf16.msra.mxu0 %v4409
    %4731 = vmatprep.subr.bf16.mxu0 %v4414
    %4732 = vmatpush1.bf16.msra.mxu0 %v4413
    %4733 = vmatprep.subr.bf16.mxu0 %v4418
    %4734 = vmatpush1.bf16.msra.mxu0 %v4417
    %4735 = vmatprep.subr.bf16.mxu0 %v4422
    %4736 = vmatpush1.bf16.msra.mxu0 %v4421
    %4737 = vmatprep.subr.bf16.mxu0 %v4426
    %4738 = vmatpush1.bf16.msra.mxu0 %v4425
    %4739 = vmatprep.subr.bf16.mxu0 %v4430
    %4740 = vmatpush1.bf16.msra.mxu0 %v4429
    %4741 = vmatprep.mubr.bf16.mxu0 %v3976
    %4742 = vmatmul.mubr.bf16.gmra.mrb[0].mxu0 %v3975
    %v4743 = vpop.f32.mrb[0].mxu0
    %v4744 = vadd.f32 %v3954, %v4743
    %v4745 = vpop.f32.mrb[0].mxu0
    %v4746 = vadd.f32 %v3958, %v4745
    %v4747 = vpop.f32.mrb[0].mxu0
    %v4748 = vadd.f32 %v3954, %v4747
    %v4749 = vpop.f32.mrb[0].mxu0
    %v4750 = vadd.f32 %v3958, %v4749
    %4751 = vdwg.mxu0
    %4752 = vmatprep.subr.bf16.mxu0 %v4434
    %4753 = vmatpush1.bf16.msra.mxu0 %v4433
    %4754 = vmatprep.subr.bf16.mxu0 %v4438
    %4755 = vmatpush1.bf16.msra.mxu0 %v4437
    %4756 = vmatprep.subr.bf16.mxu0 %v4442
    %4757 = vmatpush1.bf16.msra.mxu0 %v4441
    %4758 = vmatprep.subr.bf16.mxu0 %v4446
    %4759 = vmatpush1.bf16.msra.mxu0 %v4445
    %4760 = vmatprep.subr.bf16.mxu0 %v4450
    %4761 = vmatpush1.bf16.msra.mxu0 %v4449
    %4762 = vmatprep.subr.bf16.mxu0 %v4454
    %4763 = vmatpush1.bf16.msra.mxu0 %v4453
    %4764 = vmatprep.subr.bf16.mxu0 %v4458
    %4765 = vmatpush1.bf16.msra.mxu0 %v4457
    %4766 = vmatprep.subr.bf16.mxu0 %v4462
    %4767 = vmatpush1.bf16.msra.mxu0 %v4461
    %4768 = vmatprep.subr.bf16.mxu0 %v4466
    %4769 = vmatpush1.bf16.msra.mxu0 %v4465
    %4770 = vmatprep.subr.bf16.mxu0 %v4470
    %4771 = vmatpush1.bf16.msra.mxu0 %v4469
    %4772 = vmatprep.subr.bf16.mxu0 %v4474
    %4773 = vmatpush1.bf16.msra.mxu0 %v4473
    %4774 = vmatprep.subr.bf16.mxu0 %v4478
    %4775 = vmatpush1.bf16.msra.mxu0 %v4477
    %4776 = vmatprep.subr.bf16.mxu0 %v4482
    %4777 = vmatpush1.bf16.msra.mxu0 %v4481
    %4778 = vmatprep.subr.bf16.mxu0 %v4486
    %4779 = vmatpush1.bf16.msra.mxu0 %v4485
    %4780 = vmatprep.subr.bf16.mxu0 %v4490
    %4781 = vmatpush1.bf16.msra.mxu0 %v4489
    %4782 = vmatprep.subr.bf16.mxu0 %v4494
    %4783 = vmatpush1.bf16.msra.mxu0 %v4493
    %4784 = vmatprep.mubr.bf16.mxu0 %v3978
    %4785 = vmatmul.mubr.bf16.gmra.mrb[0].mxu0 %v3977
    %v4786 = vpop.f32.mrb[0].mxu0
    %v4787 = vadd.f32 %v4744, %v4786
    %v4788 = vpop.f32.mrb[0].mxu0
    %v4789 = vadd.f32 %v4746, %v4788
    %v4790 = vpop.f32.mrb[0].mxu0
    %v4791 = vadd.f32 %v4748, %v4790
    %v4792 = vpop.f32.mrb[0].mxu0
    %v4793 = vadd.f32 %v4750, %v4792
    %4794 = vdwg.mxu0
    %4795 = vst [vmem:[#allocation11] sm:$0xff] %v4701
    %4796 = vst [vmem:[#allocation11 + $0x8] sm:$0xff] %v4703
    %4797 = vst [vmem:[#allocation11 + $0x10] sm:$0xff] %v4787
    %4798 = vst [vmem:[#allocation11 + $0x18] sm:$0xff] %v4789
    %4799 = vst [vmem:[#allocation11 + $0x20] sm:$0xff] %v4705
    %4800 = vst [vmem:[#allocation11 + $0x28] sm:$0xff] %v4707
    %4801 = vst [vmem:[#allocation11 + $0x30] sm:$0xff] %v4791
    %4802 = vst [vmem:[#allocation11 + $0x38] sm:$0xff] %v4793
    // Predicated region
    $region34: #{tpu_custom_call.1} parent=1 // pred_check
      _
    $region35: #{tpu_custom_call.1} parent=1 // pred_check_branch
      %4804 = sbr.rel (0) target = $region37
    $region36: #{tpu_custom_call.1} parent=1 // pred_region
      %s4806 = ssub.s32 1024, 1024
      %4807 = vsyncadd [#allocation5], %s4806
      %s4808 = sshll.u32 [#allocation11], 4
      %s4809 = int_to_ptr.vmem [resolvable:$true] %s4808
      %4814 = dma.vmem_to_hbm [thread:$0]  %s4809, 1024, %s4, [#allocation5], 512, 512, 32
    $region37: #{tpu_custom_call.1} parent=1 // pred_fallthru
      _
    // Predicated region
    $region38: #{tpu_custom_call.1} parent=1 // pred_check
      _
    $region39: #{tpu_custom_call.1} parent=1 // pred_check_branch
      %4816 = sbr.rel (0) target = $region41
    $region40: #{tpu_custom_call.1} parent=1 // pred_region
      %4817 = dma.done [#allocation5], 1024
    $region41: #{tpu_custom_call.1} parent=1 // pred_fallthru
      _
    %4818 = vsyncpa [#allocation4], 1
    %4819 = vsyncpa [#allocation7], 1
    %4820 = vsyncpa [#allocation10], 1
    %4821 = vsyncpa [#allocation5], 1

</llo_original>
